<compile_context>
chip_gen: v5e
topology: v5e:2x2
jax: 0.10.0
libtpu: 0.0.40
codegen_flags: <defaults>
</compile_context>

<pallas_src>
import functools

import jax
import jax.numpy as jnp
from jax import lax
from jax.experimental import pallas as pl
from jax.experimental.pallas import tpu as pltpu


def _round_up(x, m):
    return (x + m - 1) // m * m


def _residual_block_kernel(x_ref, w1_ref, w2_ref, o_ref, apf_ref,
                           *, H, W, C, Cp, P):
    # x_ref  : (1, H, W, C)  f32    input block (residual + activation source)
    # w1_ref : (9*Cp, Cp)    bf16   3x3 weight, taps row-major, channel-padded
    # w2_ref : (Cp, Cp)      bf16   1x1 weight, channel-padded
    # o_ref  : (1, H*W, Cp)  f32    lane-dense output block (channels sliced outside)
    # apf_ref: ((H+4)*P, Cp) bf16   flattened zero-padded relu(x), pitch P (pack-aligned)
    HP = H * P

    x3 = x_ref[0]                                         # (H, W, C) f32

    # Lane-pad the channels once (C -> Cp); reused for both activation and residual.
    xp = jnp.concatenate(
        [x3, jnp.zeros((H, W, Cp - C), jnp.float32)], axis=2)        # (H, W, Cp)

    a = jnp.maximum(xp, 0.0).astype(jnp.bfloat16)                     # ReLU, bf16 for MXU
    # Width-pad to the pitch (zeros fill the slack columns that act as left/right pad).
    a_pad = jnp.concatenate(
        [a, jnp.zeros((H, P - W, Cp), jnp.bfloat16)], axis=1)         # (H, P, Cp)

    # Refresh the top/bottom halo rows (pad rows are never data; cheap & megacore-safe),
    # then one pitch-aligned bulk store of all data rows.  Data row h lives at flat
    # rows [(h+2)*P, (h+2)*P + P); its slack columns carry the zero padding.
    apf_ref[0:2 * P, :] = jnp.zeros((2 * P, Cp), jnp.bfloat16)
    apf_ref[2 * P + HP:(H + 4) * P, :] = jnp.zeros((2 * P, Cp), jnp.bfloat16)
    apf_ref[2 * P:2 * P + HP, :] = a_pad.reshape(HP, Cp)

    # im2col: tap (kh, kw) for output base p = P + h*P + w reads apf[p + kh*P + kw - 1]
    # (the -1 absorbs the left pad).  Concatenate the 9 shifted views along lanes
    # (each piece is a whole number of vregs wide) and do ONE MXU matmul.
    taps = []
    for kh in range(3):
        for kw in range(3):
            s = (kh + 1) * P + kw - 1                     # static offset
            taps.append(apf_ref[s:s + HP, :])             # (HP, Cp) bf16
    patch = jnp.concatenate(taps, axis=-1)                # (HP, 9*Cp) bf16
    acc = jnp.dot(patch, w1_ref[...],
                  preferred_element_type=jnp.float32)     # (HP, Cp) f32

    # ReLU, then drop the junk pitch columns (sublane-aligned slice, no lane movement)
    # before the 1x1 matmul so it only runs over the H*W real pixels.
    h1 = jnp.maximum(acc, 0.0).reshape(H, P, Cp)[:, :W, :].reshape(H * W, Cp)
    y = jnp.dot(h1.astype(jnp.bfloat16), w2_ref[...],
                preferred_element_type=jnp.float32)       # (H*W, Cp) f32

    # Residual add with the un-ReLU'd input; full-lane unmasked store.
    out = xp.reshape(H * W, Cp) + y
    o_ref[0] = out.astype(o_ref.dtype)


def residual_block(x_nhwc, w3x3_hwio, w1x1_io):
    """x_nhwc: (N, H, W, C); w3x3_hwio: (3, 3, Cin, Cout); w1x1_io: (Cin, Cout)."""
    N, H, W, C = x_nhwc.shape
    Cout = w3x3_hwio.shape[-1]
    assert C == Cout, "residual add requires in_channels == out_channels"

    Cp = _round_up(C, 128)            # lane-padded channel count (128 for small C)
    P = _round_up(W + 2, 16)          # pad-buffer pitch, bf16 sublane-pack aligned
    R = (H + 4) * P                   # pad-buffer rows (covers all tap reads)

    # Channel-padded bf16 weights: block [t*Cp:t*Cp+C, :C] holds tap t = kh*3+kw.
    w1_full = jnp.zeros((9, Cp, Cp), jnp.float32)
    w1_full = w1_full.at[:, :C, :C].set(w3x3_hwio.reshape(9, C, Cout))
    w1_mat = w1_full.reshape(9 * Cp, Cp).astype(jnp.bfloat16)
    w2_mat = jnp.zeros((Cp, Cp), jnp.float32).at[:C, :C].set(w1x1_io).astype(jnp.bfloat16)

    flops = 2 * N * (H * P) * (9 * Cp) * Cp + 2 * N * (H * W) * Cp * Cp
    bytes_accessed = (N * H * W * C * x_nhwc.dtype.itemsize          # x in
                      + N * H * W * Cp * x_nhwc.dtype.itemsize       # lane-dense out
                      + (9 * Cp * Cp + Cp * Cp) * 2)                 # bf16 weights

    kernel = functools.partial(_residual_block_kernel, H=H, W=W, C=C, Cp=Cp, P=P)

    out = pl.pallas_call(
        kernel,
        out_shape=jax.ShapeDtypeStruct((N, H * W, Cp), x_nhwc.dtype),
        grid_spec=pltpu.PrefetchScalarGridSpec(
            num_scalar_prefetch=0,
            grid=(N,),
            in_specs=[
                pl.BlockSpec((1, H, W, C), lambda n: (n, 0, 0, 0)),
                pl.BlockSpec((9 * Cp, Cp), lambda n: (0, 0)),
                pl.BlockSpec((Cp, Cp), lambda n: (0, 0)),
            ],
            out_specs=pl.BlockSpec((1, H * W, Cp), lambda n: (n, 0, 0)),
            scratch_shapes=[
                pltpu.VMEM((R, Cp), jnp.bfloat16),    # flattened zero-padded relu(x)
            ],
        ),
        compiler_params=pltpu.CompilerParams(
            dimension_semantics=("parallel",),
            # Per-step footprint is ~3 MiB; raise this further only when moving to
            # bigger H-tiles on v6e (128 MiB physical).
            vmem_limit_bytes=32 * 1024 * 1024,
        ),
        cost_estimate=pl.CostEstimate(
            flops=flops, transcendentals=0, bytes_accessed=bytes_accessed),
    )(x_nhwc, w1_mat, w2_mat)

    # Slice the padded channels back and restore NHWC outside the kernel.
    return out[:, :, :C].reshape(N, H, W, C)


def reference_nhwc(x_nhwc, w3x3_hwio, w1x1_io):
    """Pure-JAX f32 reference of the same forward pass (NHWC)."""
    a = jnp.maximum(x_nhwc, 0.0)
    c1 = lax.conv_general_dilated(
        a, w3x3_hwio, window_strides=(1, 1), padding="SAME",
        dimension_numbers=("NHWC", "HWIO", "NHWC"))
    h = jnp.maximum(c1, 0.0)
    c2 = jnp.einsum("nhwc,cd->nhwd", h, w1x1_io)
    return x_nhwc + c2


if __name__ == "__main__":
    N, C, H, W = 2, 4, 16, 16   # PyTorch NCHW input would be (2, 4, 16, 16)

    key = jax.random.PRNGKey(0)
    kx, kw1, kw2 = jax.random.split(key, 3)

    # PyTorch-style parameter shapes, created deterministically in-script:
    #   conv3x3 weight: (Cout, Cin, 3, 3), conv1x1 weight: (Cout, Cin, 1, 1)
    w3x3_oihw = jax.random.normal(kw1, (C, C, 3, 3), dtype=jnp.float32) * 0.1
    w1x1_oihw = jax.random.normal(kw2, (C, C, 1, 1), dtype=jnp.float32) * 0.1

    # Convert to the layouts the kernel consumes.
    w3x3_hwio = jnp.transpose(w3x3_oihw, (2, 3, 1, 0))            # (3, 3, Cin, Cout)
    w1x1_io = jnp.transpose(w1x1_oihw[:, :, 0, 0], (1, 0))        # (Cin, Cout)

    # Input in NCHW (PyTorch convention), transposed to NHWC for the kernel.
    x_nchw = jax.random.normal(kx, (N, C, H, W), dtype=jnp.float32)
    x_nhwc = jnp.transpose(x_nchw, (0, 2, 3, 1))

    out = residual_block(x_nhwc, w3x3_hwio, w1x1_io)
    out = jax.block_until_ready(out)

    ref = reference_nhwc(x_nhwc, w3x3_hwio, w1x1_io)
    assert out.shape == (N, H, W, C)
    # bf16 MXU matmuls with f32 accumulation -> loosened tolerance vs f32 reference.
    assert jnp.allclose(out, ref, atol=3e-2, rtol=3e-2), "mismatch vs JAX reference"

    print("KERNEL_OK")
</pallas_src>

<mosaic_0001>
module attributes {stable_mosaic.version = 11 : i64} {
  func.func @_residual_block_kernel(%arg0: i32, %arg1: memref<1x16x16x4xf32, #tpu.memory_space<vmem>>, %arg2: memref<1152x128xbf16, #tpu.memory_space<vmem>>, %arg3: memref<128x128xbf16, #tpu.memory_space<vmem>>, %arg4: memref<1x256x128xf32, #tpu.memory_space<vmem>>, %arg5: memref<640x128xbf16, #tpu.memory_space<vmem>>) attributes {dimension_semantics = [#tpu.dimension_semantics<parallel>], iteration_bounds = array<i64: 2>, scalar_prefetch = 0 : i64, scratch_operands = 1 : i64, tpu.core_type = #tpu.core_type<tc>, window_params = [{transform_indices = @transform_0, window_bounds = array<i64: 1, 16, 16, 4>}, {pipeline_mode = #tpu.pipeline_mode<synchronous>, transform_indices = @transform_1, window_bounds = array<i64: 1152, 128>}, {pipeline_mode = #tpu.pipeline_mode<synchronous>, transform_indices = @transform_2, window_bounds = array<i64: 128, 128>}, {transform_indices = @transform_3, window_bounds = array<i64: 1, 256, 128>}]} {
    %c0 = arith.constant 0 : index
    %c0_0 = arith.constant 0 : index
    %c0_1 = arith.constant 0 : index
    %c0_2 = arith.constant 0 : index
    %0 = vector.load %arg1[%c0, %c0_0, %c0_1, %c0_2] : memref<1x16x16x4xf32, #tpu.memory_space<vmem>>, vector<1x16x16x4xf32>
    %1 = vector.shape_cast %0 : vector<1x16x16x4xf32> to vector<16x16x4xf32>
    %cst = arith.constant 0.000000e+00 : f32
    %2 = vector.broadcast %cst : f32 to vector<16x16x124xf32>
    %3 = tpu.concatenate %1, %2 in 2 : vector<16x16x4xf32>, vector<16x16x124xf32> -> vector<16x16x128xf32>
    %cst_3 = arith.constant 0.000000e+00 : f32
    %4 = vector.broadcast %cst_3 : f32 to vector<16x16x128xf32>
    %5 = arith.maximumf %3, %4 : vector<16x16x128xf32>
    %6 = arith.truncf %5 : vector<16x16x128xf32> to vector<16x16x128xbf16>
    %cst_4 = arith.constant 0.000000e+00 : bf16
    %7 = vector.broadcast %cst_4 : bf16 to vector<16x16x128xbf16>
    %8 = tpu.concatenate %6, %7 in 1 : vector<16x16x128xbf16>, vector<16x16x128xbf16> -> vector<16x32x128xbf16>
    %cst_5 = arith.constant 0.000000e+00 : bf16
    %9 = vector.broadcast %cst_5 : bf16 to vector<64x128xbf16>
    %c0_6 = arith.constant 0 : index
    %c0_7 = arith.constant 0 : index
    %10 = vector.load %arg5[%c0_6, %c0_7] : memref<640x128xbf16, #tpu.memory_space<vmem>>, vector<64x128xbf16>
    tpu.vector_store %arg5[%c0_6, %c0_7], %9 {strides = array<i32>} : memref<640x128xbf16, #tpu.memory_space<vmem>>, vector<64x128xbf16>,
    %cst_8 = arith.constant 0.000000e+00 : bf16
    %11 = vector.broadcast %cst_8 : bf16 to vector<64x128xbf16>
    %c576 = arith.constant 576 : index
    %c0_9 = arith.constant 0 : index
    %12 = vector.load %arg5[%c576, %c0_9] : memref<640x128xbf16, #tpu.memory_space<vmem>>, vector<64x128xbf16>
    tpu.vector_store %arg5[%c576, %c0_9], %11 {strides = array<i32>} : memref<640x128xbf16, #tpu.memory_space<vmem>>, vector<64x128xbf16>,
    %13 = vector.shape_cast %8 : vector<16x32x128xbf16> to vector<512x128xbf16>
    %c64 = arith.constant 64 : index
    %c0_10 = arith.constant 0 : index
    %14 = vector.load %arg5[%c64, %c0_10] : memref<640x128xbf16, #tpu.memory_space<vmem>>, vector<512x128xbf16>
    tpu.vector_store %arg5[%c64, %c0_10], %13 {strides = array<i32>} : memref<640x128xbf16, #tpu.memory_space<vmem>>, vector<512x128xbf16>,
    %c31 = arith.constant 31 : index
    %c0_11 = arith.constant 0 : index
    %15 = vector.load %arg5[%c31, %c0_11] : memref<640x128xbf16, #tpu.memory_space<vmem>>, vector<512x128xbf16>
    %c32 = arith.constant 32 : index
    %c0_12 = arith.constant 0 : index
    %16 = vector.load %arg5[%c32, %c0_12] : memref<640x128xbf16, #tpu.memory_space<vmem>>, vector<512x128xbf16>
    %c33 = arith.constant 33 : index
    %c0_13 = arith.constant 0 : index
    %17 = vector.load %arg5[%c33, %c0_13] : memref<640x128xbf16, #tpu.memory_space<vmem>>, vector<512x128xbf16>
    %c63 = arith.constant 63 : index
    %c0_14 = arith.constant 0 : index
    %18 = vector.load %arg5[%c63, %c0_14] : memref<640x128xbf16, #tpu.memory_space<vmem>>, vector<512x128xbf16>
    %c64_15 = arith.constant 64 : index
    %c0_16 = arith.constant 0 : index
    %19 = vector.load %arg5[%c64_15, %c0_16] : memref<640x128xbf16, #tpu.memory_space<vmem>>, vector<512x128xbf16>
    %c65 = arith.constant 65 : index
    %c0_17 = arith.constant 0 : index
    %20 = vector.load %arg5[%c65, %c0_17] : memref<640x128xbf16, #tpu.memory_space<vmem>>, vector<512x128xbf16>
    %c95 = arith.constant 95 : index
    %c0_18 = arith.constant 0 : index
    %21 = vector.load %arg5[%c95, %c0_18] : memref<640x128xbf16, #tpu.memory_space<vmem>>, vector<512x128xbf16>
    %c96 = arith.constant 96 : index
    %c0_19 = arith.constant 0 : index
    %22 = vector.load %arg5[%c96, %c0_19] : memref<640x128xbf16, #tpu.memory_space<vmem>>, vector<512x128xbf16>
    %c97 = arith.constant 97 : index
    %c0_20 = arith.constant 0 : index
    %23 = vector.load %arg5[%c97, %c0_20] : memref<640x128xbf16, #tpu.memory_space<vmem>>, vector<512x128xbf16>
    %24 = tpu.concatenate %15, %16, %17, %18, %19, %20, %21, %22, %23 in 1 : vector<512x128xbf16>, vector<512x128xbf16>, vector<512x128xbf16>, vector<512x128xbf16>, vector<512x128xbf16>, vector<512x128xbf16>, vector<512x128xbf16>, vector<512x128xbf16>, vector<512x128xbf16> -> vector<512x1152xbf16>
    %c0_21 = arith.constant 0 : index
    %c0_22 = arith.constant 0 : index
    %25 = vector.load %arg2[%c0_21, %c0_22] : memref<1152x128xbf16, #tpu.memory_space<vmem>>, vector<1152x128xbf16>
    %cst_23 = arith.constant dense<0.000000e+00> : vector<512x128xf32>
    %26 = tpu.matmul %24, %25, %cst_23 {dimension_numbers = #tpu.dot_dimension_numbers<[1], [0], [0], [1], [0, 0, 1, 1], [], []>} : vector<512x1152xbf16>, vector<1152x128xbf16>, vector<512x128xf32> -> vector<512x128xf32>
    %cst_24 = arith.constant 0.000000e+00 : f32
    %27 = vector.broadcast %cst_24 : f32 to vector<512x128xf32>
    %28 = arith.maximumf %26, %27 : vector<512x128xf32>
    %29 = vector.shape_cast %28 : vector<512x128xf32> to vector<16x32x128xf32>
    %30 = vector.extract_strided_slice %29 {offsets = [0, 0, 0], sizes = [16, 16, 128], strides = [1, 1, 1]} : vector<16x32x128xf32> to vector<16x16x128xf32>
    %31 = vector.shape_cast %30 : vector<16x16x128xf32> to vector<256x128xf32>
    %32 = arith.truncf %31 : vector<256x128xf32> to vector<256x128xbf16>
    %c0_25 = arith.constant 0 : index
    %c0_26 = arith.constant 0 : index
    %33 = vector.load %arg3[%c0_25, %c0_26] : memref<128x128xbf16, #tpu.memory_space<vmem>>, vector<128x128xbf16>
    %cst_27 = arith.constant dense<0.000000e+00> : vector<256x128xf32>
    %34 = tpu.matmul %32, %33, %cst_27 {dimension_numbers = #tpu.dot_dimension_numbers<[1], [0], [0], [1], [0, 0, 1, 1], [], []>} : vector<256x128xbf16>, vector<128x128xbf16>, vector<256x128xf32> -> vector<256x128xf32>
    %35 = vector.shape_cast %3 : vector<16x16x128xf32> to vector<256x128xf32>
    %36 = arith.addf %35, %34 : vector<256x128xf32>
    %c0_28 = arith.constant 0 : index
    %c0_29 = arith.constant 0 : index
    %c0_30 = arith.constant 0 : index
    %37 = vector.load %arg4[%c0_28, %c0_29, %c0_30] : memref<1x256x128xf32, #tpu.memory_space<vmem>>, vector<1x256x128xf32>
    %38 = vector.shape_cast %37 : vector<1x256x128xf32> to vector<256x128xf32>
    %39 = vector.shape_cast %36 : vector<256x128xf32> to vector<1x256x128xf32>
    tpu.vector_store %arg4[%c0_28, %c0_29, %c0_30], %39 {strides = array<i32>} : memref<1x256x128xf32, #tpu.memory_space<vmem>>, vector<1x256x128xf32>,
    return
  }
  func.func @transform_0(%arg0: i32) -> (i32, i32, i32, i32) {
    %c0_i32 = arith.constant 0 : i32
    %c0_i32_0 = arith.constant 0 : i32
    %c0_i32_1 = arith.constant 0 : i32
    %c0_i32_2 = arith.constant 0 : i32
    return %arg0, %c0_i32, %c0_i32_0, %c0_i32_1 : i32, i32, i32, i32
  }
  func.func @transform_1(%arg0: i32) -> (i32, i32) {
    %c0_i32 = arith.constant 0 : i32
    %c0_i32_0 = arith.constant 0 : i32
    %c0_i32_1 = arith.constant 0 : i32
    return %c0_i32, %c0_i32_0 : i32, i32
  }
  func.func @transform_2(%arg0: i32) -> (i32, i32) {
    %c0_i32 = arith.constant 0 : i32
    %c0_i32_0 = arith.constant 0 : i32
    %c0_i32_1 = arith.constant 0 : i32
    return %c0_i32, %c0_i32_0 : i32, i32
  }
  func.func @transform_3(%arg0: i32) -> (i32, i32, i32) {
    %c0_i32 = arith.constant 0 : i32
    %c0_i32_0 = arith.constant 0 : i32
    %c0_i32_1 = arith.constant 0 : i32
    return %arg0, %c0_i32, %c0_i32_0 : i32, i32, i32
  }
}

</mosaic_0001>

<llo_original>
// kernel: tpu_custom_call.1
$region0: #{tpu_custom_call.1}
  #allocation0 [shape = 'u32[]', space=smem, size = 0x4, offset = 0x4, fixed_abs, tag = 'smem constant byte address 0x4 - core index']
  #allocation1 [shape = 'u32[72,128]{1,0:T(1,128)}', space=vmem, size = 0x9000, scoped, tag = 'internal scratch']
  #allocation2 [shape = 'bf16[640,128]{1,0:T(8,128)(2,1)}', space=vmem, size = 0x28000, scoped, tag = 'scratch operand']
  %s0 = inlined_call_operand.vmem [shape: f32[2,16,16,4], index: 0, kind: input, shape index: {}]
  %s1 = inlined_call_operand.vmem [shape: bf16[1152,128], index: 1, kind: input, shape index: {}]
  %s2 = inlined_call_operand.vmem [shape: bf16[128,128], index: 2, kind: input, shape index: {}]
  %s3 = inlined_call_operand.hbm [shape: f32[2,256,128], index: 3, kind: output, shape index: {}]
  %s4 = sld [smem:[#allocation0]]
  $region45: #{tpu_custom_call.1} parent=0
    _
  %s6 = ssub.s32 1, %s4
  %s7 = scalar_select 0, %s6, %s4
  $region1: #{tpu_custom_call.1} parent=0
    #allocation3 [shape = 'u8[262144]{0}', space=vmem, size = 0x40000, scoped, tag = 'output window, operand 0']
    #allocation4 [shape = 's32[2]{0}', space=sflag, size = 0x8, scoped, tag = 'scoped memory for tpu_custom_call.1']
    %8 = vsyncpa [#allocation4], 0
    %s9 = scalar_lea.sflag [#allocation4], 1
    %10 = vsyncpa %s9, 0
    loop: start=0, step=1, limit=4
    $region2: #{tpu_custom_call.1} parent=1 // loop_pre_header
      _
    $region3: #{tpu_custom_call.1} parent=1 // loop_header
      %s12 = sphi 0, %s16
      %p13 = scmp.ge.s32.totalorder %s12, 4
      %s22 = sphi 0, %s24
      %s25 = sphi 0, %s22
      %s26 = sphi 0, %s25
      %s42 = sphi 0, %s26
      %s46 = sphi 0, %s46
      %s48 = sphi 0, %s46
      %s49 = sphi 0, %s48
      %s63 = sphi 0, %s49
      %s67 = sphi 0, %s67
      %s69 = sphi 0, %s67
      %s70 = sphi 0, %s69
      %s84 = sphi 0, %s70
      %s90 = sphi 0, %s92
      %s93 = sphi 0, %s90
      %s94 = sphi 0, %s93
      %s110 = sphi 0, %s94
    $region4: #{tpu_custom_call.1} parent=1 // loop_header_branch
      %15 = sbr.rel (%p13) target = $region8
    $region5: #{tpu_custom_call.1} parent=1 // loop_body
      %s17 = ssub.s32 %s12, 1
      %s18 = ssub.s32 %s12, 2
      %s19 = sadd.s32 %s12, 1
      %s20 = ssub.s32 %s12, %s19
      %p21 = scmp.eq.s32.totalorder %s20, 0
      %s23 = sadd.s32 %s22, 1
      %s24 = scalar_select %p21, %s22, %s23
      %p27 = pneg %p21
      %p28 = scmp.eq.s32.totalorder %s12, 1
      %p29 = por %p27, %p28
      %p30 = scmp.ne.s32.totalorder %s22, %s25
      %p31 = scmp.eq.s32.totalorder %s12, 0
      %p32 = por %p30, %p31
      %p33 = scmp.ne.s32.totalorder %s22, %s25
      %p34 = scmp.eq.s32.totalorder %s17, 1
      %p35 = por %p33, %p34
      %p36 = scmp.ne.s32.totalorder %s25, %s26
      %p37 = scmp.eq.s32.totalorder %s17, 0
      %p38 = por %p36, %p37
      %p39 = scmp.ne.s32.totalorder %s25, %s26
      %p40 = scmp.eq.s32.totalorder %s18, 1
      %p41 = por %p39, %p40
      %p43 = scmp.ne.s32.totalorder %s26, %s42
      %p44 = scmp.eq.s32.totalorder %s18, 0
      %p45 = por %p43, %p44
      %s47 = sadd.s32 %s46, 1
      %p50 = scmp.eq.s32.totalorder %s12, 1
      %p51 = scmp.ne.s32.totalorder %s46, %s48
      %p52 = scmp.eq.s32.totalorder %s12, 0
      %p53 = por %p51, %p52
      %p54 = scmp.ne.s32.totalorder %s46, %s48
      %p55 = scmp.eq.s32.totalorder %s17, 1
      %p56 = por %p54, %p55
      %p57 = scmp.ne.s32.totalorder %s48, %s49
      %p58 = scmp.eq.s32.totalorder %s17, 0
      %p59 = por %p57, %p58
      %p60 = scmp.ne.s32.totalorder %s48, %s49
      %p61 = scmp.eq.s32.totalorder %s18, 1
      %p62 = por %p60, %p61
      %p64 = scmp.ne.s32.totalorder %s49, %s63
      %p65 = scmp.eq.s32.totalorder %s18, 0
      %p66 = por %p64, %p65
      %s68 = sadd.s32 %s67, 1
      %p71 = scmp.eq.s32.totalorder %s12, 1
      %p72 = scmp.ne.s32.totalorder %s67, %s69
      %p73 = scmp.eq.s32.totalorder %s12, 0
      %p74 = por %p72, %p73
      %p75 = scmp.ne.s32.totalorder %s67, %s69
      %p76 = scmp.eq.s32.totalorder %s17, 1
      %p77 = por %p75, %p76
      %p78 = scmp.ne.s32.totalorder %s69, %s70
      %p79 = scmp.eq.s32.totalorder %s17, 0
      %p80 = por %p78, %p79
      %p81 = scmp.ne.s32.totalorder %s69, %s70
      %p82 = scmp.eq.s32.totalorder %s18, 1
      %p83 = por %p81, %p82
      %p85 = scmp.ne.s32.totalorder %s70, %s84
      %p86 = scmp.eq.s32.totalorder %s18, 0
      %p87 = por %p85, %p86
      %s88 = ssub.s32 %s12, %s19
      %p89 = scmp.eq.s32.totalorder %s88, 0
      %s91 = sadd.s32 %s90, 1
      %s92 = scalar_select %p89, %s90, %s91
      %p95 = pneg %p89
      %p96 = scmp.eq.s32.totalorder %s12, 1
      %p97 = por %p95, %p96
      %p98 = scmp.ne.s32.totalorder %s90, %s93
      %p99 = scmp.eq.s32.totalorder %s12, 0
      %p100 = por %p98, %p99
      %p101 = scmp.ne.s32.totalorder %s90, %s93
      %p102 = scmp.eq.s32.totalorder %s17, 1
      %p103 = por %p101, %p102
      %p104 = scmp.ne.s32.totalorder %s93, %s94
      %p105 = scmp.eq.s32.totalorder %s17, 0
      %p106 = por %p104, %p105
      %p107 = scmp.ne.s32.totalorder %s93, %s94
      %p108 = scmp.eq.s32.totalorder %s18, 1
      %p109 = por %p107, %p108
      %p111 = scmp.ne.s32.totalorder %s94, %s110
      %p112 = scmp.eq.s32.totalorder %s18, 0
      %p113 = por %p111, %p112
      %p114 = scmp.le.s32.totalorder 1, %s12
      %p115 = scmp.lt.s32.totalorder %s12, 3
      %p116 = pnand %p114, %p115
      %p117 = pneg %p116
      // Predicated region
      $region9: #{tpu_custom_call.1} parent=5 // pred_check
        _
      $region10: #{tpu_custom_call.1} parent=5 // pred_check_branch
        %119 = sbr.rel (%p116) target = $region12
      $region11: #{tpu_custom_call.1} parent=5 // pred_region
        %s120 = ssub.s32 %s12, 1
        // Predicated region
        $region13: #{tpu_custom_call.1} parent=11 // pred_check
          %p121 = pneg %p59
        $region14: #{tpu_custom_call.1} parent=11 // pred_check_branch
          %123 = sbr.rel (%p121) target = $region16
        $region15: #{tpu_custom_call.1} parent=11 // pred_region
          _
        $region16: #{tpu_custom_call.1} parent=11 // pred_fallthru
          _
        // Predicated region
        $region17: #{tpu_custom_call.1} parent=11 // pred_check
          %p124 = pneg %p80
        $region18: #{tpu_custom_call.1} parent=11 // pred_check_branch
          %126 = sbr.rel (%p124) target = $region20
        $region19: #{tpu_custom_call.1} parent=11 // pred_region
          _
        $region20: #{tpu_custom_call.1} parent=11 // pred_fallthru
          _
      $region12: #{tpu_custom_call.1} parent=5 // pred_fallthru
        _
      %p127 = scmp.lt.s32.totalorder %s12, 2
      // Predicated region
      $region21: #{tpu_custom_call.1} parent=5 // pred_check
        %p128 = pneg %p127
      $region22: #{tpu_custom_call.1} parent=5 // pred_check_branch
        %130 = sbr.rel (%p128) target = $region24
      $region23: #{tpu_custom_call.1} parent=5 // pred_region
        // Predicated region
        $region25: #{tpu_custom_call.1} parent=23 // pred_check
          %p131 = pneg %p32
        $region26: #{tpu_custom_call.1} parent=23 // pred_check_branch
          %133 = sbr.rel (%p131) target = $region28
        $region27: #{tpu_custom_call.1} parent=23 // pred_region
          %p134 = scmp.lt.s32.totalorder %s12, 1
          %s135 = scalar_select %p134, %s12, 1
          %s136 = smul.addr %s135, 32
          %s137 = smul.addr %s136, 8
          %s138 = scalar_lea.vmem %s0, %s137
        $region28: #{tpu_custom_call.1} parent=23 // pred_fallthru
          _
      $region24: #{tpu_custom_call.1} parent=5 // pred_fallthru
        _
      %p139 = scmp.le.s32.totalorder 1, %s12
      %p140 = scmp.lt.s32.totalorder %s12, 3
      %p141 = pnand %p139, %p140
      %p142 = pneg %p141
      // Predicated region
      $region29: #{tpu_custom_call.1} parent=5 // pred_check
        _
      $region30: #{tpu_custom_call.1} parent=5 // pred_check_branch
        %144 = sbr.rel (%p141) target = $region32
      $region31: #{tpu_custom_call.1} parent=5 // pred_region
        %s145 = ssub.s32 %s12, 1
        %p146 = scmp.lt.s32.totalorder %s17, 1
        %s147 = scalar_select %p146, %s17, 1
        %s148 = smul.addr %s147, 32
        %s149 = smul.addr %s148, 8
        %s150 = scalar_lea.vmem %s0, %s149
        %p151 = pneg %p38
        %p152 = pneg %p35
        %p153 = pneg %p59
        %p154 = pneg %p56
        %p155 = pneg %p80
        %p156 = pneg %p77
        %p157 = pneg %p106
        %p158 = pneg %p103
        %s159 = sand.u32 %s93, 1
        %s160 = scalar_lea.sflag [#allocation4], %s159
        %s161 = sand.u32 %s93, 1
        %s162 = smul.addr %s161, 256
        %s163 = scalar_lea.vmem [#allocation3], %s162
        %p164 = scmp.lt.s32.totalorder %s17, 1
        %s165 = scalar_select %p164, %s17, 1
        %s166 = smul.addr %s165, 32
        %s167 = smul.addr %s166, 8
        %s168 = scalar_lea.vmem %s0, %s167
        %v170 = vld [vmem:[%s168] sm:$0xff]
        %v171 = vld [vmem:[%s168 + $0x8] sm:$0xff]
        %v172 = vld [vmem:[%s168 + $0x10] sm:$0xff]
        %v173 = vld [vmem:[%s168 + $0x18] sm:$0xff]
        %v174 = vld [vmem:[%s168 + $0x20] sm:$0xff]
        %v175 = vld [vmem:[%s168 + $0x28] sm:$0xff]
        %v176 = vld [vmem:[%s168 + $0x30] sm:$0xff]
        %v177 = vld [vmem:[%s168 + $0x38] sm:$0xff]
        %v178 = vld [vmem:[%s168 + $0x40] sm:$0xff]
        %v179 = vld [vmem:[%s168 + $0x48] sm:$0xff]
        %v180 = vld [vmem:[%s168 + $0x50] sm:$0xff]
        %v181 = vld [vmem:[%s168 + $0x58] sm:$0xff]
        %v182 = vld [vmem:[%s168 + $0x60] sm:$0xff]
        %v183 = vld [vmem:[%s168 + $0x68] sm:$0xff]
        %v184 = vld [vmem:[%s168 + $0x70] sm:$0xff]
        %v185 = vld [vmem:[%s168 + $0x78] sm:$0xff]
        %v186 = vld [vmem:[%s168 + $0x80] sm:$0xff]
        %v187 = vld [vmem:[%s168 + $0x88] sm:$0xff]
        %v188 = vld [vmem:[%s168 + $0x90] sm:$0xff]
        %v189 = vld [vmem:[%s168 + $0x98] sm:$0xff]
        %v190 = vld [vmem:[%s168 + $0xa0] sm:$0xff]
        %v191 = vld [vmem:[%s168 + $0xa8] sm:$0xff]
        %v192 = vld [vmem:[%s168 + $0xb0] sm:$0xff]
        %v193 = vld [vmem:[%s168 + $0xb8] sm:$0xff]
        %v194 = vld [vmem:[%s168 + $0xc0] sm:$0xff]
        %v195 = vld [vmem:[%s168 + $0xc8] sm:$0xff]
        %v196 = vld [vmem:[%s168 + $0xd0] sm:$0xff]
        %v197 = vld [vmem:[%s168 + $0xd8] sm:$0xff]
        %v198 = vld [vmem:[%s168 + $0xe0] sm:$0xff]
        %v199 = vld [vmem:[%s168 + $0xe8] sm:$0xff]
        %v200 = vld [vmem:[%s168 + $0xf0] sm:$0xff]
        %v201 = vld [vmem:[%s168 + $0xf8] sm:$0xff]
        %vm202 = vcmask 31744
        %v203 = vsel %vm202, %v170, 0.0
        %v204 = vsel %vm202, %v171, 0.0
        %v205 = vsel %vm202, %v172, 0.0
        %v206 = vsel %vm202, %v173, 0.0
        %v207 = vsel %vm202, %v174, 0.0
        %v208 = vsel %vm202, %v175, 0.0
        %v209 = vsel %vm202, %v176, 0.0
        %v210 = vsel %vm202, %v177, 0.0
        %v211 = vsel %vm202, %v178, 0.0
        %v212 = vsel %vm202, %v179, 0.0
        %v213 = vsel %vm202, %v180, 0.0
        %v214 = vsel %vm202, %v181, 0.0
        %v215 = vsel %vm202, %v182, 0.0
        %v216 = vsel %vm202, %v183, 0.0
        %v217 = vsel %vm202, %v184, 0.0
        %v218 = vsel %vm202, %v185, 0.0
        %v219 = vsel %vm202, %v186, 0.0
        %v220 = vsel %vm202, %v187, 0.0
        %v221 = vsel %vm202, %v188, 0.0
        %v222 = vsel %vm202, %v189, 0.0
        %v223 = vsel %vm202, %v190, 0.0
        %v224 = vsel %vm202, %v191, 0.0
        %v225 = vsel %vm202, %v192, 0.0
        %v226 = vsel %vm202, %v193, 0.0
        %v227 = vsel %vm202, %v194, 0.0
        %v228 = vsel %vm202, %v195, 0.0
        %v229 = vsel %vm202, %v196, 0.0
        %v230 = vsel %vm202, %v197, 0.0
        %v231 = vsel %vm202, %v198, 0.0
        %v232 = vsel %vm202, %v199, 0.0
        %v233 = vsel %vm202, %v200, 0.0
        %v234 = vsel %vm202, %v201, 0.0
        %v235 = vmax.f32 %v203, 0.0
        %v236 = vmax.f32 %v204, 0.0
        %v237 = vmax.f32 %v205, 0.0
        %v238 = vmax.f32 %v206, 0.0
        %v239 = vmax.f32 %v207, 0.0
        %v240 = vmax.f32 %v208, 0.0
        %v241 = vmax.f32 %v209, 0.0
        %v242 = vmax.f32 %v210, 0.0
        %v243 = vmax.f32 %v211, 0.0
        %v244 = vmax.f32 %v212, 0.0
        %v245 = vmax.f32 %v213, 0.0
        %v246 = vmax.f32 %v214, 0.0
        %v247 = vmax.f32 %v215, 0.0
        %v248 = vmax.f32 %v216, 0.0
        %v249 = vmax.f32 %v217, 0.0
        %v250 = vmax.f32 %v218, 0.0
        %v251 = vmax.f32 %v219, 0.0
        %v252 = vmax.f32 %v220, 0.0
        %v253 = vmax.f32 %v221, 0.0
        %v254 = vmax.f32 %v222, 0.0
        %v255 = vmax.f32 %v223, 0.0
        %v256 = vmax.f32 %v224, 0.0
        %v257 = vmax.f32 %v225, 0.0
        %v258 = vmax.f32 %v226, 0.0
        %v259 = vmax.f32 %v227, 0.0
        %v260 = vmax.f32 %v228, 0.0
        %v261 = vmax.f32 %v229, 0.0
        %v262 = vmax.f32 %v230, 0.0
        %v263 = vmax.f32 %v231, 0.0
        %v264 = vmax.f32 %v232, 0.0
        %v265 = vmax.f32 %v233, 0.0
        %v266 = vmax.f32 %v234, 0.0
        %v267 = vpack.c.bf16 %v235, %v235
        %v268 = vpack.c.bf16 %v236, %v236
        %v269 = vpack.c.bf16 %v237, %v237
        %v270 = vpack.c.bf16 %v238, %v238
        %v271 = vpack.c.bf16 %v239, %v239
        %v272 = vpack.c.bf16 %v240, %v240
        %v273 = vpack.c.bf16 %v241, %v241
        %v274 = vpack.c.bf16 %v242, %v242
        %v275 = vpack.c.bf16 %v243, %v243
        %v276 = vpack.c.bf16 %v244, %v244
        %v277 = vpack.c.bf16 %v245, %v245
        %v278 = vpack.c.bf16 %v246, %v246
        %v279 = vpack.c.bf16 %v247, %v247
        %v280 = vpack.c.bf16 %v248, %v248
        %v281 = vpack.c.bf16 %v249, %v249
        %v282 = vpack.c.bf16 %v250, %v250
        %v283 = vpack.c.bf16 %v251, %v251
        %v284 = vpack.c.bf16 %v252, %v252
        %v285 = vpack.c.bf16 %v253, %v253
        %v286 = vpack.c.bf16 %v254, %v254
        %v287 = vpack.c.bf16 %v255, %v255
        %v288 = vpack.c.bf16 %v256, %v256
        %v289 = vpack.c.bf16 %v257, %v257
        %v290 = vpack.c.bf16 %v258, %v258
        %v291 = vpack.c.bf16 %v259, %v259
        %v292 = vpack.c.bf16 %v260, %v260
        %v293 = vpack.c.bf16 %v261, %v261
        %v294 = vpack.c.bf16 %v262, %v262
        %v295 = vpack.c.bf16 %v263, %v263
        %v296 = vpack.c.bf16 %v264, %v264
        %v297 = vpack.c.bf16 %v265, %v265
        %v298 = vpack.c.bf16 %v266, %v266
        %v331 = vunpack.c.l.b16 %v267
        %v332 = vunpack.c.l.b16 %v268
        %v333 = vunpack.c.l.b16 %v269
        %v334 = vunpack.c.l.b16 %v270
        %v335 = vunpack.c.l.b16 %v271
        %v336 = vunpack.c.l.b16 %v272
        %v337 = vunpack.c.l.b16 %v273
        %v338 = vunpack.c.l.b16 %v274
        %v339 = vunpack.c.l.b16 %v275
        %v340 = vunpack.c.l.b16 %v276
        %v341 = vunpack.c.l.b16 %v277
        %v342 = vunpack.c.l.b16 %v278
        %v343 = vunpack.c.l.b16 %v279
        %v344 = vunpack.c.l.b16 %v280
        %v345 = vunpack.c.l.b16 %v281
        %v346 = vunpack.c.l.b16 %v282
        %v347 = vunpack.c.l.b16 %v283
        %v348 = vunpack.c.l.b16 %v284
        %v349 = vunpack.c.l.b16 %v285
        %v350 = vunpack.c.l.b16 %v286
        %v351 = vunpack.c.l.b16 %v287
        %v352 = vunpack.c.l.b16 %v288
        %v353 = vunpack.c.l.b16 %v289
        %v354 = vunpack.c.l.b16 %v290
        %v355 = vunpack.c.l.b16 %v291
        %v356 = vunpack.c.l.b16 %v292
        %v357 = vunpack.c.l.b16 %v293
        %v358 = vunpack.c.l.b16 %v294
        %v359 = vunpack.c.l.b16 %v295
        %v360 = vunpack.c.l.b16 %v296
        %v361 = vunpack.c.l.b16 %v297
        %v362 = vunpack.c.l.b16 %v298
        %363 = vst [vmem:[#allocation2] sm:$0xf] 0
        %364 = vst [vmem:[#allocation2 + $0x4] sm:$0xf] 0
        %365 = vst [vmem:[#allocation2 + $0x8] sm:$0xf] 0
        %366 = vst [vmem:[#allocation2 + $0xc] sm:$0xf] 0
        %367 = vst [vmem:[#allocation2 + $0x10] sm:$0xf] 0
        %368 = vst [vmem:[#allocation2 + $0x14] sm:$0xf] 0
        %369 = vst [vmem:[#allocation2 + $0x18] sm:$0xf] 0
        %370 = vst [vmem:[#allocation2 + $0x1c] sm:$0xf] 0
        %371 = vst [vmem:[#allocation2 + $0x120] sm:$0xf] 0
        %372 = vst [vmem:[#allocation2 + $0x124] sm:$0xf] 0
        %373 = vst [vmem:[#allocation2 + $0x128] sm:$0xf] 0
        %374 = vst [vmem:[#allocation2 + $0x12c] sm:$0xf] 0
        %375 = vst [vmem:[#allocation2 + $0x130] sm:$0xf] 0
        %376 = vst [vmem:[#allocation2 + $0x134] sm:$0xf] 0
        %377 = vst [vmem:[#allocation2 + $0x138] sm:$0xf] 0
        %378 = vst [vmem:[#allocation2 + $0x13c] sm:$0xf] 0
        %v380 = vunpack.c.l.b16 0
        %v381 = vunpack.c.h.b16 0
        %v382 = vpack.c.b16 %v331, %v331
        %v383 = vpack.c.b16 %v332, %v332
        %v384 = vpack.c.b16 %v380, %v380
        %v385 = vpack.c.b16 %v381, %v381
        %v386 = vpack.c.b16 %v333, %v333
        %v387 = vpack.c.b16 %v334, %v334
        %v388 = vpack.c.b16 %v335, %v335
        %v389 = vpack.c.b16 %v336, %v336
        %v390 = vpack.c.b16 %v337, %v337
        %v391 = vpack.c.b16 %v338, %v338
        %v392 = vpack.c.b16 %v339, %v339
        %v393 = vpack.c.b16 %v340, %v340
        %v394 = vpack.c.b16 %v341, %v341
        %v395 = vpack.c.b16 %v342, %v342
        %v396 = vpack.c.b16 %v343, %v343
        %v397 = vpack.c.b16 %v344, %v344
        %v398 = vpack.c.b16 %v345, %v345
        %v399 = vpack.c.b16 %v346, %v346
        %v400 = vpack.c.b16 %v347, %v347
        %v401 = vpack.c.b16 %v348, %v348
        %v402 = vpack.c.b16 %v349, %v349
        %v403 = vpack.c.b16 %v350, %v350
        %v404 = vpack.c.b16 %v351, %v351
        %v405 = vpack.c.b16 %v352, %v352
        %v406 = vpack.c.b16 %v353, %v353
        %v407 = vpack.c.b16 %v354, %v354
        %v408 = vpack.c.b16 %v355, %v355
        %v409 = vpack.c.b16 %v356, %v356
        %v410 = vpack.c.b16 %v357, %v357
        %v411 = vpack.c.b16 %v358, %v358
        %v412 = vpack.c.b16 %v359, %v359
        %v413 = vpack.c.b16 %v360, %v360
        %v414 = vpack.c.b16 %v361, %v361
        %v415 = vpack.c.b16 %v362, %v362
        %450 = vst [vmem:[#allocation2 + $0x20] sm:$0xf] %v382
        %451 = vst [vmem:[#allocation2 + $0x24] sm:$0xf] %v383
        %452 = vst [vmem:[#allocation2 + $0x28] sm:$0xf] %v384
        %453 = vst [vmem:[#allocation2 + $0x2c] sm:$0xf] %v385
        %454 = vst [vmem:[#allocation2 + $0x30] sm:$0xf] %v386
        %455 = vst [vmem:[#allocation2 + $0x34] sm:$0xf] %v387
        %456 = vst [vmem:[#allocation2 + $0x38] sm:$0xf] %v384
        %457 = vst [vmem:[#allocation2 + $0x3c] sm:$0xf] %v385
        %458 = vst [vmem:[#allocation2 + $0x40] sm:$0xf] %v388
        %459 = vst [vmem:[#allocation2 + $0x44] sm:$0xf] %v389
        %460 = vst [vmem:[#allocation2 + $0x48] sm:$0xf] %v384
        %461 = vst [vmem:[#allocation2 + $0x4c] sm:$0xf] %v385
        %462 = vst [vmem:[#allocation2 + $0x50] sm:$0xf] %v390
        %463 = vst [vmem:[#allocation2 + $0x54] sm:$0xf] %v391
        %464 = vst [vmem:[#allocation2 + $0x58] sm:$0xf] %v384
        %465 = vst [vmem:[#allocation2 + $0x5c] sm:$0xf] %v385
        %466 = vst [vmem:[#allocation2 + $0x60] sm:$0xf] %v392
        %467 = vst [vmem:[#allocation2 + $0x64] sm:$0xf] %v393
        %468 = vst [vmem:[#allocation2 + $0x68] sm:$0xf] %v384
        %469 = vst [vmem:[#allocation2 + $0x6c] sm:$0xf] %v385
        %470 = vst [vmem:[#allocation2 + $0x70] sm:$0xf] %v394
        %471 = vst [vmem:[#allocation2 + $0x74] sm:$0xf] %v395
        %472 = vst [vmem:[#allocation2 + $0x78] sm:$0xf] %v384
        %473 = vst [vmem:[#allocation2 + $0x7c] sm:$0xf] %v385
        %474 = vst [vmem:[#allocation2 + $0x80] sm:$0xf] %v396
        %475 = vst [vmem:[#allocation2 + $0x84] sm:$0xf] %v397
        %476 = vst [vmem:[#allocation2 + $0x88] sm:$0xf] %v384
        %477 = vst [vmem:[#allocation2 + $0x8c] sm:$0xf] %v385
        %478 = vst [vmem:[#allocation2 + $0x90] sm:$0xf] %v398
        %479 = vst [vmem:[#allocation2 + $0x94] sm:$0xf] %v399
        %480 = vst [vmem:[#allocation2 + $0x98] sm:$0xf] %v384
        %481 = vst [vmem:[#allocation2 + $0x9c] sm:$0xf] %v385
        %482 = vst [vmem:[#allocation2 + $0xa0] sm:$0xf] %v400
        %483 = vst [vmem:[#allocation2 + $0xa4] sm:$0xf] %v401
        %484 = vst [vmem:[#allocation2 + $0xa8] sm:$0xf] %v384
        %485 = vst [vmem:[#allocation2 + $0xac] sm:$0xf] %v385
        %486 = vst [vmem:[#allocation2 + $0xb0] sm:$0xf] %v402
        %487 = vst [vmem:[#allocation2 + $0xb4] sm:$0xf] %v403
        %488 = vst [vmem:[#allocation2 + $0xb8] sm:$0xf] %v384
        %489 = vst [vmem:[#allocation2 + $0xbc] sm:$0xf] %v385
        %490 = vst [vmem:[#allocation2 + $0xc0] sm:$0xf] %v404
        %491 = vst [vmem:[#allocation2 + $0xc4] sm:$0xf] %v405
        %492 = vst [vmem:[#allocation2 + $0xc8] sm:$0xf] %v384
        %493 = vst [vmem:[#allocation2 + $0xcc] sm:$0xf] %v385
        %494 = vst [vmem:[#allocation2 + $0xd0] sm:$0xf] %v406
        %495 = vst [vmem:[#allocation2 + $0xd4] sm:$0xf] %v407
        %496 = vst [vmem:[#allocation2 + $0xd8] sm:$0xf] %v384
        %497 = vst [vmem:[#allocation2 + $0xdc] sm:$0xf] %v385
        %498 = vst [vmem:[#allocation2 + $0xe0] sm:$0xf] %v408
        %499 = vst [vmem:[#allocation2 + $0xe4] sm:$0xf] %v409
        %500 = vst [vmem:[#allocation2 + $0xe8] sm:$0xf] %v384
        %501 = vst [vmem:[#allocation2 + $0xec] sm:$0xf] %v385
        %502 = vst [vmem:[#allocation2 + $0xf0] sm:$0xf] %v410
        %503 = vst [vmem:[#allocation2 + $0xf4] sm:$0xf] %v411
        %504 = vst [vmem:[#allocation2 + $0xf8] sm:$0xf] %v384
        %505 = vst [vmem:[#allocation2 + $0xfc] sm:$0xf] %v385
        %506 = vst [vmem:[#allocation2 + $0x100] sm:$0xf] %v412
        %507 = vst [vmem:[#allocation2 + $0x104] sm:$0xf] %v413
        %508 = vst [vmem:[#allocation2 + $0x108] sm:$0xf] %v384
        %509 = vst [vmem:[#allocation2 + $0x10c] sm:$0xf] %v385
        %510 = vst [vmem:[#allocation2 + $0x110] sm:$0xf] %v414
        %511 = vst [vmem:[#allocation2 + $0x114] sm:$0xf] %v415
        %512 = vst [vmem:[#allocation2 + $0x118] sm:$0xf] %v384
        %513 = vst [vmem:[#allocation2 + $0x11c] sm:$0xf] %v385
        %v514 = vld [vmem:[#allocation2 + $0xc] sm:$0x8]
        %v515 = vld [vmem:[#allocation2 + $0x10] sm:$0xf]
        %v516 = vld [vmem:[#allocation2 + $0x14] sm:$0xf]
        %v517 = vld [vmem:[#allocation2 + $0x18] sm:$0xf]
        %v518 = vld [vmem:[#allocation2 + $0x1c] sm:$0xf]
        %v519 = vld [vmem:[#allocation2 + $0x20] sm:$0xf]
        %v520 = vld [vmem:[#allocation2 + $0x24] sm:$0xf]
        %v521 = vld [vmem:[#allocation2 + $0x28] sm:$0xf]
        %v522 = vld [vmem:[#allocation2 + $0x2c] sm:$0xf]
        %v523 = vld [vmem:[#allocation2 + $0x30] sm:$0xf]
        %v524 = vld [vmem:[#allocation2 + $0x34] sm:$0xf]
        %v525 = vld [vmem:[#allocation2 + $0x38] sm:$0xf]
        %v526 = vld [vmem:[#allocation2 + $0x3c] sm:$0xf]
        %v527 = vld [vmem:[#allocation2 + $0x40] sm:$0xf]
        %v528 = vld [vmem:[#allocation2 + $0x44] sm:$0xf]
        %v529 = vld [vmem:[#allocation2 + $0x48] sm:$0xf]
        %v530 = vld [vmem:[#allocation2 + $0x4c] sm:$0xf]
        %v531 = vld [vmem:[#allocation2 + $0x50] sm:$0xf]
        %v532 = vld [vmem:[#allocation2 + $0x54] sm:$0xf]
        %v533 = vld [vmem:[#allocation2 + $0x58] sm:$0xf]
        %v534 = vld [vmem:[#allocation2 + $0x5c] sm:$0xf]
        %v535 = vld [vmem:[#allocation2 + $0x60] sm:$0xf]
        %v536 = vld [vmem:[#allocation2 + $0x64] sm:$0xf]
        %v537 = vld [vmem:[#allocation2 + $0x68] sm:$0xf]
        %v538 = vld [vmem:[#allocation2 + $0x6c] sm:$0xf]
        %v539 = vld [vmem:[#allocation2 + $0x70] sm:$0xf]
        %v540 = vld [vmem:[#allocation2 + $0x74] sm:$0xf]
        %v541 = vld [vmem:[#allocation2 + $0x78] sm:$0xf]
        %v542 = vld [vmem:[#allocation2 + $0x7c] sm:$0xf]
        %v543 = vld [vmem:[#allocation2 + $0x80] sm:$0xf]
        %v544 = vld [vmem:[#allocation2 + $0x84] sm:$0xf]
        %v545 = vld [vmem:[#allocation2 + $0x88] sm:$0xf]
        %v546 = vld [vmem:[#allocation2 + $0x8c] sm:$0xf]
        %v547 = vld [vmem:[#allocation2 + $0x90] sm:$0xf]
        %v548 = vld [vmem:[#allocation2 + $0x94] sm:$0xf]
        %v549 = vld [vmem:[#allocation2 + $0x98] sm:$0xf]
        %v550 = vld [vmem:[#allocation2 + $0x9c] sm:$0xf]
        %v551 = vld [vmem:[#allocation2 + $0xa0] sm:$0xf]
        %v552 = vld [vmem:[#allocation2 + $0xa4] sm:$0xf]
        %v553 = vld [vmem:[#allocation2 + $0xa8] sm:$0xf]
        %v554 = vld [vmem:[#allocation2 + $0xac] sm:$0xf]
        %v555 = vld [vmem:[#allocation2 + $0xb0] sm:$0xf]
        %v556 = vld [vmem:[#allocation2 + $0xb4] sm:$0xf]
        %v557 = vld [vmem:[#allocation2 + $0xb8] sm:$0xf]
        %v558 = vld [vmem:[#allocation2 + $0xbc] sm:$0xf]
        %v559 = vld [vmem:[#allocation2 + $0xc0] sm:$0xf]
        %v560 = vld [vmem:[#allocation2 + $0xc4] sm:$0xf]
        %v561 = vld [vmem:[#allocation2 + $0xc8] sm:$0xf]
        %v562 = vld [vmem:[#allocation2 + $0xcc] sm:$0xf]
        %v563 = vld [vmem:[#allocation2 + $0xd0] sm:$0xf]
        %v564 = vld [vmem:[#allocation2 + $0xd4] sm:$0xf]
        %v565 = vld [vmem:[#allocation2 + $0xd8] sm:$0xf]
        %v566 = vld [vmem:[#allocation2 + $0xdc] sm:$0xf]
        %v567 = vld [vmem:[#allocation2 + $0xe0] sm:$0xf]
        %v568 = vld [vmem:[#allocation2 + $0xe4] sm:$0xf]
        %v569 = vld [vmem:[#allocation2 + $0xe8] sm:$0xf]
        %v570 = vld [vmem:[#allocation2 + $0xec] sm:$0xf]
        %v571 = vld [vmem:[#allocation2 + $0xf0] sm:$0xf]
        %v572 = vld [vmem:[#allocation2 + $0xf4] sm:$0xf]
        %v573 = vld [vmem:[#allocation2 + $0xf8] sm:$0xf]
        %v574 = vld [vmem:[#allocation2 + $0xfc] sm:$0xf]
        %v575 = vld [vmem:[#allocation2 + $0x100] sm:$0xf]
        %v576 = vld [vmem:[#allocation2 + $0x104] sm:$0xf]
        %v577 = vld [vmem:[#allocation2 + $0x108] sm:$0xf]
        %v578 = vld [vmem:[#allocation2 + $0x10c] sm:$0xf]
        %v579 = vld [vmem:[#allocation2 + $0x110] sm:$0x1]
        %v580 = vld [vmem:[#allocation2 + $0x1c] sm:$0x8]
        %v581 = vld [vmem:[#allocation2 + $0x110] sm:$0xf]
        %v582 = vld [vmem:[#allocation2 + $0x114] sm:$0xf]
        %v583 = vld [vmem:[#allocation2 + $0x118] sm:$0xf]
        %v584 = vld [vmem:[#allocation2 + $0x11c] sm:$0xf]
        %v585 = vld [vmem:[#allocation2 + $0x120] sm:$0x1]
        %v586 = vld [vmem:[#allocation2 + $0x2c] sm:$0x8]
        %v587 = vld [vmem:[#allocation2 + $0x120] sm:$0xf]
        %v588 = vld [vmem:[#allocation2 + $0x124] sm:$0xf]
        %v589 = vld [vmem:[#allocation2 + $0x128] sm:$0xf]
        %v590 = vld [vmem:[#allocation2 + $0x12c] sm:$0xf]
        %v591 = vld [vmem:[#allocation2 + $0x130] sm:$0x1]
        %v657 = vunpack.c.l.b16 %v514
        %v658 = vunpack.c.l.b16 %v515
        %v659 = vunpack.c.l.b16 %v516
        %v660 = vunpack.c.l.b16 %v517
        %v661 = vunpack.c.l.b16 %v518
        %v662 = vunpack.c.l.b16 %v519
        %v663 = vunpack.c.l.b16 %v520
        %v664 = vunpack.c.l.b16 %v521
        %v665 = vunpack.c.l.b16 %v522
        %v666 = vunpack.c.l.b16 %v523
        %v667 = vunpack.c.l.b16 %v524
        %v668 = vunpack.c.l.b16 %v525
        %v669 = vunpack.c.l.b16 %v526
        %v670 = vunpack.c.l.b16 %v527
        %v671 = vunpack.c.l.b16 %v528
        %v672 = vunpack.c.l.b16 %v529
        %v673 = vunpack.c.l.b16 %v530
        %v674 = vunpack.c.l.b16 %v531
        %v675 = vunpack.c.l.b16 %v532
        %v676 = vunpack.c.l.b16 %v533
        %v677 = vunpack.c.l.b16 %v534
        %v678 = vunpack.c.l.b16 %v535
        %v679 = vunpack.c.l.b16 %v536
        %v680 = vunpack.c.l.b16 %v537
        %v681 = vunpack.c.l.b16 %v538
        %v682 = vunpack.c.l.b16 %v539
        %v683 = vunpack.c.l.b16 %v540
        %v684 = vunpack.c.l.b16 %v541
        %v685 = vunpack.c.l.b16 %v542
        %v686 = vunpack.c.l.b16 %v543
        %v687 = vunpack.c.l.b16 %v544
        %v688 = vunpack.c.l.b16 %v545
        %v689 = vunpack.c.l.b16 %v546
        %v690 = vunpack.c.l.b16 %v547
        %v691 = vunpack.c.l.b16 %v548
        %v692 = vunpack.c.l.b16 %v549
        %v693 = vunpack.c.l.b16 %v550
        %v694 = vunpack.c.l.b16 %v551
        %v695 = vunpack.c.l.b16 %v552
        %v696 = vunpack.c.l.b16 %v553
        %v697 = vunpack.c.l.b16 %v554
        %v698 = vunpack.c.l.b16 %v555
        %v699 = vunpack.c.l.b16 %v556
        %v700 = vunpack.c.l.b16 %v557
        %v701 = vunpack.c.l.b16 %v558
        %v702 = vunpack.c.l.b16 %v559
        %v703 = vunpack.c.l.b16 %v560
        %v704 = vunpack.c.l.b16 %v561
        %v705 = vunpack.c.l.b16 %v562
        %v706 = vunpack.c.l.b16 %v563
        %v707 = vunpack.c.l.b16 %v564
        %v708 = vunpack.c.l.b16 %v565
        %v709 = vunpack.c.l.b16 %v566
        %v710 = vunpack.c.l.b16 %v567
        %v711 = vunpack.c.l.b16 %v568
        %v712 = vunpack.c.l.b16 %v569
        %v713 = vunpack.c.l.b16 %v570
        %v714 = vunpack.c.l.b16 %v571
        %v715 = vunpack.c.l.b16 %v572
        %v716 = vunpack.c.l.b16 %v573
        %v717 = vunpack.c.l.b16 %v574
        %v718 = vunpack.c.l.b16 %v575
        %v719 = vunpack.c.l.b16 %v576
        %v720 = vunpack.c.l.b16 %v577
        %v721 = vunpack.c.l.b16 %v578
        %v722 = vpack.c.b16 %v658, %v657
        %v723 = vpack.c.b16 %v660, %v659
        %v724 = vpack.c.b16 %v662, %v661
        %v725 = vpack.c.b16 %v664, %v663
        %v726 = vpack.c.b16 %v666, %v665
        %v727 = vpack.c.b16 %v668, %v667
        %v728 = vpack.c.b16 %v670, %v669
        %v729 = vpack.c.b16 %v672, %v671
        %v730 = vpack.c.b16 %v674, %v673
        %v731 = vpack.c.b16 %v676, %v675
        %v732 = vpack.c.b16 %v678, %v677
        %v733 = vpack.c.b16 %v680, %v679
        %v734 = vpack.c.b16 %v682, %v681
        %v735 = vpack.c.b16 %v684, %v683
        %v736 = vpack.c.b16 %v686, %v685
        %v737 = vpack.c.b16 %v688, %v687
        %v738 = vpack.c.b16 %v690, %v689
        %v739 = vpack.c.b16 %v692, %v691
        %v740 = vpack.c.b16 %v694, %v693
        %v741 = vpack.c.b16 %v696, %v695
        %v742 = vpack.c.b16 %v698, %v697
        %v743 = vpack.c.b16 %v700, %v699
        %v744 = vpack.c.b16 %v702, %v701
        %v745 = vpack.c.b16 %v704, %v703
        %v746 = vpack.c.b16 %v706, %v705
        %v747 = vpack.c.b16 %v708, %v707
        %v748 = vpack.c.b16 %v710, %v709
        %v749 = vpack.c.b16 %v712, %v711
        %v750 = vpack.c.b16 %v714, %v713
        %v751 = vpack.c.b16 %v716, %v715
        %v752 = vpack.c.b16 %v718, %v717
        %v753 = vpack.c.b16 %v720, %v719
        %v754 = vpack.c.b16 %v721, %v721
        %v755 = vpack.c.b16 %v659, %v658
        %v756 = vpack.c.b16 %v661, %v660
        %v757 = vpack.c.b16 %v663, %v662
        %v758 = vpack.c.b16 %v665, %v664
        %v759 = vpack.c.b16 %v667, %v666
        %v760 = vpack.c.b16 %v669, %v668
        %v761 = vpack.c.b16 %v671, %v670
        %v762 = vpack.c.b16 %v673, %v672
        %v763 = vpack.c.b16 %v675, %v674
        %v764 = vpack.c.b16 %v677, %v676
        %v765 = vpack.c.b16 %v679, %v678
        %v766 = vpack.c.b16 %v681, %v680
        %v767 = vpack.c.b16 %v683, %v682
        %v768 = vpack.c.b16 %v685, %v684
        %v769 = vpack.c.b16 %v687, %v686
        %v770 = vpack.c.b16 %v689, %v688
        %v771 = vpack.c.b16 %v691, %v690
        %v772 = vpack.c.b16 %v693, %v692
        %v773 = vpack.c.b16 %v695, %v694
        %v774 = vpack.c.b16 %v697, %v696
        %v775 = vpack.c.b16 %v699, %v698
        %v776 = vpack.c.b16 %v701, %v700
        %v777 = vpack.c.b16 %v703, %v702
        %v778 = vpack.c.b16 %v705, %v704
        %v779 = vpack.c.b16 %v707, %v706
        %v780 = vpack.c.b16 %v709, %v708
        %v781 = vpack.c.b16 %v711, %v710
        %v782 = vpack.c.b16 %v713, %v712
        %v783 = vpack.c.b16 %v715, %v714
        %v784 = vpack.c.b16 %v717, %v716
        %v785 = vpack.c.b16 %v719, %v718
        %v786 = vpack.c.b16 %v721, %v720
        %vm787 = vsmask.f32 3328
        %v789 = vshrl.u32 %v755, 16
        %v791 = vrot.slane %v789, 4
        %v792 = vshll.u32 %v755, 16
        %v794 = vrot.slane %v792, 5
        %v795 = vor.u32 %v791, %v794
        %v797 = vshrl.u32 %v756, 16
        %v799 = vrot.slane %v797, 4
        %v800 = vshll.u32 %v756, 16
        %v802 = vrot.slane %v800, 5
        %v803 = vor.u32 %v799, %v802
        %v804 = vsel %vm787, %v795, %v803
        %v806 = vshrl.u32 %v757, 16
        %v808 = vrot.slane %v806, 4
        %v809 = vshll.u32 %v757, 16
        %v811 = vrot.slane %v809, 5
        %v812 = vor.u32 %v808, %v811
        %v813 = vsel %vm787, %v803, %v812
        %v815 = vshrl.u32 %v758, 16
        %v817 = vrot.slane %v815, 4
        %v818 = vshll.u32 %v758, 16
        %v820 = vrot.slane %v818, 5
        %v821 = vor.u32 %v817, %v820
        %v822 = vsel %vm787, %v812, %v821
        %v824 = vshrl.u32 %v759, 16
        %v826 = vrot.slane %v824, 4
        %v827 = vshll.u32 %v759, 16
        %v829 = vrot.slane %v827, 5
        %v830 = vor.u32 %v826, %v829
        %v831 = vsel %vm787, %v821, %v830
        %v833 = vshrl.u32 %v760, 16
        %v835 = vrot.slane %v833, 4
        %v836 = vshll.u32 %v760, 16
        %v838 = vrot.slane %v836, 5
        %v839 = vor.u32 %v835, %v838
        %v840 = vsel %vm787, %v830, %v839
        %v842 = vshrl.u32 %v761, 16
        %v844 = vrot.slane %v842, 4
        %v845 = vshll.u32 %v761, 16
        %v847 = vrot.slane %v845, 5
        %v848 = vor.u32 %v844, %v847
        %v849 = vsel %vm787, %v839, %v848
        %v851 = vshrl.u32 %v762, 16
        %v853 = vrot.slane %v851, 4
        %v854 = vshll.u32 %v762, 16
        %v856 = vrot.slane %v854, 5
        %v857 = vor.u32 %v853, %v856
        %v858 = vsel %vm787, %v848, %v857
        %v860 = vshrl.u32 %v763, 16
        %v862 = vrot.slane %v860, 4
        %v863 = vshll.u32 %v763, 16
        %v865 = vrot.slane %v863, 5
        %v866 = vor.u32 %v862, %v865
        %v867 = vsel %vm787, %v857, %v866
        %v869 = vshrl.u32 %v764, 16
        %v871 = vrot.slane %v869, 4
        %v872 = vshll.u32 %v764, 16
        %v874 = vrot.slane %v872, 5
        %v875 = vor.u32 %v871, %v874
        %v876 = vsel %vm787, %v866, %v875
        %v878 = vshrl.u32 %v765, 16
        %v880 = vrot.slane %v878, 4
        %v881 = vshll.u32 %v765, 16
        %v883 = vrot.slane %v881, 5
        %v884 = vor.u32 %v880, %v883
        %v885 = vsel %vm787, %v875, %v884
        %v887 = vshrl.u32 %v766, 16
        %v889 = vrot.slane %v887, 4
        %v890 = vshll.u32 %v766, 16
        %v892 = vrot.slane %v890, 5
        %v893 = vor.u32 %v889, %v892
        %v894 = vsel %vm787, %v884, %v893
        %v896 = vshrl.u32 %v767, 16
        %v898 = vrot.slane %v896, 4
        %v899 = vshll.u32 %v767, 16
        %v901 = vrot.slane %v899, 5
        %v902 = vor.u32 %v898, %v901
        %v903 = vsel %vm787, %v893, %v902
        %v905 = vshrl.u32 %v768, 16
        %v907 = vrot.slane %v905, 4
        %v908 = vshll.u32 %v768, 16
        %v910 = vrot.slane %v908, 5
        %v911 = vor.u32 %v907, %v910
        %v912 = vsel %vm787, %v902, %v911
        %v914 = vshrl.u32 %v769, 16
        %v916 = vrot.slane %v914, 4
        %v917 = vshll.u32 %v769, 16
        %v919 = vrot.slane %v917, 5
        %v920 = vor.u32 %v916, %v919
        %v921 = vsel %vm787, %v911, %v920
        %v923 = vshrl.u32 %v770, 16
        %v925 = vrot.slane %v923, 4
        %v926 = vshll.u32 %v770, 16
        %v928 = vrot.slane %v926, 5
        %v929 = vor.u32 %v925, %v928
        %v930 = vsel %vm787, %v920, %v929
        %v932 = vshrl.u32 %v771, 16
        %v934 = vrot.slane %v932, 4
        %v935 = vshll.u32 %v771, 16
        %v937 = vrot.slane %v935, 5
        %v938 = vor.u32 %v934, %v937
        %v939 = vsel %vm787, %v929, %v938
        %v941 = vshrl.u32 %v772, 16
        %v943 = vrot.slane %v941, 4
        %v944 = vshll.u32 %v772, 16
        %v946 = vrot.slane %v944, 5
        %v947 = vor.u32 %v943, %v946
        %v948 = vsel %vm787, %v938, %v947
        %v950 = vshrl.u32 %v773, 16
        %v952 = vrot.slane %v950, 4
        %v953 = vshll.u32 %v773, 16
        %v955 = vrot.slane %v953, 5
        %v956 = vor.u32 %v952, %v955
        %v957 = vsel %vm787, %v947, %v956
        %v959 = vshrl.u32 %v774, 16
        %v961 = vrot.slane %v959, 4
        %v962 = vshll.u32 %v774, 16
        %v964 = vrot.slane %v962, 5
        %v965 = vor.u32 %v961, %v964
        %v966 = vsel %vm787, %v956, %v965
        %v968 = vshrl.u32 %v775, 16
        %v970 = vrot.slane %v968, 4
        %v971 = vshll.u32 %v775, 16
        %v973 = vrot.slane %v971, 5
        %v974 = vor.u32 %v970, %v973
        %v975 = vsel %vm787, %v965, %v974
        %v977 = vshrl.u32 %v776, 16
        %v979 = vrot.slane %v977, 4
        %v980 = vshll.u32 %v776, 16
        %v982 = vrot.slane %v980, 5
        %v983 = vor.u32 %v979, %v982
        %v984 = vsel %vm787, %v974, %v983
        %v986 = vshrl.u32 %v777, 16
        %v988 = vrot.slane %v986, 4
        %v989 = vshll.u32 %v777, 16
        %v991 = vrot.slane %v989, 5
        %v992 = vor.u32 %v988, %v991
        %v993 = vsel %vm787, %v983, %v992
        %v995 = vshrl.u32 %v778, 16
        %v997 = vrot.slane %v995, 4
        %v998 = vshll.u32 %v778, 16
        %v1000 = vrot.slane %v998, 5
        %v1001 = vor.u32 %v997, %v1000
        %v1002 = vsel %vm787, %v992, %v1001
        %v1004 = vshrl.u32 %v779, 16
        %v1006 = vrot.slane %v1004, 4
        %v1007 = vshll.u32 %v779, 16
        %v1009 = vrot.slane %v1007, 5
        %v1010 = vor.u32 %v1006, %v1009
        %v1011 = vsel %vm787, %v1001, %v1010
        %v1013 = vshrl.u32 %v780, 16
        %v1015 = vrot.slane %v1013, 4
        %v1016 = vshll.u32 %v780, 16
        %v1018 = vrot.slane %v1016, 5
        %v1019 = vor.u32 %v1015, %v1018
        %v1020 = vsel %vm787, %v1010, %v1019
        %v1022 = vshrl.u32 %v781, 16
        %v1024 = vrot.slane %v1022, 4
        %v1025 = vshll.u32 %v781, 16
        %v1027 = vrot.slane %v1025, 5
        %v1028 = vor.u32 %v1024, %v1027
        %v1029 = vsel %vm787, %v1019, %v1028
        %v1031 = vshrl.u32 %v782, 16
        %v1033 = vrot.slane %v1031, 4
        %v1034 = vshll.u32 %v782, 16
        %v1036 = vrot.slane %v1034, 5
        %v1037 = vor.u32 %v1033, %v1036
        %v1038 = vsel %vm787, %v1028, %v1037
        %v1040 = vshrl.u32 %v783, 16
        %v1042 = vrot.slane %v1040, 4
        %v1043 = vshll.u32 %v783, 16
        %v1045 = vrot.slane %v1043, 5
        %v1046 = vor.u32 %v1042, %v1045
        %v1047 = vsel %vm787, %v1037, %v1046
        %v1049 = vshrl.u32 %v784, 16
        %v1051 = vrot.slane %v1049, 4
        %v1052 = vshll.u32 %v784, 16
        %v1054 = vrot.slane %v1052, 5
        %v1055 = vor.u32 %v1051, %v1054
        %v1056 = vsel %vm787, %v1046, %v1055
        %v1058 = vshrl.u32 %v785, 16
        %v1060 = vrot.slane %v1058, 4
        %v1061 = vshll.u32 %v785, 16
        %v1063 = vrot.slane %v1061, 5
        %v1064 = vor.u32 %v1060, %v1063
        %v1065 = vsel %vm787, %v1055, %v1064
        %v1067 = vshrl.u32 %v786, 16
        %v1069 = vrot.slane %v1067, 4
        %v1070 = vshll.u32 %v786, 16
        %v1072 = vrot.slane %v1070, 5
        %v1073 = vor.u32 %v1069, %v1072
        %v1074 = vsel %vm787, %v1064, %v1073
        %v1076 = vunpack.c.l.b16 %v579
        %v1077 = vpack.c.b16 %v1076, %v1076
        %vm1078 = vcmask 1042432
        %v1079 = vrot.slane %v755, 5
        %v1080 = vrot.slane %v756, 5
        %v1081 = vsel %vm1078, %v1079, %v1080
        %v1082 = vrot.slane %v757, 5
        %v1083 = vsel %vm1078, %v1080, %v1082
        %v1084 = vrot.slane %v758, 5
        %v1085 = vsel %vm1078, %v1082, %v1084
        %v1086 = vrot.slane %v759, 5
        %v1087 = vsel %vm1078, %v1084, %v1086
        %v1088 = vrot.slane %v760, 5
        %v1089 = vsel %vm1078, %v1086, %v1088
        %v1090 = vrot.slane %v761, 5
        %v1091 = vsel %vm1078, %v1088, %v1090
        %v1092 = vrot.slane %v762, 5
        %v1093 = vsel %vm1078, %v1090, %v1092
        %v1094 = vrot.slane %v763, 5
        %v1095 = vsel %vm1078, %v1092, %v1094
        %v1096 = vrot.slane %v764, 5
        %v1097 = vsel %vm1078, %v1094, %v1096
        %v1098 = vrot.slane %v765, 5
        %v1099 = vsel %vm1078, %v1096, %v1098
        %v1100 = vrot.slane %v766, 5
        %v1101 = vsel %vm1078, %v1098, %v1100
        %v1102 = vrot.slane %v767, 5
        %v1103 = vsel %vm1078, %v1100, %v1102
        %v1104 = vrot.slane %v768, 5
        %v1105 = vsel %vm1078, %v1102, %v1104
        %v1106 = vrot.slane %v769, 5
        %v1107 = vsel %vm1078, %v1104, %v1106
        %v1108 = vrot.slane %v770, 5
        %v1109 = vsel %vm1078, %v1106, %v1108
        %v1110 = vrot.slane %v771, 5
        %v1111 = vsel %vm1078, %v1108, %v1110
        %v1112 = vrot.slane %v772, 5
        %v1113 = vsel %vm1078, %v1110, %v1112
        %v1114 = vrot.slane %v773, 5
        %v1115 = vsel %vm1078, %v1112, %v1114
        %v1116 = vrot.slane %v774, 5
        %v1117 = vsel %vm1078, %v1114, %v1116
        %v1118 = vrot.slane %v775, 5
        %v1119 = vsel %vm1078, %v1116, %v1118
        %v1120 = vrot.slane %v776, 5
        %v1121 = vsel %vm1078, %v1118, %v1120
        %v1122 = vrot.slane %v777, 5
        %v1123 = vsel %vm1078, %v1120, %v1122
        %v1124 = vrot.slane %v778, 5
        %v1125 = vsel %vm1078, %v1122, %v1124
        %v1126 = vrot.slane %v779, 5
        %v1127 = vsel %vm1078, %v1124, %v1126
        %v1128 = vrot.slane %v780, 5
        %v1129 = vsel %vm1078, %v1126, %v1128
        %v1130 = vrot.slane %v781, 5
        %v1131 = vsel %vm1078, %v1128, %v1130
        %v1132 = vrot.slane %v782, 5
        %v1133 = vsel %vm1078, %v1130, %v1132
        %v1134 = vrot.slane %v783, 5
        %v1135 = vsel %vm1078, %v1132, %v1134
        %v1136 = vrot.slane %v784, 5
        %v1137 = vsel %vm1078, %v1134, %v1136
        %v1138 = vrot.slane %v785, 5
        %v1139 = vsel %vm1078, %v1136, %v1138
        %v1140 = vrot.slane %v786, 5
        %v1141 = vsel %vm1078, %v1138, %v1140
        %v1142 = vrot.slane %v1077, 5
        %v1143 = vsel %vm1078, %v1140, %v1142
        %v1149 = vunpack.c.l.b16 %v580
        %v1150 = vunpack.c.l.b16 %v581
        %v1151 = vunpack.c.l.b16 %v582
        %v1152 = vunpack.c.l.b16 %v583
        %v1153 = vunpack.c.l.b16 %v584
        %v1154 = vpack.c.b16 %v662, %v1149
        %v1155 = vpack.c.b16 %v1150, %v721
        %v1156 = vpack.c.b16 %v1152, %v1151
        %v1157 = vpack.c.b16 %v1153, %v1153
        %v1158 = vpack.c.b16 %v1151, %v1150
        %v1159 = vpack.c.b16 %v1153, %v1152
        %v1161 = vshrl.u32 %v1158, 16
        %v1163 = vrot.slane %v1161, 4
        %v1164 = vshll.u32 %v1158, 16
        %v1166 = vrot.slane %v1164, 5
        %v1167 = vor.u32 %v1163, %v1166
        %v1168 = vsel %vm787, %v1073, %v1167
        %v1170 = vshrl.u32 %v1159, 16
        %v1172 = vrot.slane %v1170, 4
        %v1173 = vshll.u32 %v1159, 16
        %v1175 = vrot.slane %v1173, 5
        %v1176 = vor.u32 %v1172, %v1175
        %v1177 = vsel %vm787, %v1167, %v1176
        %v1179 = vunpack.c.l.b16 %v585
        %v1180 = vpack.c.b16 %v1179, %v1179
        %v1181 = vrot.slane %v1158, 5
        %v1182 = vsel %vm1078, %v1140, %v1181
        %v1183 = vrot.slane %v1159, 5
        %v1184 = vsel %vm1078, %v1181, %v1183
        %v1185 = vrot.slane %v1180, 5
        %v1186 = vsel %vm1078, %v1183, %v1185
        %v1192 = vunpack.c.l.b16 %v586
        %v1193 = vunpack.c.l.b16 %v587
        %v1194 = vunpack.c.l.b16 %v588
        %v1195 = vunpack.c.l.b16 %v589
        %v1196 = vunpack.c.l.b16 %v590
        %v1197 = vpack.c.b16 %v666, %v1192
        %v1198 = vpack.c.b16 %v1193, %v1153
        %v1199 = vpack.c.b16 %v1195, %v1194
        %v1200 = vpack.c.b16 %v1196, %v1196
        %v1201 = vpack.c.b16 %v1194, %v1193
        %v1202 = vpack.c.b16 %v1196, %v1195
        %v1204 = vshrl.u32 %v1201, 16
        %v1206 = vrot.slane %v1204, 4
        %v1207 = vshll.u32 %v1201, 16
        %v1209 = vrot.slane %v1207, 5
        %v1210 = vor.u32 %v1206, %v1209
        %v1211 = vsel %vm787, %v1176, %v1210
        %v1213 = vshrl.u32 %v1202, 16
        %v1215 = vrot.slane %v1213, 4
        %v1216 = vshll.u32 %v1202, 16
        %v1218 = vrot.slane %v1216, 5
        %v1219 = vor.u32 %v1215, %v1218
        %v1220 = vsel %vm787, %v1210, %v1219
        %v1222 = vunpack.c.l.b16 %v591
        %v1223 = vpack.c.b16 %v1222, %v1222
        %v1224 = vrot.slane %v1201, 5
        %v1225 = vsel %vm1078, %v1183, %v1224
        %v1226 = vrot.slane %v1202, 5
        %v1227 = vsel %vm1078, %v1224, %v1226
        %v1228 = vrot.slane %v1223, 5
        %v1229 = vsel %vm1078, %v1226, %v1228
        %v1230 = vld [vmem:[%s1] sm:$0xf]
        %v1231 = vld [vmem:[%s1 + $0x4] sm:$0xf]
        %v1232 = vld [vmem:[%s1 + $0x8] sm:$0xf]
        %v1233 = vld [vmem:[%s1 + $0xc] sm:$0xf]
        %v1234 = vld [vmem:[%s1 + $0x10] sm:$0xf]
        %v1235 = vld [vmem:[%s1 + $0x14] sm:$0xf]
        %v1236 = vld [vmem:[%s1 + $0x18] sm:$0xf]
        %v1237 = vld [vmem:[%s1 + $0x1c] sm:$0xf]
        %v1238 = vld [vmem:[%s1 + $0x20] sm:$0xf]
        %v1239 = vld [vmem:[%s1 + $0x24] sm:$0xf]
        %v1240 = vld [vmem:[%s1 + $0x28] sm:$0xf]
        %v1241 = vld [vmem:[%s1 + $0x2c] sm:$0xf]
        %v1242 = vld [vmem:[%s1 + $0x30] sm:$0xf]
        %v1243 = vld [vmem:[%s1 + $0x34] sm:$0xf]
        %v1244 = vld [vmem:[%s1 + $0x38] sm:$0xf]
        %v1245 = vld [vmem:[%s1 + $0x3c] sm:$0xf]
        %v1246 = vld [vmem:[%s1 + $0x40] sm:$0xf]
        %v1247 = vld [vmem:[%s1 + $0x44] sm:$0xf]
        %v1248 = vld [vmem:[%s1 + $0x48] sm:$0xf]
        %v1249 = vld [vmem:[%s1 + $0x4c] sm:$0xf]
        %v1250 = vld [vmem:[%s1 + $0x50] sm:$0xf]
        %v1251 = vld [vmem:[%s1 + $0x54] sm:$0xf]
        %v1252 = vld [vmem:[%s1 + $0x58] sm:$0xf]
        %v1253 = vld [vmem:[%s1 + $0x5c] sm:$0xf]
        %v1254 = vld [vmem:[%s1 + $0x60] sm:$0xf]
        %v1255 = vld [vmem:[%s1 + $0x64] sm:$0xf]
        %v1256 = vld [vmem:[%s1 + $0x68] sm:$0xf]
        %v1257 = vld [vmem:[%s1 + $0x6c] sm:$0xf]
        %v1258 = vld [vmem:[%s1 + $0x70] sm:$0xf]
        %v1259 = vld [vmem:[%s1 + $0x74] sm:$0xf]
        %v1260 = vld [vmem:[%s1 + $0x78] sm:$0xf]
        %v1261 = vld [vmem:[%s1 + $0x7c] sm:$0xf]
        %v1262 = vld [vmem:[%s1 + $0x80] sm:$0xf]
        %v1263 = vld [vmem:[%s1 + $0x84] sm:$0xf]
        %v1264 = vld [vmem:[%s1 + $0x88] sm:$0xf]
        %v1265 = vld [vmem:[%s1 + $0x8c] sm:$0xf]
        %v1266 = vld [vmem:[%s1 + $0x90] sm:$0xf]
        %v1267 = vld [vmem:[%s1 + $0x94] sm:$0xf]
        %v1268 = vld [vmem:[%s1 + $0x98] sm:$0xf]
        %v1269 = vld [vmem:[%s1 + $0x9c] sm:$0xf]
        %v1270 = vld [vmem:[%s1 + $0xa0] sm:$0xf]
        %v1271 = vld [vmem:[%s1 + $0xa4] sm:$0xf]
        %v1272 = vld [vmem:[%s1 + $0xa8] sm:$0xf]
        %v1273 = vld [vmem:[%s1 + $0xac] sm:$0xf]
        %v1274 = vld [vmem:[%s1 + $0xb0] sm:$0xf]
        %v1275 = vld [vmem:[%s1 + $0xb4] sm:$0xf]
        %v1276 = vld [vmem:[%s1 + $0xb8] sm:$0xf]
        %v1277 = vld [vmem:[%s1 + $0xbc] sm:$0xf]
        %v1278 = vld [vmem:[%s1 + $0xc0] sm:$0xf]
        %v1279 = vld [vmem:[%s1 + $0xc4] sm:$0xf]
        %v1280 = vld [vmem:[%s1 + $0xc8] sm:$0xf]
        %v1281 = vld [vmem:[%s1 + $0xcc] sm:$0xf]
        %v1282 = vld [vmem:[%s1 + $0xd0] sm:$0xf]
        %v1283 = vld [vmem:[%s1 + $0xd4] sm:$0xf]
        %v1284 = vld [vmem:[%s1 + $0xd8] sm:$0xf]
        %v1285 = vld [vmem:[%s1 + $0xdc] sm:$0xf]
        %v1286 = vld [vmem:[%s1 + $0xe0] sm:$0xf]
        %v1287 = vld [vmem:[%s1 + $0xe4] sm:$0xf]
        %v1288 = vld [vmem:[%s1 + $0xe8] sm:$0xf]
        %v1289 = vld [vmem:[%s1 + $0xec] sm:$0xf]
        %v1290 = vld [vmem:[%s1 + $0xf0] sm:$0xf]
        %v1291 = vld [vmem:[%s1 + $0xf4] sm:$0xf]
        %v1292 = vld [vmem:[%s1 + $0xf8] sm:$0xf]
        %v1293 = vld [vmem:[%s1 + $0xfc] sm:$0xf]
        %v1294 = vld [vmem:[%s1 + $0x100] sm:$0xf]
        %v1295 = vld [vmem:[%s1 + $0x104] sm:$0xf]
        %v1296 = vld [vmem:[%s1 + $0x108] sm:$0xf]
        %v1297 = vld [vmem:[%s1 + $0x10c] sm:$0xf]
        %v1298 = vld [vmem:[%s1 + $0x110] sm:$0xf]
        %v1299 = vld [vmem:[%s1 + $0x114] sm:$0xf]
        %v1300 = vld [vmem:[%s1 + $0x118] sm:$0xf]
        %v1301 = vld [vmem:[%s1 + $0x11c] sm:$0xf]
        %v1302 = vld [vmem:[%s1 + $0x120] sm:$0xf]
        %v1303 = vld [vmem:[%s1 + $0x124] sm:$0xf]
        %v1304 = vld [vmem:[%s1 + $0x128] sm:$0xf]
        %v1305 = vld [vmem:[%s1 + $0x12c] sm:$0xf]
        %v1306 = vld [vmem:[%s1 + $0x130] sm:$0xf]
        %v1307 = vld [vmem:[%s1 + $0x134] sm:$0xf]
        %v1308 = vld [vmem:[%s1 + $0x138] sm:$0xf]
        %v1309 = vld [vmem:[%s1 + $0x13c] sm:$0xf]
        %v1310 = vld [vmem:[%s1 + $0x140] sm:$0xf]
        %v1311 = vld [vmem:[%s1 + $0x144] sm:$0xf]
        %v1312 = vld [vmem:[%s1 + $0x148] sm:$0xf]
        %v1313 = vld [vmem:[%s1 + $0x14c] sm:$0xf]
        %v1314 = vld [vmem:[%s1 + $0x150] sm:$0xf]
        %v1315 = vld [vmem:[%s1 + $0x154] sm:$0xf]
        %v1316 = vld [vmem:[%s1 + $0x158] sm:$0xf]
        %v1317 = vld [vmem:[%s1 + $0x15c] sm:$0xf]
        %v1318 = vld [vmem:[%s1 + $0x160] sm:$0xf]
        %v1319 = vld [vmem:[%s1 + $0x164] sm:$0xf]
        %v1320 = vld [vmem:[%s1 + $0x168] sm:$0xf]
        %v1321 = vld [vmem:[%s1 + $0x16c] sm:$0xf]
        %v1322 = vld [vmem:[%s1 + $0x170] sm:$0xf]
        %v1323 = vld [vmem:[%s1 + $0x174] sm:$0xf]
        %v1324 = vld [vmem:[%s1 + $0x178] sm:$0xf]
        %v1325 = vld [vmem:[%s1 + $0x17c] sm:$0xf]
        %v1326 = vld [vmem:[%s1 + $0x180] sm:$0xf]
        %v1327 = vld [vmem:[%s1 + $0x184] sm:$0xf]
        %v1328 = vld [vmem:[%s1 + $0x188] sm:$0xf]
        %v1329 = vld [vmem:[%s1 + $0x18c] sm:$0xf]
        %v1330 = vld [vmem:[%s1 + $0x190] sm:$0xf]
        %v1331 = vld [vmem:[%s1 + $0x194] sm:$0xf]
        %v1332 = vld [vmem:[%s1 + $0x198] sm:$0xf]
        %v1333 = vld [vmem:[%s1 + $0x19c] sm:$0xf]
        %v1334 = vld [vmem:[%s1 + $0x1a0] sm:$0xf]
        %v1335 = vld [vmem:[%s1 + $0x1a4] sm:$0xf]
        %v1336 = vld [vmem:[%s1 + $0x1a8] sm:$0xf]
        %v1337 = vld [vmem:[%s1 + $0x1ac] sm:$0xf]
        %v1338 = vld [vmem:[%s1 + $0x1b0] sm:$0xf]
        %v1339 = vld [vmem:[%s1 + $0x1b4] sm:$0xf]
        %v1340 = vld [vmem:[%s1 + $0x1b8] sm:$0xf]
        %v1341 = vld [vmem:[%s1 + $0x1bc] sm:$0xf]
        %v1342 = vld [vmem:[%s1 + $0x1c0] sm:$0xf]
        %v1343 = vld [vmem:[%s1 + $0x1c4] sm:$0xf]
        %v1344 = vld [vmem:[%s1 + $0x1c8] sm:$0xf]
        %v1345 = vld [vmem:[%s1 + $0x1cc] sm:$0xf]
        %v1346 = vld [vmem:[%s1 + $0x1d0] sm:$0xf]
        %v1347 = vld [vmem:[%s1 + $0x1d4] sm:$0xf]
        %v1348 = vld [vmem:[%s1 + $0x1d8] sm:$0xf]
        %v1349 = vld [vmem:[%s1 + $0x1dc] sm:$0xf]
        %v1350 = vld [vmem:[%s1 + $0x1e0] sm:$0xf]
        %v1351 = vld [vmem:[%s1 + $0x1e4] sm:$0xf]
        %v1352 = vld [vmem:[%s1 + $0x1e8] sm:$0xf]
        %v1353 = vld [vmem:[%s1 + $0x1ec] sm:$0xf]
        %v1354 = vld [vmem:[%s1 + $0x1f0] sm:$0xf]
        %v1355 = vld [vmem:[%s1 + $0x1f4] sm:$0xf]
        %v1356 = vld [vmem:[%s1 + $0x1f8] sm:$0xf]
        %v1357 = vld [vmem:[%s1 + $0x1fc] sm:$0xf]
        %v1358 = vld [vmem:[%s1 + $0x200] sm:$0xf]
        %v1359 = vld [vmem:[%s1 + $0x204] sm:$0xf]
        %v1360 = vld [vmem:[%s1 + $0x208] sm:$0xf]
        %v1361 = vld [vmem:[%s1 + $0x20c] sm:$0xf]
        %v1362 = vld [vmem:[%s1 + $0x210] sm:$0xf]
        %v1363 = vld [vmem:[%s1 + $0x214] sm:$0xf]
        %v1364 = vld [vmem:[%s1 + $0x218] sm:$0xf]
        %v1365 = vld [vmem:[%s1 + $0x21c] sm:$0xf]
        %v1366 = vld [vmem:[%s1 + $0x220] sm:$0xf]
        %v1367 = vld [vmem:[%s1 + $0x224] sm:$0xf]
        %v1368 = vld [vmem:[%s1 + $0x228] sm:$0xf]
        %v1369 = vld [vmem:[%s1 + $0x22c] sm:$0xf]
        %v1370 = vld [vmem:[%s1 + $0x230] sm:$0xf]
        %v1371 = vld [vmem:[%s1 + $0x234] sm:$0xf]
        %v1372 = vld [vmem:[%s1 + $0x238] sm:$0xf]
        %v1373 = vld [vmem:[%s1 + $0x23c] sm:$0xf]
        %vm1374 = vsmask.f32 4352
        %v1376 = vshrl.u32 %v722, 16
        %v1378 = vrot.slane %v1376, 3
        %v1379 = vshll.u32 %v722, 16
        %v1381 = vrot.slane %v1379, 4
        %v1382 = vor.u32 %v1378, %v1381
        %v1384 = vshrl.u32 %v723, 16
        %v1386 = vrot.slane %v1384, 3
        %v1387 = vshll.u32 %v723, 16
        %v1389 = vrot.slane %v1387, 4
        %v1390 = vor.u32 %v1386, %v1389
        %v1391 = vsel %vm1374, %v1382, %v1390
        %v1393 = vshrl.u32 %v795, 16
        %v1395 = vrot.slane %v1393, 3
        %v1396 = vshll.u32 %v795, 16
        %v1398 = vrot.slane %v1396, 4
        %v1399 = vor.u32 %v1395, %v1398
        %v1401 = vshrl.u32 %v804, 16
        %v1403 = vrot.slane %v1401, 3
        %v1404 = vshll.u32 %v804, 16
        %v1406 = vrot.slane %v1404, 4
        %v1407 = vor.u32 %v1403, %v1406
        %v1408 = vsel %vm1374, %v1399, %v1407
        %v1410 = vshrl.u32 %v1079, 16
        %v1412 = vrot.slane %v1410, 3
        %v1413 = vshll.u32 %v1079, 16
        %v1415 = vrot.slane %v1413, 4
        %v1416 = vor.u32 %v1412, %v1415
        %v1418 = vshrl.u32 %v1081, 16
        %v1420 = vrot.slane %v1418, 3
        %v1421 = vshll.u32 %v1081, 16
        %v1423 = vrot.slane %v1421, 4
        %v1424 = vor.u32 %v1420, %v1423
        %v1425 = vsel %vm1374, %v1416, %v1424
        %v1427 = vshrl.u32 %v1154, 16
        %v1429 = vrot.slane %v1427, 3
        %v1430 = vshll.u32 %v1154, 16
        %v1432 = vrot.slane %v1430, 4
        %v1433 = vor.u32 %v1429, %v1432
        %v1435 = vshrl.u32 %v725, 16
        %v1437 = vrot.slane %v1435, 3
        %v1438 = vshll.u32 %v725, 16
        %v1440 = vrot.slane %v1438, 4
        %v1441 = vor.u32 %v1437, %v1440
        %v1442 = vsel %vm1374, %v1433, %v1441
        %v1444 = vshrl.u32 %v812, 16
        %v1446 = vrot.slane %v1444, 3
        %v1447 = vshll.u32 %v812, 16
        %v1449 = vrot.slane %v1447, 4
        %v1450 = vor.u32 %v1446, %v1449
        %v1452 = vshrl.u32 %v822, 16
        %v1454 = vrot.slane %v1452, 3
        %v1455 = vshll.u32 %v822, 16
        %v1457 = vrot.slane %v1455, 4
        %v1458 = vor.u32 %v1454, %v1457
        %v1459 = vsel %vm1374, %v1450, %v1458
        %v1461 = vshrl.u32 %v1082, 16
        %v1463 = vrot.slane %v1461, 3
        %v1464 = vshll.u32 %v1082, 16
        %v1466 = vrot.slane %v1464, 4
        %v1467 = vor.u32 %v1463, %v1466
        %v1469 = vshrl.u32 %v1085, 16
        %v1471 = vrot.slane %v1469, 3
        %v1472 = vshll.u32 %v1085, 16
        %v1474 = vrot.slane %v1472, 4
        %v1475 = vor.u32 %v1471, %v1474
        %v1476 = vsel %vm1374, %v1467, %v1475
        %v1478 = vshrl.u32 %v1197, 16
        %v1480 = vrot.slane %v1478, 3
        %v1481 = vshll.u32 %v1197, 16
        %v1483 = vrot.slane %v1481, 4
        %v1484 = vor.u32 %v1480, %v1483
        %v1486 = vshrl.u32 %v727, 16
        %v1488 = vrot.slane %v1486, 3
        %v1489 = vshll.u32 %v727, 16
        %v1491 = vrot.slane %v1489, 4
        %v1492 = vor.u32 %v1488, %v1491
        %v1493 = vsel %vm1374, %v1484, %v1492
        %v1495 = vshrl.u32 %v830, 16
        %v1497 = vrot.slane %v1495, 3
        %v1498 = vshll.u32 %v830, 16
        %v1500 = vrot.slane %v1498, 4
        %v1501 = vor.u32 %v1497, %v1500
        %v1503 = vshrl.u32 %v840, 16
        %v1505 = vrot.slane %v1503, 3
        %v1506 = vshll.u32 %v840, 16
        %v1508 = vrot.slane %v1506, 4
        %v1509 = vor.u32 %v1505, %v1508
        %v1510 = vsel %vm1374, %v1501, %v1509
        %v1512 = vshrl.u32 %v1086, 16
        %v1514 = vrot.slane %v1512, 3
        %v1515 = vshll.u32 %v1086, 16
        %v1517 = vrot.slane %v1515, 4
        %v1518 = vor.u32 %v1514, %v1517
        %v1520 = vshrl.u32 %v1089, 16
        %v1522 = vrot.slane %v1520, 3
        %v1523 = vshll.u32 %v1089, 16
        %v1525 = vrot.slane %v1523, 4
        %v1526 = vor.u32 %v1522, %v1525
        %v1527 = vsel %vm1374, %v1518, %v1526
        %v1529 = vshrl.u32 %v724, 16
        %v1531 = vrot.slane %v1529, 3
        %v1532 = vshll.u32 %v724, 16
        %v1534 = vrot.slane %v1532, 4
        %v1535 = vor.u32 %v1531, %v1534
        %v1536 = vsel %vm1374, %v1390, %v1535
        %v1538 = vshrl.u32 %v813, 16
        %v1540 = vrot.slane %v1538, 3
        %v1541 = vshll.u32 %v813, 16
        %v1543 = vrot.slane %v1541, 4
        %v1544 = vor.u32 %v1540, %v1543
        %v1545 = vsel %vm1374, %v1407, %v1544
        %v1547 = vshrl.u32 %v1083, 16
        %v1549 = vrot.slane %v1547, 3
        %v1550 = vshll.u32 %v1083, 16
        %v1552 = vrot.slane %v1550, 4
        %v1553 = vor.u32 %v1549, %v1552
        %v1554 = vsel %vm1374, %v1424, %v1553
        %v1556 = vshrl.u32 %v726, 16
        %v1558 = vrot.slane %v1556, 3
        %v1559 = vshll.u32 %v726, 16
        %v1561 = vrot.slane %v1559, 4
        %v1562 = vor.u32 %v1558, %v1561
        %v1563 = vsel %vm1374, %v1441, %v1562
        %v1565 = vshrl.u32 %v831, 16
        %v1567 = vrot.slane %v1565, 3
        %v1568 = vshll.u32 %v831, 16
        %v1570 = vrot.slane %v1568, 4
        %v1571 = vor.u32 %v1567, %v1570
        %v1572 = vsel %vm1374, %v1458, %v1571
        %v1574 = vshrl.u32 %v1087, 16
        %v1576 = vrot.slane %v1574, 3
        %v1577 = vshll.u32 %v1087, 16
        %v1579 = vrot.slane %v1577, 4
        %v1580 = vor.u32 %v1576, %v1579
        %v1581 = vsel %vm1374, %v1475, %v1580
        %v1583 = vshrl.u32 %v728, 16
        %v1585 = vrot.slane %v1583, 3
        %v1586 = vshll.u32 %v728, 16
        %v1588 = vrot.slane %v1586, 4
        %v1589 = vor.u32 %v1585, %v1588
        %v1590 = vsel %vm1374, %v1492, %v1589
        %v1592 = vshrl.u32 %v849, 16
        %v1594 = vrot.slane %v1592, 3
        %v1595 = vshll.u32 %v849, 16
        %v1597 = vrot.slane %v1595, 4
        %v1598 = vor.u32 %v1594, %v1597
        %v1599 = vsel %vm1374, %v1509, %v1598
        %v1601 = vshrl.u32 %v1091, 16
        %v1603 = vrot.slane %v1601, 3
        %v1604 = vshll.u32 %v1091, 16
        %v1606 = vrot.slane %v1604, 4
        %v1607 = vor.u32 %v1603, %v1606
        %v1608 = vsel %vm1374, %v1526, %v1607
        %v1609 = vsel %vm1374, %v1535, %v1441
        %v1610 = vsel %vm1374, %v1544, %v1458
        %v1611 = vsel %vm1374, %v1553, %v1475
        %v1612 = vsel %vm1374, %v1562, %v1492
        %v1613 = vsel %vm1374, %v1571, %v1509
        %v1614 = vsel %vm1374, %v1580, %v1526
        %v1616 = vshrl.u32 %v729, 16
        %v1618 = vrot.slane %v1616, 3
        %v1619 = vshll.u32 %v729, 16
        %v1621 = vrot.slane %v1619, 4
        %v1622 = vor.u32 %v1618, %v1621
        %v1623 = vsel %vm1374, %v1589, %v1622
        %v1625 = vshrl.u32 %v858, 16
        %v1627 = vrot.slane %v1625, 3
        %v1628 = vshll.u32 %v858, 16
        %v1630 = vrot.slane %v1628, 4
        %v1631 = vor.u32 %v1627, %v1630
        %v1632 = vsel %vm1374, %v1598, %v1631
        %v1634 = vshrl.u32 %v1093, 16
        %v1636 = vrot.slane %v1634, 3
        %v1637 = vshll.u32 %v1093, 16
        %v1639 = vrot.slane %v1637, 4
        %v1640 = vor.u32 %v1636, %v1639
        %v1641 = vsel %vm1374, %v1607, %v1640
        %v1643 = vshrl.u32 %v730, 16
        %v1645 = vrot.slane %v1643, 3
        %v1646 = vshll.u32 %v730, 16
        %v1648 = vrot.slane %v1646, 4
        %v1649 = vor.u32 %v1645, %v1648
        %v1650 = vsel %vm1374, %v1622, %v1649
        %v1652 = vshrl.u32 %v867, 16
        %v1654 = vrot.slane %v1652, 3
        %v1655 = vshll.u32 %v867, 16
        %v1657 = vrot.slane %v1655, 4
        %v1658 = vor.u32 %v1654, %v1657
        %v1659 = vsel %vm1374, %v1631, %v1658
        %v1661 = vshrl.u32 %v1095, 16
        %v1663 = vrot.slane %v1661, 3
        %v1664 = vshll.u32 %v1095, 16
        %v1666 = vrot.slane %v1664, 4
        %v1667 = vor.u32 %v1663, %v1666
        %v1668 = vsel %vm1374, %v1640, %v1667
        %v1670 = vshrl.u32 %v731, 16
        %v1672 = vrot.slane %v1670, 3
        %v1673 = vshll.u32 %v731, 16
        %v1675 = vrot.slane %v1673, 4
        %v1676 = vor.u32 %v1672, %v1675
        %v1677 = vsel %vm1374, %v1649, %v1676
        %v1679 = vshrl.u32 %v876, 16
        %v1681 = vrot.slane %v1679, 3
        %v1682 = vshll.u32 %v876, 16
        %v1684 = vrot.slane %v1682, 4
        %v1685 = vor.u32 %v1681, %v1684
        %v1686 = vsel %vm1374, %v1658, %v1685
        %v1688 = vshrl.u32 %v1097, 16
        %v1690 = vrot.slane %v1688, 3
        %v1691 = vshll.u32 %v1097, 16
        %v1693 = vrot.slane %v1691, 4
        %v1694 = vor.u32 %v1690, %v1693
        %v1695 = vsel %vm1374, %v1667, %v1694
        %v1697 = vshrl.u32 %v732, 16
        %v1699 = vrot.slane %v1697, 3
        %v1700 = vshll.u32 %v732, 16
        %v1702 = vrot.slane %v1700, 4
        %v1703 = vor.u32 %v1699, %v1702
        %v1704 = vsel %vm1374, %v1676, %v1703
        %v1706 = vshrl.u32 %v885, 16
        %v1708 = vrot.slane %v1706, 3
        %v1709 = vshll.u32 %v885, 16
        %v1711 = vrot.slane %v1709, 4
        %v1712 = vor.u32 %v1708, %v1711
        %v1713 = vsel %vm1374, %v1685, %v1712
        %v1715 = vshrl.u32 %v1099, 16
        %v1717 = vrot.slane %v1715, 3
        %v1718 = vshll.u32 %v1099, 16
        %v1720 = vrot.slane %v1718, 4
        %v1721 = vor.u32 %v1717, %v1720
        %v1722 = vsel %vm1374, %v1694, %v1721
        %v1724 = vshrl.u32 %v733, 16
        %v1726 = vrot.slane %v1724, 3
        %v1727 = vshll.u32 %v733, 16
        %v1729 = vrot.slane %v1727, 4
        %v1730 = vor.u32 %v1726, %v1729
        %v1731 = vsel %vm1374, %v1703, %v1730
        %v1733 = vshrl.u32 %v894, 16
        %v1735 = vrot.slane %v1733, 3
        %v1736 = vshll.u32 %v894, 16
        %v1738 = vrot.slane %v1736, 4
        %v1739 = vor.u32 %v1735, %v1738
        %v1740 = vsel %vm1374, %v1712, %v1739
        %v1742 = vshrl.u32 %v1101, 16
        %v1744 = vrot.slane %v1742, 3
        %v1745 = vshll.u32 %v1101, 16
        %v1747 = vrot.slane %v1745, 4
        %v1748 = vor.u32 %v1744, %v1747
        %v1749 = vsel %vm1374, %v1721, %v1748
        %v1751 = vshrl.u32 %v734, 16
        %v1753 = vrot.slane %v1751, 3
        %v1754 = vshll.u32 %v734, 16
        %v1756 = vrot.slane %v1754, 4
        %v1757 = vor.u32 %v1753, %v1756
        %v1758 = vsel %vm1374, %v1730, %v1757
        %v1760 = vshrl.u32 %v903, 16
        %v1762 = vrot.slane %v1760, 3
        %v1763 = vshll.u32 %v903, 16
        %v1765 = vrot.slane %v1763, 4
        %v1766 = vor.u32 %v1762, %v1765
        %v1767 = vsel %vm1374, %v1739, %v1766
        %v1769 = vshrl.u32 %v1103, 16
        %v1771 = vrot.slane %v1769, 3
        %v1772 = vshll.u32 %v1103, 16
        %v1774 = vrot.slane %v1772, 4
        %v1775 = vor.u32 %v1771, %v1774
        %v1776 = vsel %vm1374, %v1748, %v1775
        %v1778 = vshrl.u32 %v735, 16
        %v1780 = vrot.slane %v1778, 3
        %v1781 = vshll.u32 %v735, 16
        %v1783 = vrot.slane %v1781, 4
        %v1784 = vor.u32 %v1780, %v1783
        %v1785 = vsel %vm1374, %v1757, %v1784
        %v1787 = vshrl.u32 %v912, 16
        %v1789 = vrot.slane %v1787, 3
        %v1790 = vshll.u32 %v912, 16
        %v1792 = vrot.slane %v1790, 4
        %v1793 = vor.u32 %v1789, %v1792
        %v1794 = vsel %vm1374, %v1766, %v1793
        %v1796 = vshrl.u32 %v1105, 16
        %v1798 = vrot.slane %v1796, 3
        %v1799 = vshll.u32 %v1105, 16
        %v1801 = vrot.slane %v1799, 4
        %v1802 = vor.u32 %v1798, %v1801
        %v1803 = vsel %vm1374, %v1775, %v1802
        %v1805 = vshrl.u32 %v736, 16
        %v1807 = vrot.slane %v1805, 3
        %v1808 = vshll.u32 %v736, 16
        %v1810 = vrot.slane %v1808, 4
        %v1811 = vor.u32 %v1807, %v1810
        %v1812 = vsel %vm1374, %v1784, %v1811
        %v1814 = vshrl.u32 %v921, 16
        %v1816 = vrot.slane %v1814, 3
        %v1817 = vshll.u32 %v921, 16
        %v1819 = vrot.slane %v1817, 4
        %v1820 = vor.u32 %v1816, %v1819
        %v1821 = vsel %vm1374, %v1793, %v1820
        %v1823 = vshrl.u32 %v1107, 16
        %v1825 = vrot.slane %v1823, 3
        %v1826 = vshll.u32 %v1107, 16
        %v1828 = vrot.slane %v1826, 4
        %v1829 = vor.u32 %v1825, %v1828
        %v1830 = vsel %vm1374, %v1802, %v1829
        %v1832 = vshrl.u32 %v737, 16
        %v1834 = vrot.slane %v1832, 3
        %v1835 = vshll.u32 %v737, 16
        %v1837 = vrot.slane %v1835, 4
        %v1838 = vor.u32 %v1834, %v1837
        %v1839 = vsel %vm1374, %v1811, %v1838
        %v1841 = vshrl.u32 %v930, 16
        %v1843 = vrot.slane %v1841, 3
        %v1844 = vshll.u32 %v930, 16
        %v1846 = vrot.slane %v1844, 4
        %v1847 = vor.u32 %v1843, %v1846
        %v1848 = vsel %vm1374, %v1820, %v1847
        %v1850 = vshrl.u32 %v1109, 16
        %v1852 = vrot.slane %v1850, 3
        %v1853 = vshll.u32 %v1109, 16
        %v1855 = vrot.slane %v1853, 4
        %v1856 = vor.u32 %v1852, %v1855
        %v1857 = vsel %vm1374, %v1829, %v1856
        %v1859 = vshrl.u32 %v738, 16
        %v1861 = vrot.slane %v1859, 3
        %v1862 = vshll.u32 %v738, 16
        %v1864 = vrot.slane %v1862, 4
        %v1865 = vor.u32 %v1861, %v1864
        %v1866 = vsel %vm1374, %v1838, %v1865
        %v1868 = vshrl.u32 %v939, 16
        %v1870 = vrot.slane %v1868, 3
        %v1871 = vshll.u32 %v939, 16
        %v1873 = vrot.slane %v1871, 4
        %v1874 = vor.u32 %v1870, %v1873
        %v1875 = vsel %vm1374, %v1847, %v1874
        %v1877 = vshrl.u32 %v1111, 16
        %v1879 = vrot.slane %v1877, 3
        %v1880 = vshll.u32 %v1111, 16
        %v1882 = vrot.slane %v1880, 4
        %v1883 = vor.u32 %v1879, %v1882
        %v1884 = vsel %vm1374, %v1856, %v1883
        %v1886 = vshrl.u32 %v739, 16
        %v1888 = vrot.slane %v1886, 3
        %v1889 = vshll.u32 %v739, 16
        %v1891 = vrot.slane %v1889, 4
        %v1892 = vor.u32 %v1888, %v1891
        %v1893 = vsel %vm1374, %v1865, %v1892
        %v1895 = vshrl.u32 %v948, 16
        %v1897 = vrot.slane %v1895, 3
        %v1898 = vshll.u32 %v948, 16
        %v1900 = vrot.slane %v1898, 4
        %v1901 = vor.u32 %v1897, %v1900
        %v1902 = vsel %vm1374, %v1874, %v1901
        %v1904 = vshrl.u32 %v1113, 16
        %v1906 = vrot.slane %v1904, 3
        %v1907 = vshll.u32 %v1113, 16
        %v1909 = vrot.slane %v1907, 4
        %v1910 = vor.u32 %v1906, %v1909
        %v1911 = vsel %vm1374, %v1883, %v1910
        %v1913 = vshrl.u32 %v740, 16
        %v1915 = vrot.slane %v1913, 3
        %v1916 = vshll.u32 %v740, 16
        %v1918 = vrot.slane %v1916, 4
        %v1919 = vor.u32 %v1915, %v1918
        %v1920 = vsel %vm1374, %v1892, %v1919
        %v1922 = vshrl.u32 %v957, 16
        %v1924 = vrot.slane %v1922, 3
        %v1925 = vshll.u32 %v957, 16
        %v1927 = vrot.slane %v1925, 4
        %v1928 = vor.u32 %v1924, %v1927
        %v1929 = vsel %vm1374, %v1901, %v1928
        %v1931 = vshrl.u32 %v1115, 16
        %v1933 = vrot.slane %v1931, 3
        %v1934 = vshll.u32 %v1115, 16
        %v1936 = vrot.slane %v1934, 4
        %v1937 = vor.u32 %v1933, %v1936
        %v1938 = vsel %vm1374, %v1910, %v1937
        %v1940 = vshrl.u32 %v741, 16
        %v1942 = vrot.slane %v1940, 3
        %v1943 = vshll.u32 %v741, 16
        %v1945 = vrot.slane %v1943, 4
        %v1946 = vor.u32 %v1942, %v1945
        %v1947 = vsel %vm1374, %v1919, %v1946
        %v1949 = vshrl.u32 %v966, 16
        %v1951 = vrot.slane %v1949, 3
        %v1952 = vshll.u32 %v966, 16
        %v1954 = vrot.slane %v1952, 4
        %v1955 = vor.u32 %v1951, %v1954
        %v1956 = vsel %vm1374, %v1928, %v1955
        %v1958 = vshrl.u32 %v1117, 16
        %v1960 = vrot.slane %v1958, 3
        %v1961 = vshll.u32 %v1117, 16
        %v1963 = vrot.slane %v1961, 4
        %v1964 = vor.u32 %v1960, %v1963
        %v1965 = vsel %vm1374, %v1937, %v1964
        %v1967 = vshrl.u32 %v742, 16
        %v1969 = vrot.slane %v1967, 3
        %v1970 = vshll.u32 %v742, 16
        %v1972 = vrot.slane %v1970, 4
        %v1973 = vor.u32 %v1969, %v1972
        %v1974 = vsel %vm1374, %v1946, %v1973
        %v1976 = vshrl.u32 %v975, 16
        %v1978 = vrot.slane %v1976, 3
        %v1979 = vshll.u32 %v975, 16
        %v1981 = vrot.slane %v1979, 4
        %v1982 = vor.u32 %v1978, %v1981
        %v1983 = vsel %vm1374, %v1955, %v1982
        %v1985 = vshrl.u32 %v1119, 16
        %v1987 = vrot.slane %v1985, 3
        %v1988 = vshll.u32 %v1119, 16
        %v1990 = vrot.slane %v1988, 4
        %v1991 = vor.u32 %v1987, %v1990
        %v1992 = vsel %vm1374, %v1964, %v1991
        %v1994 = vshrl.u32 %v743, 16
        %v1996 = vrot.slane %v1994, 3
        %v1997 = vshll.u32 %v743, 16
        %v1999 = vrot.slane %v1997, 4
        %v2000 = vor.u32 %v1996, %v1999
        %v2001 = vsel %vm1374, %v1973, %v2000
        %v2003 = vshrl.u32 %v984, 16
        %v2005 = vrot.slane %v2003, 3
        %v2006 = vshll.u32 %v984, 16
        %v2008 = vrot.slane %v2006, 4
        %v2009 = vor.u32 %v2005, %v2008
        %v2010 = vsel %vm1374, %v1982, %v2009
        %v2012 = vshrl.u32 %v1121, 16
        %v2014 = vrot.slane %v2012, 3
        %v2015 = vshll.u32 %v1121, 16
        %v2017 = vrot.slane %v2015, 4
        %v2018 = vor.u32 %v2014, %v2017
        %v2019 = vsel %vm1374, %v1991, %v2018
        %v2021 = vshrl.u32 %v744, 16
        %v2023 = vrot.slane %v2021, 3
        %v2024 = vshll.u32 %v744, 16
        %v2026 = vrot.slane %v2024, 4
        %v2027 = vor.u32 %v2023, %v2026
        %v2028 = vsel %vm1374, %v2000, %v2027
        %v2030 = vshrl.u32 %v993, 16
        %v2032 = vrot.slane %v2030, 3
        %v2033 = vshll.u32 %v993, 16
        %v2035 = vrot.slane %v2033, 4
        %v2036 = vor.u32 %v2032, %v2035
        %v2037 = vsel %vm1374, %v2009, %v2036
        %v2039 = vshrl.u32 %v1123, 16
        %v2041 = vrot.slane %v2039, 3
        %v2042 = vshll.u32 %v1123, 16
        %v2044 = vrot.slane %v2042, 4
        %v2045 = vor.u32 %v2041, %v2044
        %v2046 = vsel %vm1374, %v2018, %v2045
        %v2048 = vshrl.u32 %v745, 16
        %v2050 = vrot.slane %v2048, 3
        %v2051 = vshll.u32 %v745, 16
        %v2053 = vrot.slane %v2051, 4
        %v2054 = vor.u32 %v2050, %v2053
        %v2055 = vsel %vm1374, %v2027, %v2054
        %v2057 = vshrl.u32 %v1002, 16
        %v2059 = vrot.slane %v2057, 3
        %v2060 = vshll.u32 %v1002, 16
        %v2062 = vrot.slane %v2060, 4
        %v2063 = vor.u32 %v2059, %v2062
        %v2064 = vsel %vm1374, %v2036, %v2063
        %v2066 = vshrl.u32 %v1125, 16
        %v2068 = vrot.slane %v2066, 3
        %v2069 = vshll.u32 %v1125, 16
        %v2071 = vrot.slane %v2069, 4
        %v2072 = vor.u32 %v2068, %v2071
        %v2073 = vsel %vm1374, %v2045, %v2072
        %v2075 = vshrl.u32 %v746, 16
        %v2077 = vrot.slane %v2075, 3
        %v2078 = vshll.u32 %v746, 16
        %v2080 = vrot.slane %v2078, 4
        %v2081 = vor.u32 %v2077, %v2080
        %v2082 = vsel %vm1374, %v2054, %v2081
        %v2084 = vshrl.u32 %v1011, 16
        %v2086 = vrot.slane %v2084, 3
        %v2087 = vshll.u32 %v1011, 16
        %v2089 = vrot.slane %v2087, 4
        %v2090 = vor.u32 %v2086, %v2089
        %v2091 = vsel %vm1374, %v2063, %v2090
        %v2093 = vshrl.u32 %v1127, 16
        %v2095 = vrot.slane %v2093, 3
        %v2096 = vshll.u32 %v1127, 16
        %v2098 = vrot.slane %v2096, 4
        %v2099 = vor.u32 %v2095, %v2098
        %v2100 = vsel %vm1374, %v2072, %v2099
        %v2102 = vshrl.u32 %v747, 16
        %v2104 = vrot.slane %v2102, 3
        %v2105 = vshll.u32 %v747, 16
        %v2107 = vrot.slane %v2105, 4
        %v2108 = vor.u32 %v2104, %v2107
        %v2109 = vsel %vm1374, %v2081, %v2108
        %v2111 = vshrl.u32 %v1020, 16
        %v2113 = vrot.slane %v2111, 3
        %v2114 = vshll.u32 %v1020, 16
        %v2116 = vrot.slane %v2114, 4
        %v2117 = vor.u32 %v2113, %v2116
        %v2118 = vsel %vm1374, %v2090, %v2117
        %v2120 = vshrl.u32 %v1129, 16
        %v2122 = vrot.slane %v2120, 3
        %v2123 = vshll.u32 %v1129, 16
        %v2125 = vrot.slane %v2123, 4
        %v2126 = vor.u32 %v2122, %v2125
        %v2127 = vsel %vm1374, %v2099, %v2126
        %v2129 = vshrl.u32 %v748, 16
        %v2131 = vrot.slane %v2129, 3
        %v2132 = vshll.u32 %v748, 16
        %v2134 = vrot.slane %v2132, 4
        %v2135 = vor.u32 %v2131, %v2134
        %v2136 = vsel %vm1374, %v2108, %v2135
        %v2138 = vshrl.u32 %v1029, 16
        %v2140 = vrot.slane %v2138, 3
        %v2141 = vshll.u32 %v1029, 16
        %v2143 = vrot.slane %v2141, 4
        %v2144 = vor.u32 %v2140, %v2143
        %v2145 = vsel %vm1374, %v2117, %v2144
        %v2147 = vshrl.u32 %v1131, 16
        %v2149 = vrot.slane %v2147, 3
        %v2150 = vshll.u32 %v1131, 16
        %v2152 = vrot.slane %v2150, 4
        %v2153 = vor.u32 %v2149, %v2152
        %v2154 = vsel %vm1374, %v2126, %v2153
        %v2156 = vshrl.u32 %v749, 16
        %v2158 = vrot.slane %v2156, 3
        %v2159 = vshll.u32 %v749, 16
        %v2161 = vrot.slane %v2159, 4
        %v2162 = vor.u32 %v2158, %v2161
        %v2163 = vsel %vm1374, %v2135, %v2162
        %v2165 = vshrl.u32 %v1038, 16
        %v2167 = vrot.slane %v2165, 3
        %v2168 = vshll.u32 %v1038, 16
        %v2170 = vrot.slane %v2168, 4
        %v2171 = vor.u32 %v2167, %v2170
        %v2172 = vsel %vm1374, %v2144, %v2171
        %v2174 = vshrl.u32 %v1133, 16
        %v2176 = vrot.slane %v2174, 3
        %v2177 = vshll.u32 %v1133, 16
        %v2179 = vrot.slane %v2177, 4
        %v2180 = vor.u32 %v2176, %v2179
        %v2181 = vsel %vm1374, %v2153, %v2180
        %v2183 = vshrl.u32 %v750, 16
        %v2185 = vrot.slane %v2183, 3
        %v2186 = vshll.u32 %v750, 16
        %v2188 = vrot.slane %v2186, 4
        %v2189 = vor.u32 %v2185, %v2188
        %v2190 = vsel %vm1374, %v2162, %v2189
        %v2192 = vshrl.u32 %v1047, 16
        %v2194 = vrot.slane %v2192, 3
        %v2195 = vshll.u32 %v1047, 16
        %v2197 = vrot.slane %v2195, 4
        %v2198 = vor.u32 %v2194, %v2197
        %v2199 = vsel %vm1374, %v2171, %v2198
        %v2201 = vshrl.u32 %v1135, 16
        %v2203 = vrot.slane %v2201, 3
        %v2204 = vshll.u32 %v1135, 16
        %v2206 = vrot.slane %v2204, 4
        %v2207 = vor.u32 %v2203, %v2206
        %v2208 = vsel %vm1374, %v2180, %v2207
        %v2210 = vshrl.u32 %v751, 16
        %v2212 = vrot.slane %v2210, 3
        %v2213 = vshll.u32 %v751, 16
        %v2215 = vrot.slane %v2213, 4
        %v2216 = vor.u32 %v2212, %v2215
        %v2217 = vsel %vm1374, %v2189, %v2216
        %v2219 = vshrl.u32 %v1056, 16
        %v2221 = vrot.slane %v2219, 3
        %v2222 = vshll.u32 %v1056, 16
        %v2224 = vrot.slane %v2222, 4
        %v2225 = vor.u32 %v2221, %v2224
        %v2226 = vsel %vm1374, %v2198, %v2225
        %v2228 = vshrl.u32 %v1137, 16
        %v2230 = vrot.slane %v2228, 3
        %v2231 = vshll.u32 %v1137, 16
        %v2233 = vrot.slane %v2231, 4
        %v2234 = vor.u32 %v2230, %v2233
        %v2235 = vsel %vm1374, %v2207, %v2234
        %v2237 = vshrl.u32 %v752, 16
        %v2239 = vrot.slane %v2237, 3
        %v2240 = vshll.u32 %v752, 16
        %v2242 = vrot.slane %v2240, 4
        %v2243 = vor.u32 %v2239, %v2242
        %v2244 = vsel %vm1374, %v2216, %v2243
        %v2246 = vshrl.u32 %v1065, 16
        %v2248 = vrot.slane %v2246, 3
        %v2249 = vshll.u32 %v1065, 16
        %v2251 = vrot.slane %v2249, 4
        %v2252 = vor.u32 %v2248, %v2251
        %v2253 = vsel %vm1374, %v2225, %v2252
        %v2255 = vshrl.u32 %v1139, 16
        %v2257 = vrot.slane %v2255, 3
        %v2258 = vshll.u32 %v1139, 16
        %v2260 = vrot.slane %v2258, 4
        %v2261 = vor.u32 %v2257, %v2260
        %v2262 = vsel %vm1374, %v2234, %v2261
        %v2264 = vshrl.u32 %v753, 16
        %v2266 = vrot.slane %v2264, 3
        %v2267 = vshll.u32 %v753, 16
        %v2269 = vrot.slane %v2267, 4
        %v2270 = vor.u32 %v2266, %v2269
        %v2271 = vsel %vm1374, %v2243, %v2270
        %v2273 = vshrl.u32 %v1074, 16
        %v2275 = vrot.slane %v2273, 3
        %v2276 = vshll.u32 %v1074, 16
        %v2278 = vrot.slane %v2276, 4
        %v2279 = vor.u32 %v2275, %v2278
        %v2280 = vsel %vm1374, %v2252, %v2279
        %v2282 = vshrl.u32 %v1141, 16
        %v2284 = vrot.slane %v2282, 3
        %v2285 = vshll.u32 %v1141, 16
        %v2287 = vrot.slane %v2285, 4
        %v2288 = vor.u32 %v2284, %v2287
        %v2289 = vsel %vm1374, %v2261, %v2288
        %v2291 = vshrl.u32 %v1155, 16
        %v2293 = vrot.slane %v2291, 3
        %v2294 = vshll.u32 %v1155, 16
        %v2296 = vrot.slane %v2294, 4
        %v2297 = vor.u32 %v2293, %v2296
        %v2298 = vsel %vm1374, %v2270, %v2297
        %v2300 = vshrl.u32 %v1168, 16
        %v2302 = vrot.slane %v2300, 3
        %v2303 = vshll.u32 %v1168, 16
        %v2305 = vrot.slane %v2303, 4
        %v2306 = vor.u32 %v2302, %v2305
        %v2307 = vsel %vm1374, %v2279, %v2306
        %v2309 = vshrl.u32 %v1182, 16
        %v2311 = vrot.slane %v2309, 3
        %v2312 = vshll.u32 %v1182, 16
        %v2314 = vrot.slane %v2312, 4
        %v2315 = vor.u32 %v2311, %v2314
        %v2316 = vsel %vm1374, %v2288, %v2315
        %v2318 = vshrl.u32 %v1156, 16
        %v2320 = vrot.slane %v2318, 3
        %v2321 = vshll.u32 %v1156, 16
        %v2323 = vrot.slane %v2321, 4
        %v2324 = vor.u32 %v2320, %v2323
        %v2325 = vsel %vm1374, %v2297, %v2324
        %v2327 = vshrl.u32 %v1177, 16
        %v2329 = vrot.slane %v2327, 3
        %v2330 = vshll.u32 %v1177, 16
        %v2332 = vrot.slane %v2330, 4
        %v2333 = vor.u32 %v2329, %v2332
        %v2334 = vsel %vm1374, %v2306, %v2333
        %v2336 = vshrl.u32 %v1184, 16
        %v2338 = vrot.slane %v2336, 3
        %v2339 = vshll.u32 %v1184, 16
        %v2341 = vrot.slane %v2339, 4
        %v2342 = vor.u32 %v2338, %v2341
        %v2343 = vsel %vm1374, %v2315, %v2342
        %v2345 = vshrl.u32 %v1198, 16
        %v2347 = vrot.slane %v2345, 3
        %v2348 = vshll.u32 %v1198, 16
        %v2350 = vrot.slane %v2348, 4
        %v2351 = vor.u32 %v2347, %v2350
        %v2352 = vsel %vm1374, %v2324, %v2351
        %v2354 = vshrl.u32 %v1211, 16
        %v2356 = vrot.slane %v2354, 3
        %v2357 = vshll.u32 %v1211, 16
        %v2359 = vrot.slane %v2357, 4
        %v2360 = vor.u32 %v2356, %v2359
        %v2361 = vsel %vm1374, %v2333, %v2360
        %v2363 = vshrl.u32 %v1225, 16
        %v2365 = vrot.slane %v2363, 3
        %v2366 = vshll.u32 %v1225, 16
        %v2368 = vrot.slane %v2366, 4
        %v2369 = vor.u32 %v2365, %v2368
        %v2370 = vsel %vm1374, %v2342, %v2369
        %v2372 = vshrl.u32 %v1199, 16
        %v2374 = vrot.slane %v2372, 3
        %v2375 = vshll.u32 %v1199, 16
        %v2377 = vrot.slane %v2375, 4
        %v2378 = vor.u32 %v2374, %v2377
        %v2379 = vsel %vm1374, %v2351, %v2378
        %v2381 = vshrl.u32 %v1220, 16
        %v2383 = vrot.slane %v2381, 3
        %v2384 = vshll.u32 %v1220, 16
        %v2386 = vrot.slane %v2384, 4
        %v2387 = vor.u32 %v2383, %v2386
        %v2388 = vsel %vm1374, %v2360, %v2387
        %v2390 = vshrl.u32 %v1227, 16
        %v2392 = vrot.slane %v2390, 3
        %v2393 = vshll.u32 %v1227, 16
        %v2395 = vrot.slane %v2393, 4
        %v2396 = vor.u32 %v2392, %v2395
        %v2397 = vsel %vm1374, %v2369, %v2396
        %v2399 = vshrl.u32 %v754, 16
        %v2401 = vrot.slane %v2399, 3
        %v2402 = vshll.u32 %v754, 16
        %v2404 = vrot.slane %v2402, 4
        %v2405 = vor.u32 %v2401, %v2404
        %v2406 = vsel %vm1374, %v2270, %v2405
        %v2408 = vshrl.u32 %v1073, 16
        %v2410 = vrot.slane %v2408, 3
        %v2411 = vshll.u32 %v1073, 16
        %v2413 = vrot.slane %v2411, 4
        %v2414 = vor.u32 %v2410, %v2413
        %v2415 = vsel %vm1374, %v2279, %v2414
        %v2417 = vshrl.u32 %v1143, 16
        %v2419 = vrot.slane %v2417, 3
        %v2420 = vshll.u32 %v1143, 16
        %v2422 = vrot.slane %v2420, 4
        %v2423 = vor.u32 %v2419, %v2422
        %v2424 = vsel %vm1374, %v2288, %v2423
        %v2426 = vshrl.u32 %v1157, 16
        %v2428 = vrot.slane %v2426, 3
        %v2429 = vshll.u32 %v1157, 16
        %v2431 = vrot.slane %v2429, 4
        %v2432 = vor.u32 %v2428, %v2431
        %v2433 = vsel %vm1374, %v2324, %v2432
        %v2435 = vshrl.u32 %v1176, 16
        %v2437 = vrot.slane %v2435, 3
        %v2438 = vshll.u32 %v1176, 16
        %v2440 = vrot.slane %v2438, 4
        %v2441 = vor.u32 %v2437, %v2440
        %v2442 = vsel %vm1374, %v2333, %v2441
        %v2444 = vshrl.u32 %v1186, 16
        %v2446 = vrot.slane %v2444, 3
        %v2447 = vshll.u32 %v1186, 16
        %v2449 = vrot.slane %v2447, 4
        %v2450 = vor.u32 %v2446, %v2449
        %v2451 = vsel %vm1374, %v2342, %v2450
        %v2453 = vshrl.u32 %v1200, 16
        %v2455 = vrot.slane %v2453, 3
        %v2456 = vshll.u32 %v1200, 16
        %v2458 = vrot.slane %v2456, 4
        %v2459 = vor.u32 %v2455, %v2458
        %v2460 = vsel %vm1374, %v2378, %v2459
        %v2462 = vshrl.u32 %v1219, 16
        %v2464 = vrot.slane %v2462, 3
        %v2465 = vshll.u32 %v1219, 16
        %v2467 = vrot.slane %v2465, 4
        %v2468 = vor.u32 %v2464, %v2467
        %v2469 = vsel %vm1374, %v2387, %v2468
        %v2471 = vshrl.u32 %v1229, 16
        %v2473 = vrot.slane %v2471, 3
        %v2474 = vshll.u32 %v1229, 16
        %v2476 = vrot.slane %v2474, 4
        %v2477 = vor.u32 %v2473, %v2476
        %v2478 = vsel %vm1374, %v2396, %v2477
        %v2743 = vunpack.c.l.b16 %v1230
        %v2744 = vunpack.c.l.b16 %v1231
        %v2745 = vunpack.c.l.b16 %v1232
        %v2746 = vunpack.c.l.b16 %v1233
        %v2747 = vunpack.c.l.b16 %v1234
        %v2748 = vunpack.c.l.b16 %v1235
        %v2749 = vunpack.c.l.b16 %v1236
        %v2750 = vunpack.c.l.b16 %v1237
        %v2751 = vunpack.c.l.b16 %v1238
        %v2752 = vunpack.c.l.b16 %v1239
        %v2753 = vunpack.c.l.b16 %v1240
        %v2754 = vunpack.c.l.b16 %v1241
        %v2755 = vunpack.c.l.b16 %v1242
        %v2756 = vunpack.c.l.b16 %v1243
        %v2757 = vunpack.c.l.b16 %v1244
        %v2758 = vunpack.c.l.b16 %v1245
        %v2759 = vunpack.c.l.b16 %v1246
        %v2760 = vunpack.c.l.b16 %v1247
        %v2761 = vunpack.c.l.b16 %v1248
        %v2762 = vunpack.c.l.b16 %v1249
        %v2763 = vunpack.c.l.b16 %v1250
        %v2764 = vunpack.c.l.b16 %v1251
        %v2765 = vunpack.c.l.b16 %v1252
        %v2766 = vunpack.c.l.b16 %v1253
        %v2767 = vunpack.c.l.b16 %v1254
        %v2768 = vunpack.c.l.b16 %v1255
        %v2769 = vunpack.c.l.b16 %v1256
        %v2770 = vunpack.c.l.b16 %v1257
        %v2771 = vunpack.c.l.b16 %v1258
        %v2772 = vunpack.c.l.b16 %v1259
        %v2773 = vunpack.c.l.b16 %v1260
        %v2774 = vunpack.c.l.b16 %v1261
        %v2775 = vunpack.c.l.b16 %v1262
        %v2776 = vunpack.c.l.b16 %v1263
        %v2777 = vunpack.c.l.b16 %v1264
        %v2778 = vunpack.c.l.b16 %v1265
        %v2779 = vunpack.c.l.b16 %v1266
        %v2780 = vunpack.c.l.b16 %v1267
        %v2781 = vunpack.c.l.b16 %v1268
        %v2782 = vunpack.c.l.b16 %v1269
        %v2783 = vunpack.c.l.b16 %v1270
        %v2784 = vunpack.c.l.b16 %v1271
        %v2785 = vunpack.c.l.b16 %v1272
        %v2786 = vunpack.c.l.b16 %v1273
        %v2787 = vunpack.c.l.b16 %v1274
        %v2788 = vunpack.c.l.b16 %v1275
        %v2789 = vunpack.c.l.b16 %v1276
        %v2790 = vunpack.c.l.b16 %v1277
        %v2791 = vunpack.c.l.b16 %v1278
        %v2792 = vunpack.c.l.b16 %v1279
        %v2793 = vunpack.c.l.b16 %v1280
        %v2794 = vunpack.c.l.b16 %v1281
        %v2795 = vunpack.c.l.b16 %v1282
        %v2796 = vunpack.c.l.b16 %v1283
        %v2797 = vunpack.c.l.b16 %v1284
        %v2798 = vunpack.c.l.b16 %v1285
        %v2799 = vunpack.c.l.b16 %v1286
        %v2800 = vunpack.c.l.b16 %v1287
        %v2801 = vunpack.c.l.b16 %v1288
        %v2802 = vunpack.c.l.b16 %v1289
        %v2803 = vunpack.c.l.b16 %v1290
        %v2804 = vunpack.c.l.b16 %v1291
        %v2805 = vunpack.c.l.b16 %v1292
        %v2806 = vunpack.c.l.b16 %v1293
        %v2807 = vunpack.c.l.b16 %v1294
        %v2808 = vunpack.c.l.b16 %v1295
        %v2809 = vunpack.c.l.b16 %v1296
        %v2810 = vunpack.c.l.b16 %v1297
        %v2811 = vunpack.c.l.b16 %v1298
        %v2812 = vunpack.c.l.b16 %v1299
        %v2813 = vunpack.c.l.b16 %v1300
        %v2814 = vunpack.c.l.b16 %v1301
        %v2815 = vunpack.c.l.b16 %v1302
        %v2816 = vunpack.c.l.b16 %v1303
        %v2817 = vunpack.c.l.b16 %v1304
        %v2818 = vunpack.c.l.b16 %v1305
        %v2819 = vunpack.c.l.b16 %v1306
        %v2820 = vunpack.c.l.b16 %v1307
        %v2821 = vunpack.c.l.b16 %v1308
        %v2822 = vunpack.c.l.b16 %v1309
        %v2823 = vunpack.c.l.b16 %v1310
        %v2824 = vunpack.c.l.b16 %v1311
        %v2825 = vunpack.c.l.b16 %v1312
        %v2826 = vunpack.c.l.b16 %v1313
        %v2827 = vunpack.c.l.b16 %v1314
        %v2828 = vunpack.c.l.b16 %v1315
        %v2829 = vunpack.c.l.b16 %v1316
        %v2830 = vunpack.c.l.b16 %v1317
        %v2831 = vunpack.c.l.b16 %v1318
        %v2832 = vunpack.c.l.b16 %v1319
        %v2833 = vunpack.c.l.b16 %v1320
        %v2834 = vunpack.c.l.b16 %v1321
        %v2835 = vunpack.c.l.b16 %v1322
        %v2836 = vunpack.c.l.b16 %v1323
        %v2837 = vunpack.c.l.b16 %v1324
        %v2838 = vunpack.c.l.b16 %v1325
        %v2839 = vunpack.c.l.b16 %v1326
        %v2840 = vunpack.c.l.b16 %v1327
        %v2841 = vunpack.c.l.b16 %v1328
        %v2842 = vunpack.c.l.b16 %v1329
        %v2843 = vunpack.c.l.b16 %v1330
        %v2844 = vunpack.c.l.b16 %v1331
        %v2845 = vunpack.c.l.b16 %v1332
        %v2846 = vunpack.c.l.b16 %v1333
        %v2847 = vunpack.c.l.b16 %v1334
        %v2848 = vunpack.c.l.b16 %v1335
        %v2849 = vunpack.c.l.b16 %v1336
        %v2850 = vunpack.c.l.b16 %v1337
        %v2851 = vunpack.c.l.b16 %v1338
        %v2852 = vunpack.c.l.b16 %v1339
        %v2853 = vunpack.c.l.b16 %v1340
        %v2854 = vunpack.c.l.b16 %v1341
        %v2855 = vunpack.c.l.b16 %v1342
        %v2856 = vunpack.c.l.b16 %v1343
        %v2857 = vunpack.c.l.b16 %v1344
        %v2858 = vunpack.c.l.b16 %v1345
        %v2859 = vunpack.c.l.b16 %v1346
        %v2860 = vunpack.c.l.b16 %v1347
        %v2861 = vunpack.c.l.b16 %v1348
        %v2862 = vunpack.c.l.b16 %v1349
        %v2863 = vunpack.c.l.b16 %v1350
        %v2864 = vunpack.c.l.b16 %v1351
        %v2865 = vunpack.c.l.b16 %v1352
        %v2866 = vunpack.c.l.b16 %v1353
        %v2867 = vunpack.c.l.b16 %v1354
        %v2868 = vunpack.c.l.b16 %v1355
        %v2869 = vunpack.c.l.b16 %v1356
        %v2870 = vunpack.c.l.b16 %v1357
        %v2871 = vunpack.c.l.b16 %v1358
        %v2872 = vunpack.c.l.b16 %v1359
        %v2873 = vunpack.c.l.b16 %v1360
        %v2874 = vunpack.c.l.b16 %v1361
        %v2875 = vunpack.c.l.b16 %v1362
        %v2876 = vunpack.c.l.b16 %v1363
        %v2877 = vunpack.c.l.b16 %v1364
        %v2878 = vunpack.c.l.b16 %v1365
        %v2879 = vunpack.c.l.b16 %v1366
        %v2880 = vunpack.c.l.b16 %v1367
        %v2881 = vunpack.c.l.b16 %v1368
        %v2882 = vunpack.c.l.b16 %v1369
        %v2883 = vunpack.c.l.b16 %v1370
        %v2884 = vunpack.c.l.b16 %v1371
        %v2885 = vunpack.c.l.b16 %v1372
        %v2886 = vunpack.c.l.b16 %v1373
        %v2887 = vpack.c.b16 %v2744, %v2743
        %v2888 = vpack.c.b16 %v2746, %v2745
        %v2889 = vpack.c.b16 %v2748, %v2747
        %v2890 = vpack.c.b16 %v2750, %v2749
        %v2891 = vpack.c.b16 %v2752, %v2751
        %v2892 = vpack.c.b16 %v2754, %v2753
        %v2893 = vpack.c.b16 %v2756, %v2755
        %v2894 = vpack.c.b16 %v2758, %v2757
        %v2895 = vpack.c.b16 %v2760, %v2759
        %v2896 = vpack.c.b16 %v2762, %v2761
        %v2897 = vpack.c.b16 %v2764, %v2763
        %v2898 = vpack.c.b16 %v2766, %v2765
        %v2899 = vpack.c.b16 %v2768, %v2767
        %v2900 = vpack.c.b16 %v2770, %v2769
        %v2901 = vpack.c.b16 %v2772, %v2771
        %v2902 = vpack.c.b16 %v2774, %v2773
        %v2903 = vpack.c.b16 %v2776, %v2775
        %v2904 = vpack.c.b16 %v2778, %v2777
        %v2905 = vpack.c.b16 %v2780, %v2779
        %v2906 = vpack.c.b16 %v2782, %v2781
        %v2907 = vpack.c.b16 %v2784, %v2783
        %v2908 = vpack.c.b16 %v2786, %v2785
        %v2909 = vpack.c.b16 %v2788, %v2787
        %v2910 = vpack.c.b16 %v2790, %v2789
        %v2911 = vpack.c.b16 %v2792, %v2791
        %v2912 = vpack.c.b16 %v2794, %v2793
        %v2913 = vpack.c.b16 %v2796, %v2795
        %v2914 = vpack.c.b16 %v2798, %v2797
        %v2915 = vpack.c.b16 %v2800, %v2799
        %v2916 = vpack.c.b16 %v2802, %v2801
        %v2917 = vpack.c.b16 %v2804, %v2803
        %v2918 = vpack.c.b16 %v2806, %v2805
        %v2919 = vpack.c.b16 %v2808, %v2807
        %v2920 = vpack.c.b16 %v2810, %v2809
        %v2921 = vpack.c.b16 %v2812, %v2811
        %v2922 = vpack.c.b16 %v2814, %v2813
        %v2923 = vpack.c.b16 %v2816, %v2815
        %v2924 = vpack.c.b16 %v2818, %v2817
        %v2925 = vpack.c.b16 %v2820, %v2819
        %v2926 = vpack.c.b16 %v2822, %v2821
        %v2927 = vpack.c.b16 %v2824, %v2823
        %v2928 = vpack.c.b16 %v2826, %v2825
        %v2929 = vpack.c.b16 %v2828, %v2827
        %v2930 = vpack.c.b16 %v2830, %v2829
        %v2931 = vpack.c.b16 %v2832, %v2831
        %v2932 = vpack.c.b16 %v2834, %v2833
        %v2933 = vpack.c.b16 %v2836, %v2835
        %v2934 = vpack.c.b16 %v2838, %v2837
        %v2935 = vpack.c.b16 %v2840, %v2839
        %v2936 = vpack.c.b16 %v2842, %v2841
        %v2937 = vpack.c.b16 %v2844, %v2843
        %v2938 = vpack.c.b16 %v2846, %v2845
        %v2939 = vpack.c.b16 %v2848, %v2847
        %v2940 = vpack.c.b16 %v2850, %v2849
        %v2941 = vpack.c.b16 %v2852, %v2851
        %v2942 = vpack.c.b16 %v2854, %v2853
        %v2943 = vpack.c.b16 %v2856, %v2855
        %v2944 = vpack.c.b16 %v2858, %v2857
        %v2945 = vpack.c.b16 %v2860, %v2859
        %v2946 = vpack.c.b16 %v2862, %v2861
        %v2947 = vpack.c.b16 %v2864, %v2863
        %v2948 = vpack.c.b16 %v2866, %v2865
        %v2949 = vpack.c.b16 %v2868, %v2867
        %v2950 = vpack.c.b16 %v2870, %v2869
        %v2951 = vpack.c.b16 %v2872, %v2871
        %v2952 = vpack.c.b16 %v2874, %v2873
        %v2953 = vpack.c.b16 %v2876, %v2875
        %v2954 = vpack.c.b16 %v2878, %v2877
        %v2955 = vpack.c.b16 %v2880, %v2879
        %v2956 = vpack.c.b16 %v2882, %v2881
        %v2957 = vpack.c.b16 %v2884, %v2883
        %v2958 = vpack.c.b16 %v2886, %v2885
        %3031 = vmatpush.bf16.msra.mxu0 %v2894
        %3032 = vmatpush.bf16.msra.mxu0 %v2893
        %3033 = vmatpush.bf16.msra.mxu0 %v2892
        %3034 = vmatpush.bf16.msra.mxu0 %v2891
        %3035 = vmatpush.bf16.msra.mxu0 %v2890
        %3036 = vmatpush.bf16.msra.mxu0 %v2889
        %3037 = vmatpush.bf16.msra.mxu0 %v2888
        %3038 = vmatpush.bf16.msra.mxu0 %v2887
        %3039 = vmatmul.bf16.gmra.mxu0 %v1391
        %v3040 = vpop.f32.mrf.mxu0
        %v3041 = vadd.f32 0.0, %v3040
        %v3042 = vpop.f32.mrf.mxu0
        %v3043 = vadd.f32 0.0, %v3042
        %3044 = vmatmul.bf16.gmra.mxu0 %v1536
        %v3045 = vpop.f32.mrf.mxu0
        %v3046 = vpop.f32.mrf.mxu0
        %3047 = vmatmul.bf16.gmra.mxu0 %v1609
        %v3048 = vpop.f32.mrf.mxu0
        %v3049 = vadd.f32 0.0, %v3048
        %v3050 = vpop.f32.mrf.mxu0
        %v3051 = vadd.f32 0.0, %v3050
        %3052 = vmatmul.bf16.gmra.mxu0 %v1563
        %v3053 = vpop.f32.mrf.mxu0
        %v3054 = vpop.f32.mrf.mxu0
        %3055 = vmatmul.bf16.gmra.mxu0 %v1612
        %v3056 = vpop.f32.mrf.mxu0
        %v3057 = vadd.f32 0.0, %v3056
        %v3058 = vpop.f32.mrf.mxu0
        %v3059 = vadd.f32 0.0, %v3058
        %3060 = vmatmul.bf16.gmra.mxu0 %v1590
        %v3061 = vpop.f32.mrf.mxu0
        %v3062 = vpop.f32.mrf.mxu0
        %3063 = vmatmul.bf16.gmra.mxu0 %v1623
        %v3064 = vpop.f32.mrf.mxu0
        %v3065 = vadd.f32 0.0, %v3064
        %v3066 = vpop.f32.mrf.mxu0
        %v3067 = vadd.f32 0.0, %v3066
        %3068 = vmatmul.bf16.gmra.mxu0 %v1650
        %v3069 = vpop.f32.mrf.mxu0
        %v3070 = vpop.f32.mrf.mxu0
        %3071 = vmatmul.bf16.gmra.mxu0 %v1677
        %v3072 = vpop.f32.mrf.mxu0
        %v3073 = vadd.f32 0.0, %v3072
        %v3074 = vpop.f32.mrf.mxu0
        %v3075 = vadd.f32 0.0, %v3074
        %3076 = vmatmul.bf16.gmra.mxu0 %v1704
        %v3077 = vpop.f32.mrf.mxu0
        %v3078 = vpop.f32.mrf.mxu0
        %3079 = vmatmul.bf16.gmra.mxu0 %v1731
        %v3080 = vpop.f32.mrf.mxu0
        %v3081 = vadd.f32 0.0, %v3080
        %v3082 = vpop.f32.mrf.mxu0
        %v3083 = vadd.f32 0.0, %v3082
        %3084 = vmatmul.bf16.gmra.mxu0 %v1758
        %v3085 = vpop.f32.mrf.mxu0
        %v3086 = vpop.f32.mrf.mxu0
        %3087 = vmatmul.bf16.gmra.mxu0 %v1785
        %v3088 = vpop.f32.mrf.mxu0
        %v3089 = vadd.f32 0.0, %v3088
        %v3090 = vpop.f32.mrf.mxu0
        %v3091 = vadd.f32 0.0, %v3090
        %3092 = vmatmul.bf16.gmra.mxu0 %v1812
        %v3093 = vpop.f32.mrf.mxu0
        %v3094 = vpop.f32.mrf.mxu0
        %3095 = vmatmul.bf16.gmra.mxu0 %v1839
        %v3096 = vpop.f32.mrf.mxu0
        %v3097 = vadd.f32 0.0, %v3096
        %v3098 = vpop.f32.mrf.mxu0
        %v3099 = vadd.f32 0.0, %v3098
        %3100 = vmatmul.bf16.gmra.mxu0 %v1866
        %v3101 = vpop.f32.mrf.mxu0
        %v3102 = vpop.f32.mrf.mxu0
        %3103 = vmatmul.bf16.gmra.mxu0 %v1893
        %v3104 = vpop.f32.mrf.mxu0
        %v3105 = vadd.f32 0.0, %v3104
        %v3106 = vpop.f32.mrf.mxu0
        %v3107 = vadd.f32 0.0, %v3106
        %3108 = vmatmul.bf16.gmra.mxu0 %v1920
        %v3109 = vpop.f32.mrf.mxu0
        %v3110 = vpop.f32.mrf.mxu0
        %3111 = vmatmul.bf16.gmra.mxu0 %v1947
        %v3112 = vpop.f32.mrf.mxu0
        %v3113 = vadd.f32 0.0, %v3112
        %v3114 = vpop.f32.mrf.mxu0
        %v3115 = vadd.f32 0.0, %v3114
        %3116 = vmatmul.bf16.gmra.mxu0 %v1974
        %v3117 = vpop.f32.mrf.mxu0
        %v3118 = vpop.f32.mrf.mxu0
        %3119 = vmatmul.bf16.gmra.mxu0 %v2001
        %v3120 = vpop.f32.mrf.mxu0
        %v3121 = vadd.f32 0.0, %v3120
        %v3122 = vpop.f32.mrf.mxu0
        %v3123 = vadd.f32 0.0, %v3122
        %3124 = vmatmul.bf16.gmra.mxu0 %v2028
        %v3125 = vpop.f32.mrf.mxu0
        %v3126 = vpop.f32.mrf.mxu0
        %3127 = vmatmul.bf16.gmra.mxu0 %v2055
        %v3128 = vpop.f32.mrf.mxu0
        %v3129 = vadd.f32 0.0, %v3128
        %v3130 = vpop.f32.mrf.mxu0
        %v3131 = vadd.f32 0.0, %v3130
        %3132 = vmatmul.bf16.gmra.mxu0 %v2082
        %v3133 = vpop.f32.mrf.mxu0
        %v3134 = vpop.f32.mrf.mxu0
        %3135 = vmatmul.bf16.gmra.mxu0 %v2109
        %v3136 = vpop.f32.mrf.mxu0
        %v3137 = vadd.f32 0.0, %v3136
        %v3138 = vpop.f32.mrf.mxu0
        %v3139 = vadd.f32 0.0, %v3138
        %3140 = vmatmul.bf16.gmra.mxu0 %v2136
        %v3141 = vpop.f32.mrf.mxu0
        %v3142 = vpop.f32.mrf.mxu0
        %3143 = vmatmul.bf16.gmra.mxu0 %v2163
        %v3144 = vpop.f32.mrf.mxu0
        %v3145 = vadd.f32 0.0, %v3144
        %v3146 = vpop.f32.mrf.mxu0
        %v3147 = vadd.f32 0.0, %v3146
        %3148 = vmatmul.bf16.gmra.mxu0 %v2190
        %v3149 = vpop.f32.mrf.mxu0
        %v3150 = vpop.f32.mrf.mxu0
        %3151 = vmatmul.bf16.gmra.mxu0 %v2217
        %v3152 = vpop.f32.mrf.mxu0
        %v3153 = vadd.f32 0.0, %v3152
        %v3154 = vpop.f32.mrf.mxu0
        %v3155 = vadd.f32 0.0, %v3154
        %3156 = vmatmul.bf16.gmra.mxu0 %v2244
        %v3157 = vpop.f32.mrf.mxu0
        %v3158 = vpop.f32.mrf.mxu0
        %3159 = vmatmul.bf16.gmra.mxu0 %v2271
        %v3160 = vpop.f32.mrf.mxu0
        %v3161 = vadd.f32 0.0, %v3160
        %v3162 = vpop.f32.mrf.mxu0
        %v3163 = vadd.f32 0.0, %v3162
        %3164 = vmatmul.bf16.gmra.mxu0 %v2406
        %v3165 = vpop.f32.mrf.mxu0
        %v3166 = vpop.f32.mrf.mxu0
        %3167 = vdwg.mxu0
        %3168 = vmatpush.bf16.msra.mxu0 %v2902
        %3169 = vmatpush.bf16.msra.mxu0 %v2901
        %3170 = vmatpush.bf16.msra.mxu0 %v2900
        %3171 = vmatpush.bf16.msra.mxu0 %v2899
        %3172 = vmatpush.bf16.msra.mxu0 %v2898
        %3173 = vmatpush.bf16.msra.mxu0 %v2897
        %3174 = vmatpush.bf16.msra.mxu0 %v2896
        %3175 = vmatpush.bf16.msra.mxu0 %v2895
        %3176 = vmatmul.bf16.gmra.mxu0 %v1408
        %v3177 = vpop.f32.mrf.mxu0
        %v3178 = vadd.f32 %v3041, %v3177
        %v3179 = vpop.f32.mrf.mxu0
        %v3180 = vadd.f32 %v3043, %v3179
        %3181 = vmatmul.bf16.gmra.mxu0 %v1545
        %v3182 = vpop.f32.mrf.mxu0
        %v3183 = vpop.f32.mrf.mxu0
        %3184 = vmatmul.bf16.gmra.mxu0 %v1610
        %v3185 = vpop.f32.mrf.mxu0
        %v3186 = vadd.f32 %v3049, %v3185
        %v3187 = vpop.f32.mrf.mxu0
        %v3188 = vadd.f32 %v3051, %v3187
        %3189 = vmatmul.bf16.gmra.mxu0 %v1572
        %v3190 = vpop.f32.mrf.mxu0
        %v3191 = vpop.f32.mrf.mxu0
        %3192 = vmatmul.bf16.gmra.mxu0 %v1613
        %v3193 = vpop.f32.mrf.mxu0
        %v3194 = vadd.f32 %v3057, %v3193
        %v3195 = vpop.f32.mrf.mxu0
        %v3196 = vadd.f32 %v3059, %v3195
        %3197 = vmatmul.bf16.gmra.mxu0 %v1599
        %v3198 = vpop.f32.mrf.mxu0
        %v3199 = vpop.f32.mrf.mxu0
        %3200 = vmatmul.bf16.gmra.mxu0 %v1632
        %v3201 = vpop.f32.mrf.mxu0
        %v3202 = vadd.f32 %v3065, %v3201
        %v3203 = vpop.f32.mrf.mxu0
        %v3204 = vadd.f32 %v3067, %v3203
        %3205 = vmatmul.bf16.gmra.mxu0 %v1659
        %v3206 = vpop.f32.mrf.mxu0
        %v3207 = vpop.f32.mrf.mxu0
        %3208 = vmatmul.bf16.gmra.mxu0 %v1686
        %v3209 = vpop.f32.mrf.mxu0
        %v3210 = vadd.f32 %v3073, %v3209
        %v3211 = vpop.f32.mrf.mxu0
        %v3212 = vadd.f32 %v3075, %v3211
        %3213 = vmatmul.bf16.gmra.mxu0 %v1713
        %v3214 = vpop.f32.mrf.mxu0
        %v3215 = vpop.f32.mrf.mxu0
        %3216 = vmatmul.bf16.gmra.mxu0 %v1740
        %v3217 = vpop.f32.mrf.mxu0
        %v3218 = vadd.f32 %v3081, %v3217
        %v3219 = vpop.f32.mrf.mxu0
        %v3220 = vadd.f32 %v3083, %v3219
        %3221 = vmatmul.bf16.gmra.mxu0 %v1767
        %v3222 = vpop.f32.mrf.mxu0
        %v3223 = vpop.f32.mrf.mxu0
        %3224 = vmatmul.bf16.gmra.mxu0 %v1794
        %v3225 = vpop.f32.mrf.mxu0
        %v3226 = vadd.f32 %v3089, %v3225
        %v3227 = vpop.f32.mrf.mxu0
        %v3228 = vadd.f32 %v3091, %v3227
        %3229 = vmatmul.bf16.gmra.mxu0 %v1821
        %v3230 = vpop.f32.mrf.mxu0
        %v3231 = vpop.f32.mrf.mxu0
        %3232 = vmatmul.bf16.gmra.mxu0 %v1848
        %v3233 = vpop.f32.mrf.mxu0
        %v3234 = vadd.f32 %v3097, %v3233
        %v3235 = vpop.f32.mrf.mxu0
        %v3236 = vadd.f32 %v3099, %v3235
        %3237 = vmatmul.bf16.gmra.mxu0 %v1875
        %v3238 = vpop.f32.mrf.mxu0
        %v3239 = vpop.f32.mrf.mxu0
        %3240 = vmatmul.bf16.gmra.mxu0 %v1902
        %v3241 = vpop.f32.mrf.mxu0
        %v3242 = vadd.f32 %v3105, %v3241
        %v3243 = vpop.f32.mrf.mxu0
        %v3244 = vadd.f32 %v3107, %v3243
        %3245 = vmatmul.bf16.gmra.mxu0 %v1929
        %v3246 = vpop.f32.mrf.mxu0
        %v3247 = vpop.f32.mrf.mxu0
        %3248 = vmatmul.bf16.gmra.mxu0 %v1956
        %v3249 = vpop.f32.mrf.mxu0
        %v3250 = vadd.f32 %v3113, %v3249
        %v3251 = vpop.f32.mrf.mxu0
        %v3252 = vadd.f32 %v3115, %v3251
        %3253 = vmatmul.bf16.gmra.mxu0 %v1983
        %v3254 = vpop.f32.mrf.mxu0
        %v3255 = vpop.f32.mrf.mxu0
        %3256 = vmatmul.bf16.gmra.mxu0 %v2010
        %v3257 = vpop.f32.mrf.mxu0
        %v3258 = vadd.f32 %v3121, %v3257
        %v3259 = vpop.f32.mrf.mxu0
        %v3260 = vadd.f32 %v3123, %v3259
        %3261 = vmatmul.bf16.gmra.mxu0 %v2037
        %v3262 = vpop.f32.mrf.mxu0
        %v3263 = vpop.f32.mrf.mxu0
        %3264 = vmatmul.bf16.gmra.mxu0 %v2064
        %v3265 = vpop.f32.mrf.mxu0
        %v3266 = vadd.f32 %v3129, %v3265
        %v3267 = vpop.f32.mrf.mxu0
        %v3268 = vadd.f32 %v3131, %v3267
        %3269 = vmatmul.bf16.gmra.mxu0 %v2091
        %v3270 = vpop.f32.mrf.mxu0
        %v3271 = vpop.f32.mrf.mxu0
        %3272 = vmatmul.bf16.gmra.mxu0 %v2118
        %v3273 = vpop.f32.mrf.mxu0
        %v3274 = vadd.f32 %v3137, %v3273
        %v3275 = vpop.f32.mrf.mxu0
        %v3276 = vadd.f32 %v3139, %v3275
        %3277 = vmatmul.bf16.gmra.mxu0 %v2145
        %v3278 = vpop.f32.mrf.mxu0
        %v3279 = vpop.f32.mrf.mxu0
        %3280 = vmatmul.bf16.gmra.mxu0 %v2172
        %v3281 = vpop.f32.mrf.mxu0
        %v3282 = vadd.f32 %v3145, %v3281
        %v3283 = vpop.f32.mrf.mxu0
        %v3284 = vadd.f32 %v3147, %v3283
        %3285 = vmatmul.bf16.gmra.mxu0 %v2199
        %v3286 = vpop.f32.mrf.mxu0
        %v3287 = vpop.f32.mrf.mxu0
        %3288 = vmatmul.bf16.gmra.mxu0 %v2226
        %v3289 = vpop.f32.mrf.mxu0
        %v3290 = vadd.f32 %v3153, %v3289
        %v3291 = vpop.f32.mrf.mxu0
        %v3292 = vadd.f32 %v3155, %v3291
        %3293 = vmatmul.bf16.gmra.mxu0 %v2253
        %v3294 = vpop.f32.mrf.mxu0
        %v3295 = vpop.f32.mrf.mxu0
        %3296 = vmatmul.bf16.gmra.mxu0 %v2280
        %v3297 = vpop.f32.mrf.mxu0
        %v3298 = vadd.f32 %v3161, %v3297
        %v3299 = vpop.f32.mrf.mxu0
        %v3300 = vadd.f32 %v3163, %v3299
        %3301 = vmatmul.bf16.gmra.mxu0 %v2415
        %v3302 = vpop.f32.mrf.mxu0
        %v3303 = vpop.f32.mrf.mxu0
        %3304 = vdwg.mxu0
        %3305 = vmatpush.bf16.msra.mxu0 %v2910
        %3306 = vmatpush.bf16.msra.mxu0 %v2909
        %3307 = vmatpush.bf16.msra.mxu0 %v2908
        %3308 = vmatpush.bf16.msra.mxu0 %v2907
        %3309 = vmatpush.bf16.msra.mxu0 %v2906
        %3310 = vmatpush.bf16.msra.mxu0 %v2905
        %3311 = vmatpush.bf16.msra.mxu0 %v2904
        %3312 = vmatpush.bf16.msra.mxu0 %v2903
        %3313 = vmatmul.bf16.gmra.mxu0 %v1425
        %v3314 = vpop.f32.mrf.mxu0
        %v3315 = vadd.f32 %v3178, %v3314
        %v3316 = vpop.f32.mrf.mxu0
        %v3317 = vadd.f32 %v3180, %v3316
        %3318 = vmatmul.bf16.gmra.mxu0 %v1554
        %v3319 = vpop.f32.mrf.mxu0
        %v3320 = vpop.f32.mrf.mxu0
        %3321 = vmatmul.bf16.gmra.mxu0 %v1611
        %v3322 = vpop.f32.mrf.mxu0
        %v3323 = vadd.f32 %v3186, %v3322
        %v3324 = vpop.f32.mrf.mxu0
        %v3325 = vadd.f32 %v3188, %v3324
        %3326 = vmatmul.bf16.gmra.mxu0 %v1581
        %v3327 = vpop.f32.mrf.mxu0
        %v3328 = vpop.f32.mrf.mxu0
        %3329 = vmatmul.bf16.gmra.mxu0 %v1614
        %v3330 = vpop.f32.mrf.mxu0
        %v3331 = vadd.f32 %v3194, %v3330
        %v3332 = vpop.f32.mrf.mxu0
        %v3333 = vadd.f32 %v3196, %v3332
        %3334 = vmatmul.bf16.gmra.mxu0 %v1608
        %v3335 = vpop.f32.mrf.mxu0
        %v3336 = vpop.f32.mrf.mxu0
        %3337 = vmatmul.bf16.gmra.mxu0 %v1641
        %v3338 = vpop.f32.mrf.mxu0
        %v3339 = vadd.f32 %v3202, %v3338
        %v3340 = vpop.f32.mrf.mxu0
        %v3341 = vadd.f32 %v3204, %v3340
        %3342 = vmatmul.bf16.gmra.mxu0 %v1668
        %v3343 = vpop.f32.mrf.mxu0
        %v3344 = vpop.f32.mrf.mxu0
        %3345 = vmatmul.bf16.gmra.mxu0 %v1695
        %v3346 = vpop.f32.mrf.mxu0
        %v3347 = vadd.f32 %v3210, %v3346
        %v3348 = vpop.f32.mrf.mxu0
        %v3349 = vadd.f32 %v3212, %v3348
        %3350 = vmatmul.bf16.gmra.mxu0 %v1722
        %v3351 = vpop.f32.mrf.mxu0
        %v3352 = vpop.f32.mrf.mxu0
        %3353 = vmatmul.bf16.gmra.mxu0 %v1749
        %v3354 = vpop.f32.mrf.mxu0
        %v3355 = vadd.f32 %v3218, %v3354
        %v3356 = vpop.f32.mrf.mxu0
        %v3357 = vadd.f32 %v3220, %v3356
        %3358 = vmatmul.bf16.gmra.mxu0 %v1776
        %v3359 = vpop.f32.mrf.mxu0
        %v3360 = vpop.f32.mrf.mxu0
        %3361 = vmatmul.bf16.gmra.mxu0 %v1803
        %v3362 = vpop.f32.mrf.mxu0
        %v3363 = vadd.f32 %v3226, %v3362
        %v3364 = vpop.f32.mrf.mxu0
        %v3365 = vadd.f32 %v3228, %v3364
        %3366 = vmatmul.bf16.gmra.mxu0 %v1830
        %v3367 = vpop.f32.mrf.mxu0
        %v3368 = vpop.f32.mrf.mxu0
        %3369 = vmatmul.bf16.gmra.mxu0 %v1857
        %v3370 = vpop.f32.mrf.mxu0
        %v3371 = vadd.f32 %v3234, %v3370
        %v3372 = vpop.f32.mrf.mxu0
        %v3373 = vadd.f32 %v3236, %v3372
        %3374 = vmatmul.bf16.gmra.mxu0 %v1884
        %v3375 = vpop.f32.mrf.mxu0
        %v3376 = vpop.f32.mrf.mxu0
        %3377 = vmatmul.bf16.gmra.mxu0 %v1911
        %v3378 = vpop.f32.mrf.mxu0
        %v3379 = vadd.f32 %v3242, %v3378
        %v3380 = vpop.f32.mrf.mxu0
        %v3381 = vadd.f32 %v3244, %v3380
        %3382 = vmatmul.bf16.gmra.mxu0 %v1938
        %v3383 = vpop.f32.mrf.mxu0
        %v3384 = vpop.f32.mrf.mxu0
        %3385 = vmatmul.bf16.gmra.mxu0 %v1965
        %v3386 = vpop.f32.mrf.mxu0
        %v3387 = vadd.f32 %v3250, %v3386
        %v3388 = vpop.f32.mrf.mxu0
        %v3389 = vadd.f32 %v3252, %v3388
        %3390 = vmatmul.bf16.gmra.mxu0 %v1992
        %v3391 = vpop.f32.mrf.mxu0
        %v3392 = vpop.f32.mrf.mxu0
        %3393 = vmatmul.bf16.gmra.mxu0 %v2019
        %v3394 = vpop.f32.mrf.mxu0
        %v3395 = vadd.f32 %v3258, %v3394
        %v3396 = vpop.f32.mrf.mxu0
        %v3397 = vadd.f32 %v3260, %v3396
        %3398 = vmatmul.bf16.gmra.mxu0 %v2046
        %v3399 = vpop.f32.mrf.mxu0
        %v3400 = vpop.f32.mrf.mxu0
        %3401 = vmatmul.bf16.gmra.mxu0 %v2073
        %v3402 = vpop.f32.mrf.mxu0
        %v3403 = vadd.f32 %v3266, %v3402
        %v3404 = vpop.f32.mrf.mxu0
        %v3405 = vadd.f32 %v3268, %v3404
        %3406 = vmatmul.bf16.gmra.mxu0 %v2100
        %v3407 = vpop.f32.mrf.mxu0
        %v3408 = vpop.f32.mrf.mxu0
        %3409 = vmatmul.bf16.gmra.mxu0 %v2127
        %v3410 = vpop.f32.mrf.mxu0
        %v3411 = vadd.f32 %v3274, %v3410
        %v3412 = vpop.f32.mrf.mxu0
        %v3413 = vadd.f32 %v3276, %v3412
        %3414 = vmatmul.bf16.gmra.mxu0 %v2154
        %v3415 = vpop.f32.mrf.mxu0
        %v3416 = vpop.f32.mrf.mxu0
        %3417 = vmatmul.bf16.gmra.mxu0 %v2181
        %v3418 = vpop.f32.mrf.mxu0
        %v3419 = vadd.f32 %v3282, %v3418
        %v3420 = vpop.f32.mrf.mxu0
        %v3421 = vadd.f32 %v3284, %v3420
        %3422 = vmatmul.bf16.gmra.mxu0 %v2208
        %v3423 = vpop.f32.mrf.mxu0
        %v3424 = vpop.f32.mrf.mxu0
        %3425 = vmatmul.bf16.gmra.mxu0 %v2235
        %v3426 = vpop.f32.mrf.mxu0
        %v3427 = vadd.f32 %v3290, %v3426
        %v3428 = vpop.f32.mrf.mxu0
        %v3429 = vadd.f32 %v3292, %v3428
        %3430 = vmatmul.bf16.gmra.mxu0 %v2262
        %v3431 = vpop.f32.mrf.mxu0
        %v3432 = vpop.f32.mrf.mxu0
        %3433 = vmatmul.bf16.gmra.mxu0 %v2289
        %v3434 = vpop.f32.mrf.mxu0
        %v3435 = vadd.f32 %v3298, %v3434
        %v3436 = vpop.f32.mrf.mxu0
        %v3437 = vadd.f32 %v3300, %v3436
        %3438 = vmatmul.bf16.gmra.mxu0 %v2424
        %v3439 = vpop.f32.mrf.mxu0
        %v3440 = vpop.f32.mrf.mxu0
        %3441 = vdwg.mxu0
        %3442 = vmatpush.bf16.msra.mxu0 %v2918
        %3443 = vmatpush.bf16.msra.mxu0 %v2917
        %3444 = vmatpush.bf16.msra.mxu0 %v2916
        %3445 = vmatpush.bf16.msra.mxu0 %v2915
        %3446 = vmatpush.bf16.msra.mxu0 %v2914
        %3447 = vmatpush.bf16.msra.mxu0 %v2913
        %3448 = vmatpush.bf16.msra.mxu0 %v2912
        %3449 = vmatpush.bf16.msra.mxu0 %v2911
        %3450 = vmatmul.bf16.gmra.mxu0 %v1442
        %v3451 = vpop.f32.mrf.mxu0
        %v3452 = vadd.f32 %v3315, %v3451
        %v3453 = vpop.f32.mrf.mxu0
        %v3454 = vadd.f32 %v3317, %v3453
        %3455 = vmatmul.bf16.gmra.mxu0 %v1563
        %v3456 = vpop.f32.mrf.mxu0
        %v3457 = vpop.f32.mrf.mxu0
        %3458 = vmatmul.bf16.gmra.mxu0 %v1612
        %v3459 = vpop.f32.mrf.mxu0
        %v3460 = vadd.f32 %v3323, %v3459
        %v3461 = vpop.f32.mrf.mxu0
        %v3462 = vadd.f32 %v3325, %v3461
        %3463 = vmatmul.bf16.gmra.mxu0 %v1590
        %v3464 = vpop.f32.mrf.mxu0
        %v3465 = vpop.f32.mrf.mxu0
        %3466 = vmatmul.bf16.gmra.mxu0 %v1623
        %v3467 = vpop.f32.mrf.mxu0
        %v3468 = vadd.f32 %v3331, %v3467
        %v3469 = vpop.f32.mrf.mxu0
        %v3470 = vadd.f32 %v3333, %v3469
        %3471 = vmatmul.bf16.gmra.mxu0 %v1650
        %v3472 = vpop.f32.mrf.mxu0
        %v3473 = vpop.f32.mrf.mxu0
        %3474 = vmatmul.bf16.gmra.mxu0 %v1677
        %v3475 = vpop.f32.mrf.mxu0
        %v3476 = vadd.f32 %v3339, %v3475
        %v3477 = vpop.f32.mrf.mxu0
        %v3478 = vadd.f32 %v3341, %v3477
        %3479 = vmatmul.bf16.gmra.mxu0 %v1704
        %v3480 = vpop.f32.mrf.mxu0
        %v3481 = vpop.f32.mrf.mxu0
        %3482 = vmatmul.bf16.gmra.mxu0 %v1731
        %v3483 = vpop.f32.mrf.mxu0
        %v3484 = vadd.f32 %v3347, %v3483
        %v3485 = vpop.f32.mrf.mxu0
        %v3486 = vadd.f32 %v3349, %v3485
        %3487 = vmatmul.bf16.gmra.mxu0 %v1758
        %v3488 = vpop.f32.mrf.mxu0
        %v3489 = vpop.f32.mrf.mxu0
        %3490 = vmatmul.bf16.gmra.mxu0 %v1785
        %v3491 = vpop.f32.mrf.mxu0
        %v3492 = vadd.f32 %v3355, %v3491
        %v3493 = vpop.f32.mrf.mxu0
        %v3494 = vadd.f32 %v3357, %v3493
        %3495 = vmatmul.bf16.gmra.mxu0 %v1812
        %v3496 = vpop.f32.mrf.mxu0
        %v3497 = vpop.f32.mrf.mxu0
        %3498 = vmatmul.bf16.gmra.mxu0 %v1839
        %v3499 = vpop.f32.mrf.mxu0
        %v3500 = vadd.f32 %v3363, %v3499
        %v3501 = vpop.f32.mrf.mxu0
        %v3502 = vadd.f32 %v3365, %v3501
        %3503 = vmatmul.bf16.gmra.mxu0 %v1866
        %v3504 = vpop.f32.mrf.mxu0
        %v3505 = vpop.f32.mrf.mxu0
        %3506 = vmatmul.bf16.gmra.mxu0 %v1893
        %v3507 = vpop.f32.mrf.mxu0
        %v3508 = vadd.f32 %v3371, %v3507
        %v3509 = vpop.f32.mrf.mxu0
        %v3510 = vadd.f32 %v3373, %v3509
        %3511 = vmatmul.bf16.gmra.mxu0 %v1920
        %v3512 = vpop.f32.mrf.mxu0
        %v3513 = vpop.f32.mrf.mxu0
        %3514 = vmatmul.bf16.gmra.mxu0 %v1947
        %v3515 = vpop.f32.mrf.mxu0
        %v3516 = vadd.f32 %v3379, %v3515
        %v3517 = vpop.f32.mrf.mxu0
        %v3518 = vadd.f32 %v3381, %v3517
        %3519 = vmatmul.bf16.gmra.mxu0 %v1974
        %v3520 = vpop.f32.mrf.mxu0
        %v3521 = vpop.f32.mrf.mxu0
        %3522 = vmatmul.bf16.gmra.mxu0 %v2001
        %v3523 = vpop.f32.mrf.mxu0
        %v3524 = vadd.f32 %v3387, %v3523
        %v3525 = vpop.f32.mrf.mxu0
        %v3526 = vadd.f32 %v3389, %v3525
        %3527 = vmatmul.bf16.gmra.mxu0 %v2028
        %v3528 = vpop.f32.mrf.mxu0
        %v3529 = vpop.f32.mrf.mxu0
        %3530 = vmatmul.bf16.gmra.mxu0 %v2055
        %v3531 = vpop.f32.mrf.mxu0
        %v3532 = vadd.f32 %v3395, %v3531
        %v3533 = vpop.f32.mrf.mxu0
        %v3534 = vadd.f32 %v3397, %v3533
        %3535 = vmatmul.bf16.gmra.mxu0 %v2082
        %v3536 = vpop.f32.mrf.mxu0
        %v3537 = vpop.f32.mrf.mxu0
        %3538 = vmatmul.bf16.gmra.mxu0 %v2109
        %v3539 = vpop.f32.mrf.mxu0
        %v3540 = vadd.f32 %v3403, %v3539
        %v3541 = vpop.f32.mrf.mxu0
        %v3542 = vadd.f32 %v3405, %v3541
        %3543 = vmatmul.bf16.gmra.mxu0 %v2136
        %v3544 = vpop.f32.mrf.mxu0
        %v3545 = vpop.f32.mrf.mxu0
        %3546 = vmatmul.bf16.gmra.mxu0 %v2163
        %v3547 = vpop.f32.mrf.mxu0
        %v3548 = vadd.f32 %v3411, %v3547
        %v3549 = vpop.f32.mrf.mxu0
        %v3550 = vadd.f32 %v3413, %v3549
        %3551 = vmatmul.bf16.gmra.mxu0 %v2190
        %v3552 = vpop.f32.mrf.mxu0
        %v3553 = vpop.f32.mrf.mxu0
        %3554 = vmatmul.bf16.gmra.mxu0 %v2217
        %v3555 = vpop.f32.mrf.mxu0
        %v3556 = vadd.f32 %v3419, %v3555
        %v3557 = vpop.f32.mrf.mxu0
        %v3558 = vadd.f32 %v3421, %v3557
        %3559 = vmatmul.bf16.gmra.mxu0 %v2244
        %v3560 = vpop.f32.mrf.mxu0
        %v3561 = vpop.f32.mrf.mxu0
        %3562 = vmatmul.bf16.gmra.mxu0 %v2271
        %v3563 = vpop.f32.mrf.mxu0
        %v3564 = vadd.f32 %v3427, %v3563
        %v3565 = vpop.f32.mrf.mxu0
        %v3566 = vadd.f32 %v3429, %v3565
        %3567 = vmatmul.bf16.gmra.mxu0 %v2298
        %v3568 = vpop.f32.mrf.mxu0
        %v3569 = vpop.f32.mrf.mxu0
        %3570 = vmatmul.bf16.gmra.mxu0 %v2325
        %v3571 = vpop.f32.mrf.mxu0
        %v3572 = vadd.f32 %v3435, %v3571
        %v3573 = vpop.f32.mrf.mxu0
        %v3574 = vadd.f32 %v3437, %v3573
        %3575 = vmatmul.bf16.gmra.mxu0 %v2433
        %v3576 = vpop.f32.mrf.mxu0
        %v3577 = vpop.f32.mrf.mxu0
        %3578 = vdwg.mxu0
        %3579 = vmatpush.bf16.msra.mxu0 %v2926
        %3580 = vmatpush.bf16.msra.mxu0 %v2925
        %3581 = vmatpush.bf16.msra.mxu0 %v2924
        %3582 = vmatpush.bf16.msra.mxu0 %v2923
        %3583 = vmatpush.bf16.msra.mxu0 %v2922
        %3584 = vmatpush.bf16.msra.mxu0 %v2921
        %3585 = vmatpush.bf16.msra.mxu0 %v2920
        %3586 = vmatpush.bf16.msra.mxu0 %v2919
        %3587 = vmatmul.bf16.gmra.mxu0 %v1459
        %v3588 = vpop.f32.mrf.mxu0
        %v3589 = vadd.f32 %v3452, %v3588
        %v3590 = vpop.f32.mrf.mxu0
        %v3591 = vadd.f32 %v3454, %v3590
        %3592 = vmatmul.bf16.gmra.mxu0 %v1572
        %v3593 = vpop.f32.mrf.mxu0
        %v3594 = vpop.f32.mrf.mxu0
        %3595 = vmatmul.bf16.gmra.mxu0 %v1613
        %v3596 = vpop.f32.mrf.mxu0
        %v3597 = vadd.f32 %v3460, %v3596
        %v3598 = vpop.f32.mrf.mxu0
        %v3599 = vadd.f32 %v3462, %v3598
        %3600 = vmatmul.bf16.gmra.mxu0 %v1599
        %v3601 = vpop.f32.mrf.mxu0
        %v3602 = vpop.f32.mrf.mxu0
        %3603 = vmatmul.bf16.gmra.mxu0 %v1632
        %v3604 = vpop.f32.mrf.mxu0
        %v3605 = vadd.f32 %v3468, %v3604
        %v3606 = vpop.f32.mrf.mxu0
        %v3607 = vadd.f32 %v3470, %v3606
        %3608 = vmatmul.bf16.gmra.mxu0 %v1659
        %v3609 = vpop.f32.mrf.mxu0
        %v3610 = vpop.f32.mrf.mxu0
        %3611 = vmatmul.bf16.gmra.mxu0 %v1686
        %v3612 = vpop.f32.mrf.mxu0
        %v3613 = vadd.f32 %v3476, %v3612
        %v3614 = vpop.f32.mrf.mxu0
        %v3615 = vadd.f32 %v3478, %v3614
        %3616 = vmatmul.bf16.gmra.mxu0 %v1713
        %v3617 = vpop.f32.mrf.mxu0
        %v3618 = vpop.f32.mrf.mxu0
        %3619 = vmatmul.bf16.gmra.mxu0 %v1740
        %v3620 = vpop.f32.mrf.mxu0
        %v3621 = vadd.f32 %v3484, %v3620
        %v3622 = vpop.f32.mrf.mxu0
        %v3623 = vadd.f32 %v3486, %v3622
        %3624 = vmatmul.bf16.gmra.mxu0 %v1767
        %v3625 = vpop.f32.mrf.mxu0
        %v3626 = vpop.f32.mrf.mxu0
        %3627 = vmatmul.bf16.gmra.mxu0 %v1794
        %v3628 = vpop.f32.mrf.mxu0
        %v3629 = vadd.f32 %v3492, %v3628
        %v3630 = vpop.f32.mrf.mxu0
        %v3631 = vadd.f32 %v3494, %v3630
        %3632 = vmatmul.bf16.gmra.mxu0 %v1821
        %v3633 = vpop.f32.mrf.mxu0
        %v3634 = vpop.f32.mrf.mxu0
        %3635 = vmatmul.bf16.gmra.mxu0 %v1848
        %v3636 = vpop.f32.mrf.mxu0
        %v3637 = vadd.f32 %v3500, %v3636
        %v3638 = vpop.f32.mrf.mxu0
        %v3639 = vadd.f32 %v3502, %v3638
        %3640 = vmatmul.bf16.gmra.mxu0 %v1875
        %v3641 = vpop.f32.mrf.mxu0
        %v3642 = vpop.f32.mrf.mxu0
        %3643 = vmatmul.bf16.gmra.mxu0 %v1902
        %v3644 = vpop.f32.mrf.mxu0
        %v3645 = vadd.f32 %v3508, %v3644
        %v3646 = vpop.f32.mrf.mxu0
        %v3647 = vadd.f32 %v3510, %v3646
        %3648 = vmatmul.bf16.gmra.mxu0 %v1929
        %v3649 = vpop.f32.mrf.mxu0
        %v3650 = vpop.f32.mrf.mxu0
        %3651 = vmatmul.bf16.gmra.mxu0 %v1956
        %v3652 = vpop.f32.mrf.mxu0
        %v3653 = vadd.f32 %v3516, %v3652
        %v3654 = vpop.f32.mrf.mxu0
        %v3655 = vadd.f32 %v3518, %v3654
        %3656 = vmatmul.bf16.gmra.mxu0 %v1983
        %v3657 = vpop.f32.mrf.mxu0
        %v3658 = vpop.f32.mrf.mxu0
        %3659 = vmatmul.bf16.gmra.mxu0 %v2010
        %v3660 = vpop.f32.mrf.mxu0
        %v3661 = vadd.f32 %v3524, %v3660
        %v3662 = vpop.f32.mrf.mxu0
        %v3663 = vadd.f32 %v3526, %v3662
        %3664 = vmatmul.bf16.gmra.mxu0 %v2037
        %v3665 = vpop.f32.mrf.mxu0
        %v3666 = vpop.f32.mrf.mxu0
        %3667 = vmatmul.bf16.gmra.mxu0 %v2064
        %v3668 = vpop.f32.mrf.mxu0
        %v3669 = vadd.f32 %v3532, %v3668
        %v3670 = vpop.f32.mrf.mxu0
        %v3671 = vadd.f32 %v3534, %v3670
        %3672 = vmatmul.bf16.gmra.mxu0 %v2091
        %v3673 = vpop.f32.mrf.mxu0
        %v3674 = vpop.f32.mrf.mxu0
        %3675 = vmatmul.bf16.gmra.mxu0 %v2118
        %v3676 = vpop.f32.mrf.mxu0
        %v3677 = vadd.f32 %v3540, %v3676
        %v3678 = vpop.f32.mrf.mxu0
        %v3679 = vadd.f32 %v3542, %v3678
        %3680 = vmatmul.bf16.gmra.mxu0 %v2145
        %v3681 = vpop.f32.mrf.mxu0
        %v3682 = vpop.f32.mrf.mxu0
        %3683 = vmatmul.bf16.gmra.mxu0 %v2172
        %v3684 = vpop.f32.mrf.mxu0
        %v3685 = vadd.f32 %v3548, %v3684
        %v3686 = vpop.f32.mrf.mxu0
        %v3687 = vadd.f32 %v3550, %v3686
        %3688 = vmatmul.bf16.gmra.mxu0 %v2199
        %v3689 = vpop.f32.mrf.mxu0
        %v3690 = vpop.f32.mrf.mxu0
        %3691 = vmatmul.bf16.gmra.mxu0 %v2226
        %v3692 = vpop.f32.mrf.mxu0
        %v3693 = vadd.f32 %v3556, %v3692
        %v3694 = vpop.f32.mrf.mxu0
        %v3695 = vadd.f32 %v3558, %v3694
        %3696 = vmatmul.bf16.gmra.mxu0 %v2253
        %v3697 = vpop.f32.mrf.mxu0
        %v3698 = vpop.f32.mrf.mxu0
        %3699 = vmatmul.bf16.gmra.mxu0 %v2280
        %v3700 = vpop.f32.mrf.mxu0
        %v3701 = vadd.f32 %v3564, %v3700
        %v3702 = vpop.f32.mrf.mxu0
        %v3703 = vadd.f32 %v3566, %v3702
        %3704 = vmatmul.bf16.gmra.mxu0 %v2307
        %v3705 = vpop.f32.mrf.mxu0
        %v3706 = vpop.f32.mrf.mxu0
        %3707 = vmatmul.bf16.gmra.mxu0 %v2334
        %v3708 = vpop.f32.mrf.mxu0
        %v3709 = vadd.f32 %v3572, %v3708
        %v3710 = vpop.f32.mrf.mxu0
        %v3711 = vadd.f32 %v3574, %v3710
        %3712 = vmatmul.bf16.gmra.mxu0 %v2442
        %v3713 = vpop.f32.mrf.mxu0
        %v3714 = vpop.f32.mrf.mxu0
        %3715 = vdwg.mxu0
        %3716 = vmatpush.bf16.msra.mxu0 %v2934
        %3717 = vmatpush.bf16.msra.mxu0 %v2933
        %3718 = vmatpush.bf16.msra.mxu0 %v2932
        %3719 = vmatpush.bf16.msra.mxu0 %v2931
        %3720 = vmatpush.bf16.msra.mxu0 %v2930
        %3721 = vmatpush.bf16.msra.mxu0 %v2929
        %3722 = vmatpush.bf16.msra.mxu0 %v2928
        %3723 = vmatpush.bf16.msra.mxu0 %v2927
        %3724 = vmatmul.bf16.gmra.mxu0 %v1476
        %v3725 = vpop.f32.mrf.mxu0
        %v3726 = vadd.f32 %v3589, %v3725
        %v3727 = vpop.f32.mrf.mxu0
        %v3728 = vadd.f32 %v3591, %v3727
        %3729 = vmatmul.bf16.gmra.mxu0 %v1581
        %v3730 = vpop.f32.mrf.mxu0
        %v3731 = vpop.f32.mrf.mxu0
        %3732 = vmatmul.bf16.gmra.mxu0 %v1614
        %v3733 = vpop.f32.mrf.mxu0
        %v3734 = vadd.f32 %v3597, %v3733
        %v3735 = vpop.f32.mrf.mxu0
        %v3736 = vadd.f32 %v3599, %v3735
        %3737 = vmatmul.bf16.gmra.mxu0 %v1608
        %v3738 = vpop.f32.mrf.mxu0
        %v3739 = vpop.f32.mrf.mxu0
        %3740 = vmatmul.bf16.gmra.mxu0 %v1641
        %v3741 = vpop.f32.mrf.mxu0
        %v3742 = vadd.f32 %v3605, %v3741
        %v3743 = vpop.f32.mrf.mxu0
        %v3744 = vadd.f32 %v3607, %v3743
        %3745 = vmatmul.bf16.gmra.mxu0 %v1668
        %v3746 = vpop.f32.mrf.mxu0
        %v3747 = vpop.f32.mrf.mxu0
        %3748 = vmatmul.bf16.gmra.mxu0 %v1695
        %v3749 = vpop.f32.mrf.mxu0
        %v3750 = vadd.f32 %v3613, %v3749
        %v3751 = vpop.f32.mrf.mxu0
        %v3752 = vadd.f32 %v3615, %v3751
        %3753 = vmatmul.bf16.gmra.mxu0 %v1722
        %v3754 = vpop.f32.mrf.mxu0
        %v3755 = vpop.f32.mrf.mxu0
        %3756 = vmatmul.bf16.gmra.mxu0 %v1749
        %v3757 = vpop.f32.mrf.mxu0
        %v3758 = vadd.f32 %v3621, %v3757
        %v3759 = vpop.f32.mrf.mxu0
        %v3760 = vadd.f32 %v3623, %v3759
        %3761 = vmatmul.bf16.gmra.mxu0 %v1776
        %v3762 = vpop.f32.mrf.mxu0
        %v3763 = vpop.f32.mrf.mxu0
        %3764 = vmatmul.bf16.gmra.mxu0 %v1803
        %v3765 = vpop.f32.mrf.mxu0
        %v3766 = vadd.f32 %v3629, %v3765
        %v3767 = vpop.f32.mrf.mxu0
        %v3768 = vadd.f32 %v3631, %v3767
        %3769 = vmatmul.bf16.gmra.mxu0 %v1830
        %v3770 = vpop.f32.mrf.mxu0
        %v3771 = vpop.f32.mrf.mxu0
        %3772 = vmatmul.bf16.gmra.mxu0 %v1857
        %v3773 = vpop.f32.mrf.mxu0
        %v3774 = vadd.f32 %v3637, %v3773
        %v3775 = vpop.f32.mrf.mxu0
        %v3776 = vadd.f32 %v3639, %v3775
        %3777 = vmatmul.bf16.gmra.mxu0 %v1884
        %v3778 = vpop.f32.mrf.mxu0
        %v3779 = vpop.f32.mrf.mxu0
        %3780 = vmatmul.bf16.gmra.mxu0 %v1911
        %v3781 = vpop.f32.mrf.mxu0
        %v3782 = vadd.f32 %v3645, %v3781
        %v3783 = vpop.f32.mrf.mxu0
        %v3784 = vadd.f32 %v3647, %v3783
        %3785 = vmatmul.bf16.gmra.mxu0 %v1938
        %v3786 = vpop.f32.mrf.mxu0
        %v3787 = vpop.f32.mrf.mxu0
        %3788 = vmatmul.bf16.gmra.mxu0 %v1965
        %v3789 = vpop.f32.mrf.mxu0
        %v3790 = vadd.f32 %v3653, %v3789
        %v3791 = vpop.f32.mrf.mxu0
        %v3792 = vadd.f32 %v3655, %v3791
        %3793 = vmatmul.bf16.gmra.mxu0 %v1992
        %v3794 = vpop.f32.mrf.mxu0
        %v3795 = vpop.f32.mrf.mxu0
        %3796 = vmatmul.bf16.gmra.mxu0 %v2019
        %v3797 = vpop.f32.mrf.mxu0
        %v3798 = vadd.f32 %v3661, %v3797
        %v3799 = vpop.f32.mrf.mxu0
        %v3800 = vadd.f32 %v3663, %v3799
        %3801 = vmatmul.bf16.gmra.mxu0 %v2046
        %v3802 = vpop.f32.mrf.mxu0
        %v3803 = vpop.f32.mrf.mxu0
        %3804 = vmatmul.bf16.gmra.mxu0 %v2073
        %v3805 = vpop.f32.mrf.mxu0
        %v3806 = vadd.f32 %v3669, %v3805
        %v3807 = vpop.f32.mrf.mxu0
        %v3808 = vadd.f32 %v3671, %v3807
        %3809 = vmatmul.bf16.gmra.mxu0 %v2100
        %v3810 = vpop.f32.mrf.mxu0
        %v3811 = vpop.f32.mrf.mxu0
        %3812 = vmatmul.bf16.gmra.mxu0 %v2127
        %v3813 = vpop.f32.mrf.mxu0
        %v3814 = vadd.f32 %v3677, %v3813
        %v3815 = vpop.f32.mrf.mxu0
        %v3816 = vadd.f32 %v3679, %v3815
        %3817 = vmatmul.bf16.gmra.mxu0 %v2154
        %v3818 = vpop.f32.mrf.mxu0
        %v3819 = vpop.f32.mrf.mxu0
        %3820 = vmatmul.bf16.gmra.mxu0 %v2181
        %v3821 = vpop.f32.mrf.mxu0
        %v3822 = vadd.f32 %v3685, %v3821
        %v3823 = vpop.f32.mrf.mxu0
        %v3824 = vadd.f32 %v3687, %v3823
        %3825 = vmatmul.bf16.gmra.mxu0 %v2208
        %v3826 = vpop.f32.mrf.mxu0
        %v3827 = vpop.f32.mrf.mxu0
        %3828 = vmatmul.bf16.gmra.mxu0 %v2235
        %v3829 = vpop.f32.mrf.mxu0
        %v3830 = vadd.f32 %v3693, %v3829
        %v3831 = vpop.f32.mrf.mxu0
        %v3832 = vadd.f32 %v3695, %v3831
        %3833 = vmatmul.bf16.gmra.mxu0 %v2262
        %v3834 = vpop.f32.mrf.mxu0
        %v3835 = vpop.f32.mrf.mxu0
        %3836 = vmatmul.bf16.gmra.mxu0 %v2289
        %v3837 = vpop.f32.mrf.mxu0
        %v3838 = vadd.f32 %v3701, %v3837
        %v3839 = vpop.f32.mrf.mxu0
        %v3840 = vadd.f32 %v3703, %v3839
        %3841 = vmatmul.bf16.gmra.mxu0 %v2316
        %v3842 = vpop.f32.mrf.mxu0
        %v3843 = vpop.f32.mrf.mxu0
        %3844 = vmatmul.bf16.gmra.mxu0 %v2343
        %v3845 = vpop.f32.mrf.mxu0
        %v3846 = vadd.f32 %v3709, %v3845
        %v3847 = vpop.f32.mrf.mxu0
        %v3848 = vadd.f32 %v3711, %v3847
        %3849 = vmatmul.bf16.gmra.mxu0 %v2451
        %v3850 = vpop.f32.mrf.mxu0
        %v3851 = vpop.f32.mrf.mxu0
        %3852 = vdwg.mxu0
        %3853 = vmatpush.bf16.msra.mxu0 %v2942
        %3854 = vmatpush.bf16.msra.mxu0 %v2941
        %3855 = vmatpush.bf16.msra.mxu0 %v2940
        %3856 = vmatpush.bf16.msra.mxu0 %v2939
        %3857 = vmatpush.bf16.msra.mxu0 %v2938
        %3858 = vmatpush.bf16.msra.mxu0 %v2937
        %3859 = vmatpush.bf16.msra.mxu0 %v2936
        %3860 = vmatpush.bf16.msra.mxu0 %v2935
        %3861 = vmatmul.bf16.gmra.mxu0 %v1493
        %v3862 = vpop.f32.mrf.mxu0
        %v3863 = vadd.f32 %v3726, %v3862
        %v3864 = vpop.f32.mrf.mxu0
        %v3865 = vadd.f32 %v3728, %v3864
        %3866 = vmatmul.bf16.gmra.mxu0 %v1590
        %v3867 = vpop.f32.mrf.mxu0
        %v3868 = vpop.f32.mrf.mxu0
        %3869 = vmatmul.bf16.gmra.mxu0 %v1623
        %v3870 = vpop.f32.mrf.mxu0
        %v3871 = vadd.f32 %v3734, %v3870
        %v3872 = vpop.f32.mrf.mxu0
        %v3873 = vadd.f32 %v3736, %v3872
        %3874 = vmatmul.bf16.gmra.mxu0 %v1650
        %v3875 = vpop.f32.mrf.mxu0
        %v3876 = vpop.f32.mrf.mxu0
        %3877 = vmatmul.bf16.gmra.mxu0 %v1677
        %v3878 = vpop.f32.mrf.mxu0
        %v3879 = vadd.f32 %v3742, %v3878
        %v3880 = vpop.f32.mrf.mxu0
        %v3881 = vadd.f32 %v3744, %v3880
        %3882 = vmatmul.bf16.gmra.mxu0 %v1704
        %v3883 = vpop.f32.mrf.mxu0
        %v3884 = vpop.f32.mrf.mxu0
        %3885 = vmatmul.bf16.gmra.mxu0 %v1731
        %v3886 = vpop.f32.mrf.mxu0
        %v3887 = vadd.f32 %v3750, %v3886
        %v3888 = vpop.f32.mrf.mxu0
        %v3889 = vadd.f32 %v3752, %v3888
        %3890 = vmatmul.bf16.gmra.mxu0 %v1758
        %v3891 = vpop.f32.mrf.mxu0
        %v3892 = vpop.f32.mrf.mxu0
        %3893 = vmatmul.bf16.gmra.mxu0 %v1785
        %v3894 = vpop.f32.mrf.mxu0
        %v3895 = vadd.f32 %v3758, %v3894
        %v3896 = vpop.f32.mrf.mxu0
        %v3897 = vadd.f32 %v3760, %v3896
        %3898 = vmatmul.bf16.gmra.mxu0 %v1812
        %v3899 = vpop.f32.mrf.mxu0
        %v3900 = vpop.f32.mrf.mxu0
        %3901 = vmatmul.bf16.gmra.mxu0 %v1839
        %v3902 = vpop.f32.mrf.mxu0
        %v3903 = vadd.f32 %v3766, %v3902
        %v3904 = vpop.f32.mrf.mxu0
        %v3905 = vadd.f32 %v3768, %v3904
        %3906 = vmatmul.bf16.gmra.mxu0 %v1866
        %v3907 = vpop.f32.mrf.mxu0
        %v3908 = vpop.f32.mrf.mxu0
        %3909 = vmatmul.bf16.gmra.mxu0 %v1893
        %v3910 = vpop.f32.mrf.mxu0
        %v3911 = vadd.f32 %v3774, %v3910
        %v3912 = vpop.f32.mrf.mxu0
        %v3913 = vadd.f32 %v3776, %v3912
        %3914 = vmatmul.bf16.gmra.mxu0 %v1920
        %v3915 = vpop.f32.mrf.mxu0
        %v3916 = vpop.f32.mrf.mxu0
        %3917 = vmatmul.bf16.gmra.mxu0 %v1947
        %v3918 = vpop.f32.mrf.mxu0
        %v3919 = vadd.f32 %v3782, %v3918
        %v3920 = vpop.f32.mrf.mxu0
        %v3921 = vadd.f32 %v3784, %v3920
        %3922 = vmatmul.bf16.gmra.mxu0 %v1974
        %v3923 = vpop.f32.mrf.mxu0
        %v3924 = vpop.f32.mrf.mxu0
        %3925 = vmatmul.bf16.gmra.mxu0 %v2001
        %v3926 = vpop.f32.mrf.mxu0
        %v3927 = vadd.f32 %v3790, %v3926
        %v3928 = vpop.f32.mrf.mxu0
        %v3929 = vadd.f32 %v3792, %v3928
        %3930 = vmatmul.bf16.gmra.mxu0 %v2028
        %v3931 = vpop.f32.mrf.mxu0
        %v3932 = vpop.f32.mrf.mxu0
        %3933 = vmatmul.bf16.gmra.mxu0 %v2055
        %v3934 = vpop.f32.mrf.mxu0
        %v3935 = vadd.f32 %v3798, %v3934
        %v3936 = vpop.f32.mrf.mxu0
        %v3937 = vadd.f32 %v3800, %v3936
        %3938 = vmatmul.bf16.gmra.mxu0 %v2082
        %v3939 = vpop.f32.mrf.mxu0
        %v3940 = vpop.f32.mrf.mxu0
        %3941 = vmatmul.bf16.gmra.mxu0 %v2109
        %v3942 = vpop.f32.mrf.mxu0
        %v3943 = vadd.f32 %v3806, %v3942
        %v3944 = vpop.f32.mrf.mxu0
        %v3945 = vadd.f32 %v3808, %v3944
        %3946 = vmatmul.bf16.gmra.mxu0 %v2136
        %v3947 = vpop.f32.mrf.mxu0
        %v3948 = vpop.f32.mrf.mxu0
        %3949 = vmatmul.bf16.gmra.mxu0 %v2163
        %v3950 = vpop.f32.mrf.mxu0
        %v3951 = vadd.f32 %v3814, %v3950
        %v3952 = vpop.f32.mrf.mxu0
        %v3953 = vadd.f32 %v3816, %v3952
        %3954 = vmatmul.bf16.gmra.mxu0 %v2190
        %v3955 = vpop.f32.mrf.mxu0
        %v3956 = vpop.f32.mrf.mxu0
        %3957 = vmatmul.bf16.gmra.mxu0 %v2217
        %v3958 = vpop.f32.mrf.mxu0
        %v3959 = vadd.f32 %v3822, %v3958
        %v3960 = vpop.f32.mrf.mxu0
        %v3961 = vadd.f32 %v3824, %v3960
        %3962 = vmatmul.bf16.gmra.mxu0 %v2244
        %v3963 = vpop.f32.mrf.mxu0
        %v3964 = vpop.f32.mrf.mxu0
        %3965 = vmatmul.bf16.gmra.mxu0 %v2271
        %v3966 = vpop.f32.mrf.mxu0
        %v3967 = vadd.f32 %v3830, %v3966
        %v3968 = vpop.f32.mrf.mxu0
        %v3969 = vadd.f32 %v3832, %v3968
        %3970 = vmatmul.bf16.gmra.mxu0 %v2298
        %v3971 = vpop.f32.mrf.mxu0
        %v3972 = vpop.f32.mrf.mxu0
        %3973 = vmatmul.bf16.gmra.mxu0 %v2325
        %v3974 = vpop.f32.mrf.mxu0
        %v3975 = vadd.f32 %v3838, %v3974
        %v3976 = vpop.f32.mrf.mxu0
        %v3977 = vadd.f32 %v3840, %v3976
        %3978 = vmatmul.bf16.gmra.mxu0 %v2352
        %v3979 = vpop.f32.mrf.mxu0
        %v3980 = vpop.f32.mrf.mxu0
        %3981 = vmatmul.bf16.gmra.mxu0 %v2379
        %v3982 = vpop.f32.mrf.mxu0
        %v3983 = vadd.f32 %v3846, %v3982
        %v3984 = vpop.f32.mrf.mxu0
        %v3985 = vadd.f32 %v3848, %v3984
        %3986 = vmatmul.bf16.gmra.mxu0 %v2460
        %v3987 = vpop.f32.mrf.mxu0
        %v3988 = vpop.f32.mrf.mxu0
        %3989 = vdwg.mxu0
        %3990 = vmatpush.bf16.msra.mxu0 %v2950
        %3991 = vmatpush.bf16.msra.mxu0 %v2949
        %3992 = vmatpush.bf16.msra.mxu0 %v2948
        %3993 = vmatpush.bf16.msra.mxu0 %v2947
        %3994 = vmatpush.bf16.msra.mxu0 %v2946
        %3995 = vmatpush.bf16.msra.mxu0 %v2945
        %3996 = vmatpush.bf16.msra.mxu0 %v2944
        %3997 = vmatpush.bf16.msra.mxu0 %v2943
        %3998 = vmatmul.bf16.gmra.mxu0 %v1510
        %v3999 = vpop.f32.mrf.mxu0
        %v4000 = vadd.f32 %v3863, %v3999
        %v4001 = vpop.f32.mrf.mxu0
        %v4002 = vadd.f32 %v3865, %v4001
        %4003 = vmatmul.bf16.gmra.mxu0 %v1599
        %v4004 = vpop.f32.mrf.mxu0
        %v4005 = vpop.f32.mrf.mxu0
        %4006 = vmatmul.bf16.gmra.mxu0 %v1632
        %v4007 = vpop.f32.mrf.mxu0
        %v4008 = vadd.f32 %v3871, %v4007
        %v4009 = vpop.f32.mrf.mxu0
        %v4010 = vadd.f32 %v3873, %v4009
        %4011 = vmatmul.bf16.gmra.mxu0 %v1659
        %v4012 = vpop.f32.mrf.mxu0
        %v4013 = vpop.f32.mrf.mxu0
        %4014 = vmatmul.bf16.gmra.mxu0 %v1686
        %v4015 = vpop.f32.mrf.mxu0
        %v4016 = vadd.f32 %v3879, %v4015
        %v4017 = vpop.f32.mrf.mxu0
        %v4018 = vadd.f32 %v3881, %v4017
        %4019 = vmatmul.bf16.gmra.mxu0 %v1713
        %v4020 = vpop.f32.mrf.mxu0
        %v4021 = vpop.f32.mrf.mxu0
        %4022 = vmatmul.bf16.gmra.mxu0 %v1740
        %v4023 = vpop.f32.mrf.mxu0
        %v4024 = vadd.f32 %v3887, %v4023
        %v4025 = vpop.f32.mrf.mxu0
        %v4026 = vadd.f32 %v3889, %v4025
        %4027 = vmatmul.bf16.gmra.mxu0 %v1767
        %v4028 = vpop.f32.mrf.mxu0
        %v4029 = vpop.f32.mrf.mxu0
        %4030 = vmatmul.bf16.gmra.mxu0 %v1794
        %v4031 = vpop.f32.mrf.mxu0
        %v4032 = vadd.f32 %v3895, %v4031
        %v4033 = vpop.f32.mrf.mxu0
        %v4034 = vadd.f32 %v3897, %v4033
        %4035 = vmatmul.bf16.gmra.mxu0 %v1821
        %v4036 = vpop.f32.mrf.mxu0
        %v4037 = vpop.f32.mrf.mxu0
        %4038 = vmatmul.bf16.gmra.mxu0 %v1848
        %v4039 = vpop.f32.mrf.mxu0
        %v4040 = vadd.f32 %v3903, %v4039
        %v4041 = vpop.f32.mrf.mxu0
        %v4042 = vadd.f32 %v3905, %v4041
        %4043 = vmatmul.bf16.gmra.mxu0 %v1875
        %v4044 = vpop.f32.mrf.mxu0
        %v4045 = vpop.f32.mrf.mxu0
        %4046 = vmatmul.bf16.gmra.mxu0 %v1902
        %v4047 = vpop.f32.mrf.mxu0
        %v4048 = vadd.f32 %v3911, %v4047
        %v4049 = vpop.f32.mrf.mxu0
        %v4050 = vadd.f32 %v3913, %v4049
        %4051 = vmatmul.bf16.gmra.mxu0 %v1929
        %v4052 = vpop.f32.mrf.mxu0
        %v4053 = vpop.f32.mrf.mxu0
        %4054 = vmatmul.bf16.gmra.mxu0 %v1956
        %v4055 = vpop.f32.mrf.mxu0
        %v4056 = vadd.f32 %v3919, %v4055
        %v4057 = vpop.f32.mrf.mxu0
        %v4058 = vadd.f32 %v3921, %v4057
        %4059 = vmatmul.bf16.gmra.mxu0 %v1983
        %v4060 = vpop.f32.mrf.mxu0
        %v4061 = vpop.f32.mrf.mxu0
        %4062 = vmatmul.bf16.gmra.mxu0 %v2010
        %v4063 = vpop.f32.mrf.mxu0
        %v4064 = vadd.f32 %v3927, %v4063
        %v4065 = vpop.f32.mrf.mxu0
        %v4066 = vadd.f32 %v3929, %v4065
        %4067 = vmatmul.bf16.gmra.mxu0 %v2037
        %v4068 = vpop.f32.mrf.mxu0
        %v4069 = vpop.f32.mrf.mxu0
        %4070 = vmatmul.bf16.gmra.mxu0 %v2064
        %v4071 = vpop.f32.mrf.mxu0
        %v4072 = vadd.f32 %v3935, %v4071
        %v4073 = vpop.f32.mrf.mxu0
        %v4074 = vadd.f32 %v3937, %v4073
        %4075 = vmatmul.bf16.gmra.mxu0 %v2091
        %v4076 = vpop.f32.mrf.mxu0
        %v4077 = vpop.f32.mrf.mxu0
        %4078 = vmatmul.bf16.gmra.mxu0 %v2118
        %v4079 = vpop.f32.mrf.mxu0
        %v4080 = vadd.f32 %v3943, %v4079
        %v4081 = vpop.f32.mrf.mxu0
        %v4082 = vadd.f32 %v3945, %v4081
        %4083 = vmatmul.bf16.gmra.mxu0 %v2145
        %v4084 = vpop.f32.mrf.mxu0
        %v4085 = vpop.f32.mrf.mxu0
        %4086 = vmatmul.bf16.gmra.mxu0 %v2172
        %v4087 = vpop.f32.mrf.mxu0
        %v4088 = vadd.f32 %v3951, %v4087
        %v4089 = vpop.f32.mrf.mxu0
        %v4090 = vadd.f32 %v3953, %v4089
        %4091 = vmatmul.bf16.gmra.mxu0 %v2199
        %v4092 = vpop.f32.mrf.mxu0
        %v4093 = vpop.f32.mrf.mxu0
        %4094 = vmatmul.bf16.gmra.mxu0 %v2226
        %v4095 = vpop.f32.mrf.mxu0
        %v4096 = vadd.f32 %v3959, %v4095
        %v4097 = vpop.f32.mrf.mxu0
        %v4098 = vadd.f32 %v3961, %v4097
        %4099 = vmatmul.bf16.gmra.mxu0 %v2253
        %v4100 = vpop.f32.mrf.mxu0
        %v4101 = vpop.f32.mrf.mxu0
        %4102 = vmatmul.bf16.gmra.mxu0 %v2280
        %v4103 = vpop.f32.mrf.mxu0
        %v4104 = vadd.f32 %v3967, %v4103
        %v4105 = vpop.f32.mrf.mxu0
        %v4106 = vadd.f32 %v3969, %v4105
        %4107 = vmatmul.bf16.gmra.mxu0 %v2307
        %v4108 = vpop.f32.mrf.mxu0
        %v4109 = vpop.f32.mrf.mxu0
        %4110 = vmatmul.bf16.gmra.mxu0 %v2334
        %v4111 = vpop.f32.mrf.mxu0
        %v4112 = vadd.f32 %v3975, %v4111
        %v4113 = vpop.f32.mrf.mxu0
        %v4114 = vadd.f32 %v3977, %v4113
        %4115 = vmatmul.bf16.gmra.mxu0 %v2361
        %v4116 = vpop.f32.mrf.mxu0
        %v4117 = vpop.f32.mrf.mxu0
        %4118 = vmatmul.bf16.gmra.mxu0 %v2388
        %v4119 = vpop.f32.mrf.mxu0
        %v4120 = vadd.f32 %v3983, %v4119
        %v4121 = vpop.f32.mrf.mxu0
        %v4122 = vadd.f32 %v3985, %v4121
        %4123 = vmatmul.bf16.gmra.mxu0 %v2469
        %v4124 = vpop.f32.mrf.mxu0
        %v4125 = vpop.f32.mrf.mxu0
        %4126 = vdwg.mxu0
        %4127 = vmatpush.bf16.msra.mxu0 %v2958
        %4128 = vmatpush.bf16.msra.mxu0 %v2957
        %4129 = vmatpush.bf16.msra.mxu0 %v2956
        %4130 = vmatpush.bf16.msra.mxu0 %v2955
        %4131 = vmatpush.bf16.msra.mxu0 %v2954
        %4132 = vmatpush.bf16.msra.mxu0 %v2953
        %4133 = vmatpush.bf16.msra.mxu0 %v2952
        %4134 = vmatpush.bf16.msra.mxu0 %v2951
        %4135 = vmatmul.bf16.gmra.mxu0 %v1527
        %v4136 = vpop.f32.mrf.mxu0
        %v4137 = vadd.f32 %v4000, %v4136
        %v4138 = vpop.f32.mrf.mxu0
        %v4139 = vadd.f32 %v4002, %v4138
        %4140 = vmatmul.bf16.gmra.mxu0 %v1608
        %v4141 = vpop.f32.mrf.mxu0
        %v4142 = vpop.f32.mrf.mxu0
        %4143 = vmatmul.bf16.gmra.mxu0 %v1641
        %v4144 = vpop.f32.mrf.mxu0
        %v4145 = vadd.f32 %v4008, %v4144
        %v4146 = vpop.f32.mrf.mxu0
        %v4147 = vadd.f32 %v4010, %v4146
        %4148 = vmatmul.bf16.gmra.mxu0 %v1668
        %v4149 = vpop.f32.mrf.mxu0
        %v4150 = vpop.f32.mrf.mxu0
        %4151 = vmatmul.bf16.gmra.mxu0 %v1695
        %v4152 = vpop.f32.mrf.mxu0
        %v4153 = vadd.f32 %v4016, %v4152
        %v4154 = vpop.f32.mrf.mxu0
        %v4155 = vadd.f32 %v4018, %v4154
        %4156 = vmatmul.bf16.gmra.mxu0 %v1722
        %v4157 = vpop.f32.mrf.mxu0
        %v4158 = vpop.f32.mrf.mxu0
        %4159 = vmatmul.bf16.gmra.mxu0 %v1749
        %v4160 = vpop.f32.mrf.mxu0
        %v4161 = vadd.f32 %v4024, %v4160
        %v4162 = vpop.f32.mrf.mxu0
        %v4163 = vadd.f32 %v4026, %v4162
        %4164 = vmatmul.bf16.gmra.mxu0 %v1776
        %v4165 = vpop.f32.mrf.mxu0
        %v4166 = vpop.f32.mrf.mxu0
        %4167 = vmatmul.bf16.gmra.mxu0 %v1803
        %v4168 = vpop.f32.mrf.mxu0
        %v4169 = vadd.f32 %v4032, %v4168
        %v4170 = vpop.f32.mrf.mxu0
        %v4171 = vadd.f32 %v4034, %v4170
        %4172 = vmatmul.bf16.gmra.mxu0 %v1830
        %v4173 = vpop.f32.mrf.mxu0
        %v4174 = vpop.f32.mrf.mxu0
        %4175 = vmatmul.bf16.gmra.mxu0 %v1857
        %v4176 = vpop.f32.mrf.mxu0
        %v4177 = vadd.f32 %v4040, %v4176
        %v4178 = vpop.f32.mrf.mxu0
        %v4179 = vadd.f32 %v4042, %v4178
        %4180 = vmatmul.bf16.gmra.mxu0 %v1884
        %v4181 = vpop.f32.mrf.mxu0
        %v4182 = vpop.f32.mrf.mxu0
        %4183 = vmatmul.bf16.gmra.mxu0 %v1911
        %v4184 = vpop.f32.mrf.mxu0
        %v4185 = vadd.f32 %v4048, %v4184
        %v4186 = vpop.f32.mrf.mxu0
        %v4187 = vadd.f32 %v4050, %v4186
        %4188 = vmatmul.bf16.gmra.mxu0 %v1938
        %v4189 = vpop.f32.mrf.mxu0
        %v4190 = vpop.f32.mrf.mxu0
        %4191 = vmatmul.bf16.gmra.mxu0 %v1965
        %v4192 = vpop.f32.mrf.mxu0
        %v4193 = vadd.f32 %v4056, %v4192
        %v4194 = vpop.f32.mrf.mxu0
        %v4195 = vadd.f32 %v4058, %v4194
        %4196 = vmatmul.bf16.gmra.mxu0 %v1992
        %v4197 = vpop.f32.mrf.mxu0
        %v4198 = vpop.f32.mrf.mxu0
        %4199 = vmatmul.bf16.gmra.mxu0 %v2019
        %v4200 = vpop.f32.mrf.mxu0
        %v4201 = vadd.f32 %v4064, %v4200
        %v4202 = vpop.f32.mrf.mxu0
        %v4203 = vadd.f32 %v4066, %v4202
        %4204 = vmatmul.bf16.gmra.mxu0 %v2046
        %v4205 = vpop.f32.mrf.mxu0
        %v4206 = vpop.f32.mrf.mxu0
        %4207 = vmatmul.bf16.gmra.mxu0 %v2073
        %v4208 = vpop.f32.mrf.mxu0
        %v4209 = vadd.f32 %v4072, %v4208
        %v4210 = vpop.f32.mrf.mxu0
        %v4211 = vadd.f32 %v4074, %v4210
        %4212 = vmatmul.bf16.gmra.mxu0 %v2100
        %v4213 = vpop.f32.mrf.mxu0
        %v4214 = vpop.f32.mrf.mxu0
        %4215 = vmatmul.bf16.gmra.mxu0 %v2127
        %v4216 = vpop.f32.mrf.mxu0
        %v4217 = vadd.f32 %v4080, %v4216
        %v4218 = vpop.f32.mrf.mxu0
        %v4219 = vadd.f32 %v4082, %v4218
        %4220 = vmatmul.bf16.gmra.mxu0 %v2154
        %v4221 = vpop.f32.mrf.mxu0
        %v4222 = vpop.f32.mrf.mxu0
        %4223 = vmatmul.bf16.gmra.mxu0 %v2181
        %v4224 = vpop.f32.mrf.mxu0
        %v4225 = vadd.f32 %v4088, %v4224
        %v4226 = vpop.f32.mrf.mxu0
        %v4227 = vadd.f32 %v4090, %v4226
        %4228 = vmatmul.bf16.gmra.mxu0 %v2208
        %v4229 = vpop.f32.mrf.mxu0
        %v4230 = vpop.f32.mrf.mxu0
        %4231 = vmatmul.bf16.gmra.mxu0 %v2235
        %v4232 = vpop.f32.mrf.mxu0
        %v4233 = vadd.f32 %v4096, %v4232
        %v4234 = vpop.f32.mrf.mxu0
        %v4235 = vadd.f32 %v4098, %v4234
        %4236 = vmatmul.bf16.gmra.mxu0 %v2262
        %v4237 = vpop.f32.mrf.mxu0
        %v4238 = vpop.f32.mrf.mxu0
        %4239 = vmatmul.bf16.gmra.mxu0 %v2289
        %v4240 = vpop.f32.mrf.mxu0
        %v4241 = vadd.f32 %v4104, %v4240
        %v4242 = vpop.f32.mrf.mxu0
        %v4243 = vadd.f32 %v4106, %v4242
        %4244 = vmatmul.bf16.gmra.mxu0 %v2316
        %v4245 = vpop.f32.mrf.mxu0
        %v4246 = vpop.f32.mrf.mxu0
        %4247 = vmatmul.bf16.gmra.mxu0 %v2343
        %v4248 = vpop.f32.mrf.mxu0
        %v4249 = vadd.f32 %v4112, %v4248
        %v4250 = vpop.f32.mrf.mxu0
        %v4251 = vadd.f32 %v4114, %v4250
        %4252 = vmatmul.bf16.gmra.mxu0 %v2370
        %v4253 = vpop.f32.mrf.mxu0
        %v4254 = vpop.f32.mrf.mxu0
        %4255 = vmatmul.bf16.gmra.mxu0 %v2397
        %v4256 = vpop.f32.mrf.mxu0
        %v4257 = vadd.f32 %v4120, %v4256
        %v4258 = vpop.f32.mrf.mxu0
        %v4259 = vadd.f32 %v4122, %v4258
        %4260 = vmatmul.bf16.gmra.mxu0 %v2478
        %v4261 = vpop.f32.mrf.mxu0
        %v4262 = vpop.f32.mrf.mxu0
        %4263 = vdwg.mxu0
        %v4264 = vmax.f32 %v4137, 0.0
        %v4265 = vmax.f32 %v4139, 0.0
        %v4266 = vmax.f32 %v4145, 0.0
        %v4267 = vmax.f32 %v4147, 0.0
        %v4268 = vmax.f32 %v4153, 0.0
        %v4269 = vmax.f32 %v4155, 0.0
        %v4270 = vmax.f32 %v4161, 0.0
        %v4271 = vmax.f32 %v4163, 0.0
        %v4272 = vmax.f32 %v4169, 0.0
        %v4273 = vmax.f32 %v4171, 0.0
        %v4274 = vmax.f32 %v4177, 0.0
        %v4275 = vmax.f32 %v4179, 0.0
        %v4276 = vmax.f32 %v4185, 0.0
        %v4277 = vmax.f32 %v4187, 0.0
        %v4278 = vmax.f32 %v4193, 0.0
        %v4279 = vmax.f32 %v4195, 0.0
        %v4280 = vmax.f32 %v4201, 0.0
        %v4281 = vmax.f32 %v4203, 0.0
        %v4282 = vmax.f32 %v4209, 0.0
        %v4283 = vmax.f32 %v4211, 0.0
        %v4284 = vmax.f32 %v4217, 0.0
        %v4285 = vmax.f32 %v4219, 0.0
        %v4286 = vmax.f32 %v4225, 0.0
        %v4287 = vmax.f32 %v4227, 0.0
        %v4288 = vmax.f32 %v4233, 0.0
        %v4289 = vmax.f32 %v4235, 0.0
        %v4290 = vmax.f32 %v4241, 0.0
        %v4291 = vmax.f32 %v4243, 0.0
        %v4292 = vmax.f32 %v4249, 0.0
        %v4293 = vmax.f32 %v4251, 0.0
        %v4294 = vmax.f32 %v4257, 0.0
        %v4295 = vmax.f32 %v4259, 0.0
        %v4296 = vpack.c.bf16 %v4265, %v4264
        %v4297 = vpack.c.bf16 %v4267, %v4266
        %v4298 = vpack.c.bf16 %v4269, %v4268
        %v4299 = vpack.c.bf16 %v4271, %v4270
        %v4300 = vpack.c.bf16 %v4273, %v4272
        %v4301 = vpack.c.bf16 %v4275, %v4274
        %v4302 = vpack.c.bf16 %v4277, %v4276
        %v4303 = vpack.c.bf16 %v4279, %v4278
        %v4304 = vpack.c.bf16 %v4281, %v4280
        %v4305 = vpack.c.bf16 %v4283, %v4282
        %v4306 = vpack.c.bf16 %v4285, %v4284
        %v4307 = vpack.c.bf16 %v4287, %v4286
        %v4308 = vpack.c.bf16 %v4289, %v4288
        %v4309 = vpack.c.bf16 %v4291, %v4290
        %v4310 = vpack.c.bf16 %v4293, %v4292
        %v4311 = vpack.c.bf16 %v4295, %v4294
        %v4312 = vld [vmem:[%s2] sm:$0xf]
        %v4313 = vld [vmem:[%s2 + $0x4] sm:$0xf]
        %v4314 = vld [vmem:[%s2 + $0x8] sm:$0xf]
        %v4315 = vld [vmem:[%s2 + $0xc] sm:$0xf]
        %v4316 = vld [vmem:[%s2 + $0x10] sm:$0xf]
        %v4317 = vld [vmem:[%s2 + $0x14] sm:$0xf]
        %v4318 = vld [vmem:[%s2 + $0x18] sm:$0xf]
        %v4319 = vld [vmem:[%s2 + $0x1c] sm:$0xf]
        %v4320 = vld [vmem:[%s2 + $0x20] sm:$0xf]
        %v4321 = vld [vmem:[%s2 + $0x24] sm:$0xf]
        %v4322 = vld [vmem:[%s2 + $0x28] sm:$0xf]
        %v4323 = vld [vmem:[%s2 + $0x2c] sm:$0xf]
        %v4324 = vld [vmem:[%s2 + $0x30] sm:$0xf]
        %v4325 = vld [vmem:[%s2 + $0x34] sm:$0xf]
        %v4326 = vld [vmem:[%s2 + $0x38] sm:$0xf]
        %v4327 = vld [vmem:[%s2 + $0x3c] sm:$0xf]
        %v4344 = vunpack.c.l.b16 %v4312
        %v4345 = vunpack.c.l.b16 %v4313
        %v4346 = vunpack.c.l.b16 %v4314
        %v4347 = vunpack.c.l.b16 %v4315
        %v4348 = vunpack.c.l.b16 %v4316
        %v4349 = vunpack.c.l.b16 %v4317
        %v4350 = vunpack.c.l.b16 %v4318
        %v4351 = vunpack.c.l.b16 %v4319
        %v4352 = vunpack.c.l.b16 %v4320
        %v4353 = vunpack.c.l.b16 %v4321
        %v4354 = vunpack.c.l.b16 %v4322
        %v4355 = vunpack.c.l.b16 %v4323
        %v4356 = vunpack.c.l.b16 %v4324
        %v4357 = vunpack.c.l.b16 %v4325
        %v4358 = vunpack.c.l.b16 %v4326
        %v4359 = vunpack.c.l.b16 %v4327
        %v4360 = vpack.c.b16 %v4345, %v4344
        %v4361 = vpack.c.b16 %v4347, %v4346
        %v4362 = vpack.c.b16 %v4349, %v4348
        %v4363 = vpack.c.b16 %v4351, %v4350
        %v4364 = vpack.c.b16 %v4353, %v4352
        %v4365 = vpack.c.b16 %v4355, %v4354
        %v4366 = vpack.c.b16 %v4357, %v4356
        %v4367 = vpack.c.b16 %v4359, %v4358
        %4376 = vmatpush.bf16.msra.mxu0 %v4367
        %4377 = vmatpush.bf16.msra.mxu0 %v4366
        %4378 = vmatpush.bf16.msra.mxu0 %v4365
        %4379 = vmatpush.bf16.msra.mxu0 %v4364
        %4380 = vmatpush.bf16.msra.mxu0 %v4363
        %4381 = vmatpush.bf16.msra.mxu0 %v4362
        %4382 = vmatpush.bf16.msra.mxu0 %v4361
        %4383 = vmatpush.bf16.msra.mxu0 %v4360
        %4384 = vmatmul.bf16.gmra.mxu0 %v4296
        %v4385 = vpop.f32.mrf.mxu0
        %v4386 = vadd.f32 0.0, %v4385
        %v4387 = vpop.f32.mrf.mxu0
        %v4388 = vadd.f32 0.0, %v4387
        %4389 = vmatmul.bf16.gmra.mxu0 %v4297
        %v4390 = vpop.f32.mrf.mxu0
        %v4391 = vadd.f32 0.0, %v4390
        %v4392 = vpop.f32.mrf.mxu0
        %v4393 = vadd.f32 0.0, %v4392
        %4394 = vmatmul.bf16.gmra.mxu0 %v4298
        %v4395 = vpop.f32.mrf.mxu0
        %v4396 = vadd.f32 0.0, %v4395
        %v4397 = vpop.f32.mrf.mxu0
        %v4398 = vadd.f32 0.0, %v4397
        %4399 = vmatmul.bf16.gmra.mxu0 %v4299
        %v4400 = vpop.f32.mrf.mxu0
        %v4401 = vadd.f32 0.0, %v4400
        %v4402 = vpop.f32.mrf.mxu0
        %v4403 = vadd.f32 0.0, %v4402
        %4404 = vmatmul.bf16.gmra.mxu0 %v4300
        %v4405 = vpop.f32.mrf.mxu0
        %v4406 = vadd.f32 0.0, %v4405
        %v4407 = vpop.f32.mrf.mxu0
        %v4408 = vadd.f32 0.0, %v4407
        %4409 = vmatmul.bf16.gmra.mxu0 %v4301
        %v4410 = vpop.f32.mrf.mxu0
        %v4411 = vadd.f32 0.0, %v4410
        %v4412 = vpop.f32.mrf.mxu0
        %v4413 = vadd.f32 0.0, %v4412
        %4414 = vmatmul.bf16.gmra.mxu0 %v4302
        %v4415 = vpop.f32.mrf.mxu0
        %v4416 = vadd.f32 0.0, %v4415
        %v4417 = vpop.f32.mrf.mxu0
        %v4418 = vadd.f32 0.0, %v4417
        %4419 = vmatmul.bf16.gmra.mxu0 %v4303
        %v4420 = vpop.f32.mrf.mxu0
        %v4421 = vadd.f32 0.0, %v4420
        %v4422 = vpop.f32.mrf.mxu0
        %v4423 = vadd.f32 0.0, %v4422
        %4424 = vmatmul.bf16.gmra.mxu0 %v4304
        %v4425 = vpop.f32.mrf.mxu0
        %v4426 = vadd.f32 0.0, %v4425
        %v4427 = vpop.f32.mrf.mxu0
        %v4428 = vadd.f32 0.0, %v4427
        %4429 = vmatmul.bf16.gmra.mxu0 %v4305
        %v4430 = vpop.f32.mrf.mxu0
        %v4431 = vadd.f32 0.0, %v4430
        %v4432 = vpop.f32.mrf.mxu0
        %v4433 = vadd.f32 0.0, %v4432
        %4434 = vmatmul.bf16.gmra.mxu0 %v4306
        %v4435 = vpop.f32.mrf.mxu0
        %v4436 = vadd.f32 0.0, %v4435
        %v4437 = vpop.f32.mrf.mxu0
        %v4438 = vadd.f32 0.0, %v4437
        %4439 = vmatmul.bf16.gmra.mxu0 %v4307
        %v4440 = vpop.f32.mrf.mxu0
        %v4441 = vadd.f32 0.0, %v4440
        %v4442 = vpop.f32.mrf.mxu0
        %v4443 = vadd.f32 0.0, %v4442
        %4444 = vmatmul.bf16.gmra.mxu0 %v4308
        %v4445 = vpop.f32.mrf.mxu0
        %v4446 = vadd.f32 0.0, %v4445
        %v4447 = vpop.f32.mrf.mxu0
        %v4448 = vadd.f32 0.0, %v4447
        %4449 = vmatmul.bf16.gmra.mxu0 %v4309
        %v4450 = vpop.f32.mrf.mxu0
        %v4451 = vadd.f32 0.0, %v4450
        %v4452 = vpop.f32.mrf.mxu0
        %v4453 = vadd.f32 0.0, %v4452
        %4454 = vmatmul.bf16.gmra.mxu0 %v4310
        %v4455 = vpop.f32.mrf.mxu0
        %v4456 = vadd.f32 0.0, %v4455
        %v4457 = vpop.f32.mrf.mxu0
        %v4458 = vadd.f32 0.0, %v4457
        %4459 = vmatmul.bf16.gmra.mxu0 %v4311
        %v4460 = vpop.f32.mrf.mxu0
        %v4461 = vadd.f32 0.0, %v4460
        %v4462 = vpop.f32.mrf.mxu0
        %v4463 = vadd.f32 0.0, %v4462
        %4464 = vdwg.mxu0
        %v4465 = vadd.f32 %v203, %v4386
        %v4466 = vadd.f32 %v204, %v4388
        %v4467 = vadd.f32 %v205, %v4391
        %v4468 = vadd.f32 %v206, %v4393
        %v4469 = vadd.f32 %v207, %v4396
        %v4470 = vadd.f32 %v208, %v4398
        %v4471 = vadd.f32 %v209, %v4401
        %v4472 = vadd.f32 %v210, %v4403
        %v4473 = vadd.f32 %v211, %v4406
        %v4474 = vadd.f32 %v212, %v4408
        %v4475 = vadd.f32 %v213, %v4411
        %v4476 = vadd.f32 %v214, %v4413
        %v4477 = vadd.f32 %v215, %v4416
        %v4478 = vadd.f32 %v216, %v4418
        %v4479 = vadd.f32 %v217, %v4421
        %v4480 = vadd.f32 %v218, %v4423
        %v4481 = vadd.f32 %v219, %v4426
        %v4482 = vadd.f32 %v220, %v4428
        %v4483 = vadd.f32 %v221, %v4431
        %v4484 = vadd.f32 %v222, %v4433
        %v4485 = vadd.f32 %v223, %v4436
        %v4486 = vadd.f32 %v224, %v4438
        %v4487 = vadd.f32 %v225, %v4441
        %v4488 = vadd.f32 %v226, %v4443
        %v4489 = vadd.f32 %v227, %v4446
        %v4490 = vadd.f32 %v228, %v4448
        %v4491 = vadd.f32 %v229, %v4451
        %v4492 = vadd.f32 %v230, %v4453
        %v4493 = vadd.f32 %v231, %v4456
        %v4494 = vadd.f32 %v232, %v4458
        %v4495 = vadd.f32 %v233, %v4461
        %v4496 = vadd.f32 %v234, %v4463
        %4497 = vst [vmem:[%s163] sm:$0xff] %v4465
        %4498 = vst [vmem:[%s163 + $0x8] sm:$0xff] %v4466
        %4499 = vst [vmem:[%s163 + $0x10] sm:$0xff] %v4467
        %4500 = vst [vmem:[%s163 + $0x18] sm:$0xff] %v4468
        %4501 = vst [vmem:[%s163 + $0x20] sm:$0xff] %v4469
        %4502 = vst [vmem:[%s163 + $0x28] sm:$0xff] %v4470
        %4503 = vst [vmem:[%s163 + $0x30] sm:$0xff] %v4471
        %4504 = vst [vmem:[%s163 + $0x38] sm:$0xff] %v4472
        %4505 = vst [vmem:[%s163 + $0x40] sm:$0xff] %v4473
        %4506 = vst [vmem:[%s163 + $0x48] sm:$0xff] %v4474
        %4507 = vst [vmem:[%s163 + $0x50] sm:$0xff] %v4475
        %4508 = vst [vmem:[%s163 + $0x58] sm:$0xff] %v4476
        %4509 = vst [vmem:[%s163 + $0x60] sm:$0xff] %v4477
        %4510 = vst [vmem:[%s163 + $0x68] sm:$0xff] %v4478
        %4511 = vst [vmem:[%s163 + $0x70] sm:$0xff] %v4479
        %4512 = vst [vmem:[%s163 + $0x78] sm:$0xff] %v4480
        %4513 = vst [vmem:[%s163 + $0x80] sm:$0xff] %v4481
        %4514 = vst [vmem:[%s163 + $0x88] sm:$0xff] %v4482
        %4515 = vst [vmem:[%s163 + $0x90] sm:$0xff] %v4483
        %4516 = vst [vmem:[%s163 + $0x98] sm:$0xff] %v4484
        %4517 = vst [vmem:[%s163 + $0xa0] sm:$0xff] %v4485
        %4518 = vst [vmem:[%s163 + $0xa8] sm:$0xff] %v4486
        %4519 = vst [vmem:[%s163 + $0xb0] sm:$0xff] %v4487
        %4520 = vst [vmem:[%s163 + $0xb8] sm:$0xff] %v4488
        %4521 = vst [vmem:[%s163 + $0xc0] sm:$0xff] %v4489
        %4522 = vst [vmem:[%s163 + $0xc8] sm:$0xff] %v4490
        %4523 = vst [vmem:[%s163 + $0xd0] sm:$0xff] %v4491
        %4524 = vst [vmem:[%s163 + $0xd8] sm:$0xff] %v4492
        %4525 = vst [vmem:[%s163 + $0xe0] sm:$0xff] %v4493
        %4526 = vst [vmem:[%s163 + $0xe8] sm:$0xff] %v4494
        %4527 = vst [vmem:[%s163 + $0xf0] sm:$0xff] %v4495
        %4528 = vst [vmem:[%s163 + $0xf8] sm:$0xff] %v4496
        %s4529 = sand.u32 %s93, 1
        %s4530 = scalar_lea.sflag [#allocation4], %s4529
        %s4531 = sand.u32 %s93, 1
        %s4532 = smul.addr %s4531, 256
        %s4533 = scalar_lea.vmem [#allocation3], %s4532
        // Predicated region
        $region33: #{tpu_custom_call.1} parent=31 // pred_check
          %p4534 = pneg %p103
        $region34: #{tpu_custom_call.1} parent=31 // pred_check_branch
          %4536 = sbr.rel (%p4534) target = $region36
        $region35: #{tpu_custom_call.1} parent=31 // pred_region
          %4538 = vsyncadd %s4530, 0
          %s4539 = smul.addr %s17, 32
          %s4540 = smul.addr %s4539, 8
          %s4541 = scalar_lea.hbm %s3, %s4540
          %s4542 = sshll.u32 %s4533, 4
          %s4543 = int_to_ptr.vmem [resolvable:$true] %s4542
          %s4544 = sshll.u32 %s4541, 4
          %s4545 = int_to_ptr.hbm [resolvable:$true] %s4544
          %4550 = dma.vmem_to_hbm [thread:$0]  %s4543, 4096, %s4545, %s4530, 128, 128, 8
        $region36: #{tpu_custom_call.1} parent=31 // pred_fallthru
          _
      $region32: #{tpu_custom_call.1} parent=5 // pred_fallthru
        _
      %p4551 = scmp.le.s32.totalorder 2, %s12
      // Predicated region
      $region37: #{tpu_custom_call.1} parent=5 // pred_check
        %p4552 = pneg %p4551
      $region38: #{tpu_custom_call.1} parent=5 // pred_check_branch
        %4554 = sbr.rel (%p4552) target = $region40
      $region39: #{tpu_custom_call.1} parent=5 // pred_region
        %s4555 = ssub.s32 %s12, 2
        // Predicated region
        $region41: #{tpu_custom_call.1} parent=39 // pred_check
          %p4556 = pneg %p109
        $region42: #{tpu_custom_call.1} parent=39 // pred_check_branch
          %4558 = sbr.rel (%p4556) target = $region44
        $region43: #{tpu_custom_call.1} parent=39 // pred_region
          %s4559 = sand.u32 %s94, 1
          %s4560 = scalar_lea.sflag [#allocation4], %s4559
          %s4561 = sand.u32 %s94, 1
          %s4562 = smul.addr %s4561, 256
          %s4563 = scalar_lea.vmem [#allocation3], %s4562
          %4565 = dma.done %s4560, 4096
        $region44: #{tpu_custom_call.1} parent=39 // pred_fallthru
          _
      $region40: #{tpu_custom_call.1} parent=5 // pred_fallthru
        _
    $region6: #{tpu_custom_call.1} parent=1 // loop_footer
      %s16 = sadd.s32 1, %s12
    $region7: #{tpu_custom_call.1} parent=1 // loop_footer_branch
      %11 = sbr.rel target = $region3
    $region8: #{tpu_custom_call.1} parent=1 // loop_exit
      _
    %4566 = vsyncpa [#allocation4], 1
    %s4567 = scalar_lea.sflag [#allocation4], 1
    %4568 = vsyncpa %s4567, 1

</llo_original>
